<compile_context>
chip_gen: v7x
topology: tpu7x:2x2x1
jax: 0.10.0
libtpu: 0.0.40
codegen_flags: <defaults>
</compile_context>

<pallas_src>
import functools

import jax
import jax.numpy as jnp
from jax.experimental import pallas as pl
from jax.experimental.pallas import tpu as pltpu

# If the full-K weight slab for the chosen tn fits in this budget, take tk = K
# (single weight DMA per N tile).
_SMALL_WEIGHT_BYTES = 4 * 1024 * 1024


# ----------------------------- per-generation config -----------------------------

@functools.lru_cache(maxsize=None)
def _tpu_config():
    """Returns (tn_max, tk_max, vmem_limit_bytes) for the local TPU generation."""
    vmem = 64 * 1024 * 1024  # conservative default (v7x-sized VMEM)
    try:
        info = pltpu.get_tpu_info()
        vmem = int(getattr(info, "vmem_capacity_bytes", vmem))
    except Exception:
        pass
    if vmem >= 100 * 1024 * 1024:
        # v5e / v6e: 128 MiB VMEM -> full-width N tiles, big weight blocks.
        return 4096, 2048, 96 * 1024 * 1024
    # v7x (64 MiB VMEM, 2 TensorCores) or unknown -> safe everywhere.
    return 2048, 2048, 48 * 1024 * 1024


def _compiler_params():
    _, _, vmem_limit = _tpu_config()
    return pltpu.CompilerParams(
        dimension_semantics=("parallel", "arbitrary"),
        vmem_limit_bytes=vmem_limit,
    )


def _pick_tile(dim, max_tile):
    """Largest tile <= max_tile that divides `dim` (full dim if small)."""
    if dim <= max_tile:
        return dim
    t = max_tile
    while t > 128 and dim % t != 0:
        t //= 2
    return t if dim % t == 0 else dim


def _round_up(n, m):
    return ((n + m - 1) // m) * m


# ----------------------------- Pallas kernel -----------------------------

def _linear_kernel(x_ref, w_ref, b_ref, o_ref, acc_ref, *, apply_relu):
    """One (M, tn) output tile of  out = [relu](x @ W + b).

    Grid axes: (j over N tiles, k over K tiles).  bf16 operands feed the MXU,
    the f32 accumulator lives in VMEM scratch, bias/ReLU are fused into the
    epilogue on the last K step.
    """
    k = pl.program_id(1)

    @pl.when(k == 0)
    def _init():
        acc_ref[...] = jnp.zeros_like(acc_ref)

    acc_ref[...] += jnp.dot(
        x_ref[...], w_ref[...], preferred_element_type=jnp.float32
    )

    @pl.when(k == pl.num_programs(1) - 1)
    def _finalize():
        out = acc_ref[...] + b_ref[...]          # f32 epilogue
        if apply_relu:
            out = jnp.maximum(out, 0.0)
        o_ref[...] = out.astype(o_ref.dtype)


# ----------------------------- wrapper -----------------------------

def linear(x, w_bf16, bias_f32, *, relu, out_dtype=jnp.float32):
    """Fused  out = [relu](x @ W + b).

    x:        (M, K)  float32 or bfloat16 activations (M = batch, small)
    w_bf16:   (K, N)  bfloat16 weights (already transposed for the GEMM)
    bias_f32: (N,)    float32 bias
    """
    M, K = x.shape
    Kw, N = w_bf16.shape
    assert K == Kw, (K, Kw)

    tn_max, tk_max, _ = _tpu_config()
    tn = _pick_tile(N, tn_max)
    if tn * K * 2 <= _SMALL_WEIGHT_BYTES:
        tk = K                                   # whole-K slab, 1 DMA per N tile
    else:
        tk = _pick_tile(K, tk_max)

    x_bf = x.astype(jnp.bfloat16)                      # bf16 MXU operand
    b2 = bias_f32.reshape(1, N).astype(jnp.float32)    # f32 epilogue operand

    kernel = functools.partial(_linear_kernel, apply_relu=relu)

    return pl.pallas_call(
        kernel,
        out_shape=jax.ShapeDtypeStruct((M, N), out_dtype),
        grid=(N // tn, K // tk),
        in_specs=[
            pl.BlockSpec((M, tk), lambda j, k: (0, k)),   # activations
            pl.BlockSpec((tk, tn), lambda j, k: (k, j)),  # weights
            pl.BlockSpec((1, tn), lambda j, k: (0, j)),   # bias
        ],
        out_specs=pl.BlockSpec((M, tn), lambda j, k: (0, j)),
        scratch_shapes=[pltpu.VMEM((M, tn), jnp.float32)],
        compiler_params=_compiler_params(),
    )(x_bf, w_bf16, b2)


# ----------------------------- parameters -----------------------------

def init_params(key, num_classes=(100,), input_feat_dim=512, hidden_dim=4096):
    """Matches Instance_Classifier_Head._initialize_weights:
    Linear.weight ~ N(0, 0.01), Linear.bias = 0.

    The top layer's output dim is zero-padded to a multiple of 128 so its
    weight minor dim / output stores are lane-dense; the wrapper slices the
    logits back to num_classes[0].
    """
    k1, k2, k3 = jax.random.split(key, 3)

    def lin(k, fan_in, fan_out, pad_to=None):
        w = 0.01 * jax.random.normal(k, (fan_in, fan_out), jnp.float32)
        b = jnp.zeros((fan_out,), jnp.float32)
        if pad_to is not None and pad_to > fan_out:
            w = jnp.pad(w, ((0, 0), (0, pad_to - fan_out)))
            b = jnp.pad(b, (0, pad_to - fan_out))
        return w.astype(jnp.bfloat16), b   # weights stored bf16 (MXU operand)

    n_top = int(num_classes[0])
    return {
        "fc1": lin(k1, input_feat_dim, hidden_dim),
        "fc2": lin(k2, hidden_dim, hidden_dim),
        "top": lin(k3, hidden_dim, n_top, pad_to=_round_up(n_top, 128)),
        "num_classes0": n_top,
        "headcount": len(num_classes),
    }


# ----------------------------- model forward -----------------------------

def forward(params, x, return_features=False):
    # nn.Dropout(0.5): inference semantics -> identity (see TODO at top).
    w1, b1 = params["fc1"]
    w2, b2 = params["fc2"]

    h = linear(x, w1, b1, relu=True, out_dtype=jnp.bfloat16)
    h = linear(
        h, w2, b2, relu=True,
        out_dtype=jnp.float32 if return_features else jnp.bfloat16,
    )
    if return_features:
        return h

    w3, b3 = params["top"]
    logits = linear(h, w3, b3, relu=False, out_dtype=jnp.float32)
    return logits[:, : params["num_classes0"]]   # drop the lane padding


# ----------------------------- main -----------------------------

if __name__ == "__main__":
    num_classes = (100,)
    root = jax.random.PRNGKey(0)
    x_key, p_key = jax.random.split(root)

    params = init_params(p_key, num_classes=num_classes, input_feat_dim=512)
    x = jax.random.normal(x_key, (2, 512), jnp.float32)   # (batch, feat_dim)

    out = jax.block_until_ready(forward(params, x))

    assert out.shape == (2, num_classes[0]), out.shape
    assert bool(jnp.all(jnp.isfinite(out)))
    print("KERNEL_OK")
</pallas_src>

<mosaic_0001>
module attributes {stable_mosaic.version = 11 : i64} {
  func.func @_linear_kernel(%arg0: i32, %arg1: i32, %arg2: memref<2x512xbf16, #tpu.memory_space<vmem>>, %arg3: memref<512x2048xbf16, #tpu.memory_space<vmem>>, %arg4: memref<1x2048xf32, #tpu.memory_space<vmem>>, %arg5: memref<2x2048xbf16, #tpu.memory_space<vmem>>, %arg6: memref<2x2048xf32, #tpu.memory_space<vmem>>) attributes {dimension_semantics = [#tpu.dimension_semantics<parallel>, #tpu.dimension_semantics<arbitrary>], iteration_bounds = array<i64: 2, 1>, scalar_prefetch = 0 : i64, scratch_operands = 1 : i64, tpu.core_type = #tpu.core_type<tc>, window_params = [{transform_indices = @transform_0, window_bounds = array<i64: 2, 512>}, {transform_indices = @transform_1, window_bounds = array<i64: 512, 2048>}, {transform_indices = @transform_2, window_bounds = array<i64: 1, 2048>}, {transform_indices = @transform_3, window_bounds = array<i64: 2, 2048>}]} {
    %c0_i32 = arith.constant 0 : i32
    %0 = arith.cmpi eq, %arg1, %c0_i32 : i32
    %1 = arith.extui %0 : i1 to i32
    %c0_i32_0 = arith.constant 0 : i32
    %2 = arith.cmpi ne, %1, %c0_i32_0 : i32
    scf.if %2 {
      %cst_10 = arith.constant 0.000000e+00 : f32
      %12 = vector.broadcast %cst_10 : f32 to vector<2x2048xf32>
      %c0_11 = arith.constant 0 : index
      %c0_12 = arith.constant 0 : index
      %13 = vector.load %arg6[%c0_11, %c0_12] : memref<2x2048xf32, #tpu.memory_space<vmem>>, vector<2x2048xf32>
      tpu.vector_store %arg6[%c0_11, %c0_12], %12 {strides = array<i32>} : memref<2x2048xf32, #tpu.memory_space<vmem>>, vector<2x2048xf32>,
    } else {
    }
    %c0 = arith.constant 0 : index
    %c0_1 = arith.constant 0 : index
    %3 = vector.load %arg6[%c0, %c0_1] : memref<2x2048xf32, #tpu.memory_space<vmem>>, vector<2x2048xf32>
    %c0_2 = arith.constant 0 : index
    %c0_3 = arith.constant 0 : index
    %4 = vector.load %arg2[%c0_2, %c0_3] : memref<2x512xbf16, #tpu.memory_space<vmem>>, vector<2x512xbf16>
    %c0_4 = arith.constant 0 : index
    %c0_5 = arith.constant 0 : index
    %5 = vector.load %arg3[%c0_4, %c0_5] : memref<512x2048xbf16, #tpu.memory_space<vmem>>, vector<512x2048xbf16>
    %cst = arith.constant dense<0.000000e+00> : vector<2x2048xf32>
    %6 = tpu.matmul %4, %5, %cst {dimension_numbers = #tpu.dot_dimension_numbers<[1], [0], [0], [1], [0, 0, 1, 1], [], []>} : vector<2x512xbf16>, vector<512x2048xbf16>, vector<2x2048xf32> -> vector<2x2048xf32>
    %7 = arith.addf %3, %6 : vector<2x2048xf32>
    %c0_6 = arith.constant 0 : index
    %c0_7 = arith.constant 0 : index
    %8 = vector.load %arg6[%c0_6, %c0_7] : memref<2x2048xf32, #tpu.memory_space<vmem>>, vector<2x2048xf32>
    tpu.vector_store %arg6[%c0_6, %c0_7], %7 {strides = array<i32>} : memref<2x2048xf32, #tpu.memory_space<vmem>>, vector<2x2048xf32>,
    %c0_i32_8 = arith.constant 0 : i32
    %9 = arith.cmpi eq, %arg1, %c0_i32_8 : i32
    %10 = arith.extui %9 : i1 to i32
    %c0_i32_9 = arith.constant 0 : i32
    %11 = arith.cmpi ne, %10, %c0_i32_9 : i32
    scf.if %11 {
      %c0_10 = arith.constant 0 : index
      %c0_11 = arith.constant 0 : index
      %12 = vector.load %arg6[%c0_10, %c0_11] : memref<2x2048xf32, #tpu.memory_space<vmem>>, vector<2x2048xf32>
      %c0_12 = arith.constant 0 : index
      %c0_13 = arith.constant 0 : index
      %13 = vector.load %arg4[%c0_12, %c0_13] : memref<1x2048xf32, #tpu.memory_space<vmem>>, vector<1x2048xf32>
      %14 = vector.broadcast %13 : vector<1x2048xf32> to vector<2x2048xf32>
      %15 = arith.addf %12, %14 : vector<2x2048xf32>
      %cst_14 = arith.constant 0.000000e+00 : f32
      %16 = vector.broadcast %cst_14 : f32 to vector<2x2048xf32>
      %17 = arith.maximumf %15, %16 : vector<2x2048xf32>
      %18 = arith.truncf %17 : vector<2x2048xf32> to vector<2x2048xbf16>
      %c0_15 = arith.constant 0 : index
      %c0_16 = arith.constant 0 : index
      %19 = vector.load %arg5[%c0_15, %c0_16] : memref<2x2048xbf16, #tpu.memory_space<vmem>>, vector<2x2048xbf16>
      tpu.vector_store %arg5[%c0_15, %c0_16], %18 {strides = array<i32>} : memref<2x2048xbf16, #tpu.memory_space<vmem>>, vector<2x2048xbf16>,
    } else {
    }
    return
  }
  func.func @transform_0(%arg0: i32, %arg1: i32) -> (i32, i32) {
    %c0_i32 = arith.constant 0 : i32
    %c0_i32_0 = arith.constant 0 : i32
    return %c0_i32, %arg1 : i32, i32
  }
  func.func @transform_1(%arg0: i32, %arg1: i32) -> (i32, i32) {
    %c0_i32 = arith.constant 0 : i32
    return %arg1, %arg0 : i32, i32
  }
  func.func @transform_2(%arg0: i32, %arg1: i32) -> (i32, i32) {
    %c0_i32 = arith.constant 0 : i32
    %c0_i32_0 = arith.constant 0 : i32
    return %c0_i32, %arg0 : i32, i32
  }
  func.func @transform_3(%arg0: i32, %arg1: i32) -> (i32, i32) {
    %c0_i32 = arith.constant 0 : i32
    %c0_i32_0 = arith.constant 0 : i32
    return %c0_i32, %arg0 : i32, i32
  }
}

</mosaic_0001>

<llo_original>
// kernel: tpu_custom_call.1
$region0: #{tpu_custom_call.1}
  #allocation0 [shape = 'u32[]', space=smem, size = 0x4, offset = 0x4, fixed_abs, tag = 'smem constant byte address 0x4 - core index']
  #allocation1 [shape = 'u32[144,128]{1,0:T(1,128)}', space=vmem, size = 0x12000, scoped, tag = 'internal scratch']
  #allocation2 [shape = 'f32[2,2048]{1,0:T(2,128)}', space=vmem, size = 0x4000, scoped, tag = 'scratch operand']
  %s0 = inlined_call_operand.hbm [shape: bf16[2,512], index: 0, kind: input, shape index: {}]
  %s1 = inlined_call_operand.hbm [shape: bf16[512,4096], index: 1, kind: input, shape index: {}]
  %s2 = inlined_call_operand.hbm [shape: f32[1,4096], index: 2, kind: input, shape index: {}]
  %s3 = inlined_call_operand.hbm [shape: bf16[2,4096], index: 3, kind: output, shape index: {}]
  %s4 = sld [smem:[#allocation0]]
  $region65: #{tpu_custom_call.1} parent=0
    _
  %s6 = ssub.s32 1, %s4
  %s7 = scalar_select 0, %s6, %s4
  $region1: #{tpu_custom_call.1} parent=0
    #allocation3 [shape = 'u8[2048]{0}', space=vmem, size = 0x800, scoped, tag = 'input window, operand 0, single buffered']
    #allocation4 [shape = 's32[2]{0}', space=sflag, size = 0x8, scoped, tag = 'scoped memory for tpu_custom_call.1']
    #allocation5 [shape = 's32[2]{0}', space=sflag, size = 0x8, scoped, tag = 'scoped memory for tpu_custom_call.1']
    #allocation6 [shape = 'u8[4194304]{0}', space=vmem, size = 0x400000, scoped, tag = 'input window, operand 1']
    #allocation7 [shape = 's32[2]{0}', space=sflag, size = 0x8, scoped, tag = 'scoped memory for tpu_custom_call.1']
    #allocation8 [shape = 'u8[16384]{0}', space=vmem, size = 0x4000, scoped, tag = 'input window, operand 2']
    #allocation9 [shape = 'u8[16384]{0}', space=vmem, size = 0x4000, scoped, tag = 'output window, operand 0']
    %8 = vsyncpa [#allocation4], 0
    %9 = vsyncpa [#allocation7], 0
    %s10 = scalar_lea.sflag [#allocation7], 1
    %11 = vsyncpa %s10, 0
    %12 = vsyncpa [#allocation5], 0
    %s13 = scalar_lea.sflag [#allocation5], 1
    %14 = vsyncpa %s13, 0
    loop: start=0, step=1, limit=4
    $region2: #{tpu_custom_call.1} parent=1 // loop_pre_header
      _
    $region3: #{tpu_custom_call.1} parent=1 // loop_header
      %s16 = sphi 0, %s20
      %p17 = scmp.ge.s32.totalorder %s16, 4
      %s23 = sphi 0, %s35
      %s24 = sphi 0, %s31
      %s25 = sphi 0, %s23
      %s26 = sphi 0, %s24
      %s27 = sphi 0, %s25
      %s28 = sphi 0, %s26
      %s38 = sphi 0, %s40
      %s41 = sphi 0, %s38
      %s42 = sphi 0, %s41
      %s58 = sphi 0, %s42
      %s66 = sphi 0, %s68
      %s69 = sphi 0, %s66
      %s70 = sphi 0, %s69
      %s86 = sphi 0, %s70
      %s92 = sphi 0, %s94
      %s95 = sphi 0, %s92
      %s96 = sphi 0, %s95
      %s112 = sphi 0, %s96
      %s118 = sphi 0, %s120
      %s121 = sphi 0, %s118
      %s122 = sphi 0, %s121
      %s138 = sphi 0, %s122
    $region4: #{tpu_custom_call.1} parent=1 // loop_header_branch
      %19 = sbr.rel (%p17) target = $region8
    $region5: #{tpu_custom_call.1} parent=1 // loop_body
      %s21 = ssub.s32 %s16, 1
      %s22 = ssub.s32 %s16, 2
      %s29 = sadd.s32 1, %s24
      %p30 = scmp.ge.s32.totalorder %s29, 1
      %s31 = scalar_select %p30, 0, %s29
      %s32 = sadd.s32 1, %s23
      %s33 = scalar_select %p30, %s32, %s23
      %p34 = scmp.ge.s32.totalorder %s33, 2
      %s35 = scalar_select %p34, 0, %s33
      %s36 = ssub.s32 %s24, %s31
      %p37 = scmp.eq.s32.totalorder %s36, 0
      %s39 = sadd.s32 %s38, 1
      %s40 = scalar_select %p37, %s38, %s39
      %p43 = pneg %p37
      %p44 = scmp.eq.s32.totalorder %s16, 1
      %p45 = por %p43, %p44
      %p46 = scmp.ne.s32.totalorder %s38, %s41
      %p47 = scmp.eq.s32.totalorder %s16, 0
      %p48 = por %p46, %p47
      %p49 = scmp.ne.s32.totalorder %s38, %s41
      %p50 = scmp.eq.s32.totalorder %s21, 1
      %p51 = por %p49, %p50
      %p52 = scmp.ne.s32.totalorder %s41, %s42
      %p53 = scmp.eq.s32.totalorder %s21, 0
      %p54 = por %p52, %p53
      %p55 = scmp.ne.s32.totalorder %s41, %s42
      %p56 = scmp.eq.s32.totalorder %s22, 1
      %p57 = por %p55, %p56
      %p59 = scmp.ne.s32.totalorder %s42, %s58
      %p60 = scmp.eq.s32.totalorder %s22, 0
      %p61 = por %p59, %p60
      %s62 = ssub.s32 %s24, %s31
      %s63 = ssub.s32 %s23, %s35
      %s64 = sor.u32 %s62, %s63
      %p65 = scmp.eq.s32.totalorder %s64, 0
      %s67 = sadd.s32 %s66, 1
      %s68 = scalar_select %p65, %s66, %s67
      %p71 = pneg %p65
      %p72 = scmp.eq.s32.totalorder %s16, 1
      %p73 = por %p71, %p72
      %p74 = scmp.ne.s32.totalorder %s66, %s69
      %p75 = scmp.eq.s32.totalorder %s16, 0
      %p76 = por %p74, %p75
      %p77 = scmp.ne.s32.totalorder %s66, %s69
      %p78 = scmp.eq.s32.totalorder %s21, 1
      %p79 = por %p77, %p78
      %p80 = scmp.ne.s32.totalorder %s69, %s70
      %p81 = scmp.eq.s32.totalorder %s21, 0
      %p82 = por %p80, %p81
      %p83 = scmp.ne.s32.totalorder %s69, %s70
      %p84 = scmp.eq.s32.totalorder %s22, 1
      %p85 = por %p83, %p84
      %p87 = scmp.ne.s32.totalorder %s70, %s86
      %p88 = scmp.eq.s32.totalorder %s22, 0
      %p89 = por %p87, %p88
      %s90 = ssub.s32 %s23, %s35
      %p91 = scmp.eq.s32.totalorder %s90, 0
      %s93 = sadd.s32 %s92, 1
      %s94 = scalar_select %p91, %s92, %s93
      %p97 = pneg %p91
      %p98 = scmp.eq.s32.totalorder %s16, 1
      %p99 = por %p97, %p98
      %p100 = scmp.ne.s32.totalorder %s92, %s95
      %p101 = scmp.eq.s32.totalorder %s16, 0
      %p102 = por %p100, %p101
      %p103 = scmp.ne.s32.totalorder %s92, %s95
      %p104 = scmp.eq.s32.totalorder %s21, 1
      %p105 = por %p103, %p104
      %p106 = scmp.ne.s32.totalorder %s95, %s96
      %p107 = scmp.eq.s32.totalorder %s21, 0
      %p108 = por %p106, %p107
      %p109 = scmp.ne.s32.totalorder %s95, %s96
      %p110 = scmp.eq.s32.totalorder %s22, 1
      %p111 = por %p109, %p110
      %p113 = scmp.ne.s32.totalorder %s96, %s112
      %p114 = scmp.eq.s32.totalorder %s22, 0
      %p115 = por %p113, %p114
      %s116 = ssub.s32 %s23, %s35
      %p117 = scmp.eq.s32.totalorder %s116, 0
      %s119 = sadd.s32 %s118, 1
      %s120 = scalar_select %p117, %s118, %s119
      %p123 = pneg %p117
      %p124 = scmp.eq.s32.totalorder %s16, 1
      %p125 = por %p123, %p124
      %p126 = scmp.ne.s32.totalorder %s118, %s121
      %p127 = scmp.eq.s32.totalorder %s16, 0
      %p128 = por %p126, %p127
      %p129 = scmp.ne.s32.totalorder %s118, %s121
      %p130 = scmp.eq.s32.totalorder %s21, 1
      %p131 = por %p129, %p130
      %p132 = scmp.ne.s32.totalorder %s121, %s122
      %p133 = scmp.eq.s32.totalorder %s21, 0
      %p134 = por %p132, %p133
      %p135 = scmp.ne.s32.totalorder %s121, %s122
      %p136 = scmp.eq.s32.totalorder %s22, 1
      %p137 = por %p135, %p136
      %p139 = scmp.ne.s32.totalorder %s122, %s138
      %p140 = scmp.eq.s32.totalorder %s22, 0
      %p141 = por %p139, %p140
      %p142 = scmp.le.s32.totalorder 1, %s16
      %p143 = scmp.lt.s32.totalorder %s16, 3
      %p144 = pnand %p142, %p143
      %p145 = pneg %p144
      // Predicated region
      $region9: #{tpu_custom_call.1} parent=5 // pred_check
        _
      $region10: #{tpu_custom_call.1} parent=5 // pred_check_branch
        %147 = sbr.rel (%p144) target = $region12
      $region11: #{tpu_custom_call.1} parent=5 // pred_region
        %s148 = ssub.s32 %s16, 1
        // Predicated region
        $region13: #{tpu_custom_call.1} parent=11 // pred_check
          %p149 = pneg %p54
        $region14: #{tpu_custom_call.1} parent=11 // pred_check_branch
          %151 = sbr.rel (%p149) target = $region16
        $region15: #{tpu_custom_call.1} parent=11 // pred_region
          %s152 = smul.u32 4, %s26
          %s154 = ssub.s32 64, 64
          %155 = vsyncadd [#allocation4], %s154
          %s156 = smul.addr %s152, 16
          %s157 = scalar_lea.hbm %s0, %s156
          %s159 = sshll.u32 [#allocation3], 4
          %s160 = int_to_ptr.vmem [resolvable:$true] %s159
          %162 = dma.hbm_to_vmem [thread:$0]  %s157, 64, %s160, [#allocation4]
        $region16: #{tpu_custom_call.1} parent=11 // pred_fallthru
          _
      $region12: #{tpu_custom_call.1} parent=5 // pred_fallthru
        _
      %p163 = scmp.lt.s32.totalorder %s16, 2
      // Predicated region
      $region17: #{tpu_custom_call.1} parent=5 // pred_check
        %p164 = pneg %p163
      $region18: #{tpu_custom_call.1} parent=5 // pred_check_branch
        %166 = sbr.rel (%p164) target = $region20
      $region19: #{tpu_custom_call.1} parent=5 // pred_region
        // Predicated region
        $region21: #{tpu_custom_call.1} parent=19 // pred_check
          %p167 = pneg %p76
        $region22: #{tpu_custom_call.1} parent=19 // pred_check_branch
          %169 = sbr.rel (%p167) target = $region24
        $region23: #{tpu_custom_call.1} parent=19 // pred_region
          %s170 = sand.u32 %s16, 1
          %s171 = scalar_lea.sflag [#allocation7], %s170
          %s172 = sand.u32 %s66, 1
          %s173 = smul.addr %s172, 4096
          %s174 = scalar_lea.vmem [#allocation6], %s173
          %s175 = smul.u32 64, %s24
          %s176 = smul.u32 16, %s23
          %s178 = ssub.s32 65536, 65536
          %179 = vsyncadd %s171, %s178
          %s180 = smul.addr %s175, 32
          %s181 = sadd.s32 %s176, %s180
          %s182 = smul.addr %s181, 64
          %s183 = scalar_lea.hbm %s1, %s182
          %s184 = sshll.u32 %s174, 4
          %s185 = int_to_ptr.vmem [resolvable:$true] %s184
          %190 = dma.hbm_to_vmem [thread:$0]  %s183, 65536, %s185, %s171, 2048, 1024, 64
        $region24: #{tpu_custom_call.1} parent=19 // pred_fallthru
          _
        // Predicated region
        $region25: #{tpu_custom_call.1} parent=19 // pred_check
          %p191 = pneg %p102
        $region26: #{tpu_custom_call.1} parent=19 // pred_check_branch
          %193 = sbr.rel (%p191) target = $region28
        $region27: #{tpu_custom_call.1} parent=19 // pred_region
          %s194 = sand.u32 %s16, 1
          %s195 = scalar_lea.sflag [#allocation7], %s194
          %s196 = sand.u32 %s92, 1
          %s197 = smul.addr %s196, 16
          %s198 = scalar_lea.vmem [#allocation8], %s197
          %s199 = smul.u32 16, %s23
          %s201 = ssub.s32 256, 256
          %202 = vsyncadd %s195, %s201
          %s203 = smul.addr %s199, 16
          %s204 = scalar_lea.hbm %s2, %s203
          %s206 = sshll.u32 %s198, 4
          %s207 = int_to_ptr.vmem [resolvable:$true] %s206
          %209 = dma.hbm_to_vmem [thread:$0]  %s204, 256, %s207, %s195
        $region28: #{tpu_custom_call.1} parent=19 // pred_fallthru
          _
      $region20: #{tpu_custom_call.1} parent=5 // pred_fallthru
        _
      %p210 = scmp.le.s32.totalorder 1, %s16
      %p211 = scmp.lt.s32.totalorder %s16, 3
      %p212 = pnand %p210, %p211
      %p213 = pneg %p212
      // Predicated region
      $region29: #{tpu_custom_call.1} parent=5 // pred_check
        _
      $region30: #{tpu_custom_call.1} parent=5 // pred_check_branch
        %215 = sbr.rel (%p212) target = $region32
      $region31: #{tpu_custom_call.1} parent=5 // pred_region
        %s216 = ssub.s32 %s16, 1
        // Predicated region
        $region33: #{tpu_custom_call.1} parent=31 // pred_check
          %p217 = pneg %p54
        $region34: #{tpu_custom_call.1} parent=31 // pred_check_branch
          %219 = sbr.rel (%p217) target = $region36
        $region35: #{tpu_custom_call.1} parent=31 // pred_region
          %220 = dma.done [#allocation4], 64
        $region36: #{tpu_custom_call.1} parent=31 // pred_fallthru
          _
        %s221 = sand.u32 %s21, 1
        %s222 = scalar_lea.sflag [#allocation7], %s221
        %s223 = sand.u32 %s69, 1
        %s224 = smul.addr %s223, 4096
        %s225 = scalar_lea.vmem [#allocation6], %s224
        // Predicated region
        $region37: #{tpu_custom_call.1} parent=31 // pred_check
          %p226 = pneg %p82
        $region38: #{tpu_custom_call.1} parent=31 // pred_check_branch
          %228 = sbr.rel (%p226) target = $region40
        $region39: #{tpu_custom_call.1} parent=31 // pred_region
          %229 = dma.done %s222, 65536
        $region40: #{tpu_custom_call.1} parent=31 // pred_fallthru
          _
        %s230 = sand.u32 %s21, 1
        %s231 = scalar_lea.sflag [#allocation7], %s230
        %s232 = sand.u32 %s95, 1
        %s233 = smul.addr %s232, 16
        %s234 = scalar_lea.vmem [#allocation8], %s233
        // Predicated region
        $region41: #{tpu_custom_call.1} parent=31 // pred_check
          %p235 = pneg %p108
        $region42: #{tpu_custom_call.1} parent=31 // pred_check_branch
          %237 = sbr.rel (%p235) target = $region44
        $region43: #{tpu_custom_call.1} parent=31 // pred_region
          %238 = dma.done %s231, 256
        $region44: #{tpu_custom_call.1} parent=31 // pred_fallthru
          _
        %p239 = pneg %p54
        %p240 = pneg %p51
        %s241 = sand.u32 %s21, 1
        %s242 = scalar_lea.sflag [#allocation7], %s241
        %s243 = sand.u32 %s69, 1
        %s244 = smul.addr %s243, 4096
        %s245 = scalar_lea.vmem [#allocation6], %s244
        %p246 = pneg %p82
        %p247 = pneg %p79
        %s248 = sand.u32 %s21, 1
        %s249 = scalar_lea.sflag [#allocation7], %s248
        %s250 = sand.u32 %s95, 1
        %s251 = smul.addr %s250, 16
        %s252 = scalar_lea.vmem [#allocation8], %s251
        %p253 = pneg %p108
        %p254 = pneg %p105
        %p255 = pneg %p134
        %p256 = pneg %p131
        %s257 = sand.u32 %s121, 1
        %s258 = scalar_lea.sflag [#allocation5], %s257
        %s259 = sand.u32 %s121, 1
        %s260 = smul.addr %s259, 16
        %s261 = scalar_lea.vmem [#allocation9], %s260
        %s262 = smul.u32 4, %s26
        %s263 = smul.u32 64, %s26
        %s264 = smul.u32 16, %s25
        %s265 = smul.u32 16, %s25
        %s266 = smul.u32 16, %s25
        %p267 = scmp.eq.s32.totalorder %s26, 0
        // Predicated region
        $region45: #{tpu_custom_call.1} parent=31 // pred_check
          %p268 = pneg %p267
        $region46: #{tpu_custom_call.1} parent=31 // pred_check_branch
          %270 = sbr.rel (%p268) target = $region48
        $region47: #{tpu_custom_call.1} parent=31 // pred_region
          %271 = vst [vmem:[#allocation2] sm:$0xff] 0.0
          %272 = vst [vmem:[#allocation2 + $0x8] sm:$0xff] 0.0
          %273 = vst [vmem:[#allocation2 + $0x10] sm:$0xff] 0.0
          %274 = vst [vmem:[#allocation2 + $0x18] sm:$0xff] 0.0
        $region48: #{tpu_custom_call.1} parent=31 // pred_fallthru
          _
        %v275 = vld [vmem:[#allocation2] sm:$0xff]
        %v276 = vld [vmem:[#allocation2 + $0x8] sm:$0xff]
        %v277 = vld [vmem:[#allocation2 + $0x10] sm:$0xff]
        %v278 = vld [vmem:[#allocation2 + $0x18] sm:$0xff]
        %v279 = vld [vmem:[#allocation3] sm:$0xf]
        %v280 = vld [vmem:[%s225] sm:$0xff]
        %v281 = vld [vmem:[%s225 + $0x8] sm:$0xff]
        %v282 = vld [vmem:[%s225 + $0x10] sm:$0xff]
        %v283 = vld [vmem:[%s225 + $0x18] sm:$0xff]
        %v284 = vld [vmem:[%s225 + $0x20] sm:$0xff]
        %v285 = vld [vmem:[%s225 + $0x28] sm:$0xff]
        %v286 = vld [vmem:[%s225 + $0x30] sm:$0xff]
        %v287 = vld [vmem:[%s225 + $0x38] sm:$0xff]
        %v288 = vld [vmem:[%s225 + $0x40] sm:$0xff]
        %v289 = vld [vmem:[%s225 + $0x48] sm:$0xff]
        %v290 = vld [vmem:[%s225 + $0x50] sm:$0xff]
        %v291 = vld [vmem:[%s225 + $0x58] sm:$0xff]
        %v292 = vld [vmem:[%s225 + $0x60] sm:$0xff]
        %v293 = vld [vmem:[%s225 + $0x68] sm:$0xff]
        %v294 = vld [vmem:[%s225 + $0x70] sm:$0xff]
        %v295 = vld [vmem:[%s225 + $0x78] sm:$0xff]
        %v296 = vld [vmem:[%s225 + $0x80] sm:$0xff]
        %v297 = vld [vmem:[%s225 + $0x88] sm:$0xff]
        %v298 = vld [vmem:[%s225 + $0x90] sm:$0xff]
        %v299 = vld [vmem:[%s225 + $0x98] sm:$0xff]
        %v300 = vld [vmem:[%s225 + $0xa0] sm:$0xff]
        %v301 = vld [vmem:[%s225 + $0xa8] sm:$0xff]
        %v302 = vld [vmem:[%s225 + $0xb0] sm:$0xff]
        %v303 = vld [vmem:[%s225 + $0xb8] sm:$0xff]
        %v304 = vld [vmem:[%s225 + $0xc0] sm:$0xff]
        %v305 = vld [vmem:[%s225 + $0xc8] sm:$0xff]
        %v306 = vld [vmem:[%s225 + $0xd0] sm:$0xff]
        %v307 = vld [vmem:[%s225 + $0xd8] sm:$0xff]
        %v308 = vld [vmem:[%s225 + $0xe0] sm:$0xff]
        %v309 = vld [vmem:[%s225 + $0xe8] sm:$0xff]
        %v310 = vld [vmem:[%s225 + $0xf0] sm:$0xff]
        %v311 = vld [vmem:[%s225 + $0xf8] sm:$0xff]
        %v312 = vld [vmem:[%s225 + $0x100] sm:$0xff]
        %v313 = vld [vmem:[%s225 + $0x108] sm:$0xff]
        %v314 = vld [vmem:[%s225 + $0x110] sm:$0xff]
        %v315 = vld [vmem:[%s225 + $0x118] sm:$0xff]
        %v316 = vld [vmem:[%s225 + $0x120] sm:$0xff]
        %v317 = vld [vmem:[%s225 + $0x128] sm:$0xff]
        %v318 = vld [vmem:[%s225 + $0x130] sm:$0xff]
        %v319 = vld [vmem:[%s225 + $0x138] sm:$0xff]
        %v320 = vld [vmem:[%s225 + $0x140] sm:$0xff]
        %v321 = vld [vmem:[%s225 + $0x148] sm:$0xff]
        %v322 = vld [vmem:[%s225 + $0x150] sm:$0xff]
        %v323 = vld [vmem:[%s225 + $0x158] sm:$0xff]
        %v324 = vld [vmem:[%s225 + $0x160] sm:$0xff]
        %v325 = vld [vmem:[%s225 + $0x168] sm:$0xff]
        %v326 = vld [vmem:[%s225 + $0x170] sm:$0xff]
        %v327 = vld [vmem:[%s225 + $0x178] sm:$0xff]
        %v328 = vld [vmem:[%s225 + $0x180] sm:$0xff]
        %v329 = vld [vmem:[%s225 + $0x188] sm:$0xff]
        %v330 = vld [vmem:[%s225 + $0x190] sm:$0xff]
        %v331 = vld [vmem:[%s225 + $0x198] sm:$0xff]
        %v332 = vld [vmem:[%s225 + $0x1a0] sm:$0xff]
        %v333 = vld [vmem:[%s225 + $0x1a8] sm:$0xff]
        %v334 = vld [vmem:[%s225 + $0x1b0] sm:$0xff]
        %v335 = vld [vmem:[%s225 + $0x1b8] sm:$0xff]
        %v336 = vld [vmem:[%s225 + $0x1c0] sm:$0xff]
        %v337 = vld [vmem:[%s225 + $0x1c8] sm:$0xff]
        %v338 = vld [vmem:[%s225 + $0x1d0] sm:$0xff]
        %v339 = vld [vmem:[%s225 + $0x1d8] sm:$0xff]
        %v340 = vld [vmem:[%s225 + $0x1e0] sm:$0xff]
        %v341 = vld [vmem:[%s225 + $0x1e8] sm:$0xff]
        %v342 = vld [vmem:[%s225 + $0x1f0] sm:$0xff]
        %v343 = vld [vmem:[%s225 + $0x1f8] sm:$0xff]
        %v344 = vld [vmem:[%s225 + $0x200] sm:$0xff]
        %v345 = vld [vmem:[%s225 + $0x208] sm:$0xff]
        %v346 = vld [vmem:[%s225 + $0x210] sm:$0xff]
        %v347 = vld [vmem:[%s225 + $0x218] sm:$0xff]
        %v348 = vld [vmem:[%s225 + $0x220] sm:$0xff]
        %v349 = vld [vmem:[%s225 + $0x228] sm:$0xff]
        %v350 = vld [vmem:[%s225 + $0x230] sm:$0xff]
        %v351 = vld [vmem:[%s225 + $0x238] sm:$0xff]
        %v352 = vld [vmem:[%s225 + $0x240] sm:$0xff]
        %v353 = vld [vmem:[%s225 + $0x248] sm:$0xff]
        %v354 = vld [vmem:[%s225 + $0x250] sm:$0xff]
        %v355 = vld [vmem:[%s225 + $0x258] sm:$0xff]
        %v356 = vld [vmem:[%s225 + $0x260] sm:$0xff]
        %v357 = vld [vmem:[%s225 + $0x268] sm:$0xff]
        %v358 = vld [vmem:[%s225 + $0x270] sm:$0xff]
        %v359 = vld [vmem:[%s225 + $0x278] sm:$0xff]
        %v360 = vld [vmem:[%s225 + $0x280] sm:$0xff]
        %v361 = vld [vmem:[%s225 + $0x288] sm:$0xff]
        %v362 = vld [vmem:[%s225 + $0x290] sm:$0xff]
        %v363 = vld [vmem:[%s225 + $0x298] sm:$0xff]
        %v364 = vld [vmem:[%s225 + $0x2a0] sm:$0xff]
        %v365 = vld [vmem:[%s225 + $0x2a8] sm:$0xff]
        %v366 = vld [vmem:[%s225 + $0x2b0] sm:$0xff]
        %v367 = vld [vmem:[%s225 + $0x2b8] sm:$0xff]
        %v368 = vld [vmem:[%s225 + $0x2c0] sm:$0xff]
        %v369 = vld [vmem:[%s225 + $0x2c8] sm:$0xff]
        %v370 = vld [vmem:[%s225 + $0x2d0] sm:$0xff]
        %v371 = vld [vmem:[%s225 + $0x2d8] sm:$0xff]
        %v372 = vld [vmem:[%s225 + $0x2e0] sm:$0xff]
        %v373 = vld [vmem:[%s225 + $0x2e8] sm:$0xff]
        %v374 = vld [vmem:[%s225 + $0x2f0] sm:$0xff]
        %v375 = vld [vmem:[%s225 + $0x2f8] sm:$0xff]
        %v376 = vld [vmem:[%s225 + $0x300] sm:$0xff]
        %v377 = vld [vmem:[%s225 + $0x308] sm:$0xff]
        %v378 = vld [vmem:[%s225 + $0x310] sm:$0xff]
        %v379 = vld [vmem:[%s225 + $0x318] sm:$0xff]
        %v380 = vld [vmem:[%s225 + $0x320] sm:$0xff]
        %v381 = vld [vmem:[%s225 + $0x328] sm:$0xff]
        %v382 = vld [vmem:[%s225 + $0x330] sm:$0xff]
        %v383 = vld [vmem:[%s225 + $0x338] sm:$0xff]
        %v384 = vld [vmem:[%s225 + $0x340] sm:$0xff]
        %v385 = vld [vmem:[%s225 + $0x348] sm:$0xff]
        %v386 = vld [vmem:[%s225 + $0x350] sm:$0xff]
        %v387 = vld [vmem:[%s225 + $0x358] sm:$0xff]
        %v388 = vld [vmem:[%s225 + $0x360] sm:$0xff]
        %v389 = vld [vmem:[%s225 + $0x368] sm:$0xff]
        %v390 = vld [vmem:[%s225 + $0x370] sm:$0xff]
        %v391 = vld [vmem:[%s225 + $0x378] sm:$0xff]
        %v392 = vld [vmem:[%s225 + $0x380] sm:$0xff]
        %v393 = vld [vmem:[%s225 + $0x388] sm:$0xff]
        %v394 = vld [vmem:[%s225 + $0x390] sm:$0xff]
        %v395 = vld [vmem:[%s225 + $0x398] sm:$0xff]
        %v396 = vld [vmem:[%s225 + $0x3a0] sm:$0xff]
        %v397 = vld [vmem:[%s225 + $0x3a8] sm:$0xff]
        %v398 = vld [vmem:[%s225 + $0x3b0] sm:$0xff]
        %v399 = vld [vmem:[%s225 + $0x3b8] sm:$0xff]
        %v400 = vld [vmem:[%s225 + $0x3c0] sm:$0xff]
        %v401 = vld [vmem:[%s225 + $0x3c8] sm:$0xff]
        %v402 = vld [vmem:[%s225 + $0x3d0] sm:$0xff]
        %v403 = vld [vmem:[%s225 + $0x3d8] sm:$0xff]
        %v404 = vld [vmem:[%s225 + $0x3e0] sm:$0xff]
        %v405 = vld [vmem:[%s225 + $0x3e8] sm:$0xff]
        %v406 = vld [vmem:[%s225 + $0x3f0] sm:$0xff]
        %v407 = vld [vmem:[%s225 + $0x3f8] sm:$0xff]
        %v408 = vld [vmem:[%s225 + $0x400] sm:$0xff]
        %v409 = vld [vmem:[%s225 + $0x408] sm:$0xff]
        %v410 = vld [vmem:[%s225 + $0x410] sm:$0xff]
        %v411 = vld [vmem:[%s225 + $0x418] sm:$0xff]
        %v412 = vld [vmem:[%s225 + $0x420] sm:$0xff]
        %v413 = vld [vmem:[%s225 + $0x428] sm:$0xff]
        %v414 = vld [vmem:[%s225 + $0x430] sm:$0xff]
        %v415 = vld [vmem:[%s225 + $0x438] sm:$0xff]
        %v416 = vld [vmem:[%s225 + $0x440] sm:$0xff]
        %v417 = vld [vmem:[%s225 + $0x448] sm:$0xff]
        %v418 = vld [vmem:[%s225 + $0x450] sm:$0xff]
        %v419 = vld [vmem:[%s225 + $0x458] sm:$0xff]
        %v420 = vld [vmem:[%s225 + $0x460] sm:$0xff]
        %v421 = vld [vmem:[%s225 + $0x468] sm:$0xff]
        %v422 = vld [vmem:[%s225 + $0x470] sm:$0xff]
        %v423 = vld [vmem:[%s225 + $0x478] sm:$0xff]
        %v424 = vld [vmem:[%s225 + $0x480] sm:$0xff]
        %v425 = vld [vmem:[%s225 + $0x488] sm:$0xff]
        %v426 = vld [vmem:[%s225 + $0x490] sm:$0xff]
        %v427 = vld [vmem:[%s225 + $0x498] sm:$0xff]
        %v428 = vld [vmem:[%s225 + $0x4a0] sm:$0xff]
        %v429 = vld [vmem:[%s225 + $0x4a8] sm:$0xff]
        %v430 = vld [vmem:[%s225 + $0x4b0] sm:$0xff]
        %v431 = vld [vmem:[%s225 + $0x4b8] sm:$0xff]
        %v432 = vld [vmem:[%s225 + $0x4c0] sm:$0xff]
        %v433 = vld [vmem:[%s225 + $0x4c8] sm:$0xff]
        %v434 = vld [vmem:[%s225 + $0x4d0] sm:$0xff]
        %v435 = vld [vmem:[%s225 + $0x4d8] sm:$0xff]
        %v436 = vld [vmem:[%s225 + $0x4e0] sm:$0xff]
        %v437 = vld [vmem:[%s225 + $0x4e8] sm:$0xff]
        %v438 = vld [vmem:[%s225 + $0x4f0] sm:$0xff]
        %v439 = vld [vmem:[%s225 + $0x4f8] sm:$0xff]
        %v440 = vld [vmem:[%s225 + $0x500] sm:$0xff]
        %v441 = vld [vmem:[%s225 + $0x508] sm:$0xff]
        %v442 = vld [vmem:[%s225 + $0x510] sm:$0xff]
        %v443 = vld [vmem:[%s225 + $0x518] sm:$0xff]
        %v444 = vld [vmem:[%s225 + $0x520] sm:$0xff]
        %v445 = vld [vmem:[%s225 + $0x528] sm:$0xff]
        %v446 = vld [vmem:[%s225 + $0x530] sm:$0xff]
        %v447 = vld [vmem:[%s225 + $0x538] sm:$0xff]
        %v448 = vld [vmem:[%s225 + $0x540] sm:$0xff]
        %v449 = vld [vmem:[%s225 + $0x548] sm:$0xff]
        %v450 = vld [vmem:[%s225 + $0x550] sm:$0xff]
        %v451 = vld [vmem:[%s225 + $0x558] sm:$0xff]
        %v452 = vld [vmem:[%s225 + $0x560] sm:$0xff]
        %v453 = vld [vmem:[%s225 + $0x568] sm:$0xff]
        %v454 = vld [vmem:[%s225 + $0x570] sm:$0xff]
        %v455 = vld [vmem:[%s225 + $0x578] sm:$0xff]
        %v456 = vld [vmem:[%s225 + $0x580] sm:$0xff]
        %v457 = vld [vmem:[%s225 + $0x588] sm:$0xff]
        %v458 = vld [vmem:[%s225 + $0x590] sm:$0xff]
        %v459 = vld [vmem:[%s225 + $0x598] sm:$0xff]
        %v460 = vld [vmem:[%s225 + $0x5a0] sm:$0xff]
        %v461 = vld [vmem:[%s225 + $0x5a8] sm:$0xff]
        %v462 = vld [vmem:[%s225 + $0x5b0] sm:$0xff]
        %v463 = vld [vmem:[%s225 + $0x5b8] sm:$0xff]
        %v464 = vld [vmem:[%s225 + $0x5c0] sm:$0xff]
        %v465 = vld [vmem:[%s225 + $0x5c8] sm:$0xff]
        %v466 = vld [vmem:[%s225 + $0x5d0] sm:$0xff]
        %v467 = vld [vmem:[%s225 + $0x5d8] sm:$0xff]
        %v468 = vld [vmem:[%s225 + $0x5e0] sm:$0xff]
        %v469 = vld [vmem:[%s225 + $0x5e8] sm:$0xff]
        %v470 = vld [vmem:[%s225 + $0x5f0] sm:$0xff]
        %v471 = vld [vmem:[%s225 + $0x5f8] sm:$0xff]
        %v472 = vld [vmem:[%s225 + $0x600] sm:$0xff]
        %v473 = vld [vmem:[%s225 + $0x608] sm:$0xff]
        %v474 = vld [vmem:[%s225 + $0x610] sm:$0xff]
        %v475 = vld [vmem:[%s225 + $0x618] sm:$0xff]
        %v476 = vld [vmem:[%s225 + $0x620] sm:$0xff]
        %v477 = vld [vmem:[%s225 + $0x628] sm:$0xff]
        %v478 = vld [vmem:[%s225 + $0x630] sm:$0xff]
        %v479 = vld [vmem:[%s225 + $0x638] sm:$0xff]
        %v480 = vld [vmem:[%s225 + $0x640] sm:$0xff]
        %v481 = vld [vmem:[%s225 + $0x648] sm:$0xff]
        %v482 = vld [vmem:[%s225 + $0x650] sm:$0xff]
        %v483 = vld [vmem:[%s225 + $0x658] sm:$0xff]
        %v484 = vld [vmem:[%s225 + $0x660] sm:$0xff]
        %v485 = vld [vmem:[%s225 + $0x668] sm:$0xff]
        %v486 = vld [vmem:[%s225 + $0x670] sm:$0xff]
        %v487 = vld [vmem:[%s225 + $0x678] sm:$0xff]
        %v488 = vld [vmem:[%s225 + $0x680] sm:$0xff]
        %v489 = vld [vmem:[%s225 + $0x688] sm:$0xff]
        %v490 = vld [vmem:[%s225 + $0x690] sm:$0xff]
        %v491 = vld [vmem:[%s225 + $0x698] sm:$0xff]
        %v492 = vld [vmem:[%s225 + $0x6a0] sm:$0xff]
        %v493 = vld [vmem:[%s225 + $0x6a8] sm:$0xff]
        %v494 = vld [vmem:[%s225 + $0x6b0] sm:$0xff]
        %v495 = vld [vmem:[%s225 + $0x6b8] sm:$0xff]
        %v496 = vld [vmem:[%s225 + $0x6c0] sm:$0xff]
        %v497 = vld [vmem:[%s225 + $0x6c8] sm:$0xff]
        %v498 = vld [vmem:[%s225 + $0x6d0] sm:$0xff]
        %v499 = vld [vmem:[%s225 + $0x6d8] sm:$0xff]
        %v500 = vld [vmem:[%s225 + $0x6e0] sm:$0xff]
        %v501 = vld [vmem:[%s225 + $0x6e8] sm:$0xff]
        %v502 = vld [vmem:[%s225 + $0x6f0] sm:$0xff]
        %v503 = vld [vmem:[%s225 + $0x6f8] sm:$0xff]
        %v504 = vld [vmem:[%s225 + $0x700] sm:$0xff]
        %v505 = vld [vmem:[%s225 + $0x708] sm:$0xff]
        %v506 = vld [vmem:[%s225 + $0x710] sm:$0xff]
        %v507 = vld [vmem:[%s225 + $0x718] sm:$0xff]
        %v508 = vld [vmem:[%s225 + $0x720] sm:$0xff]
        %v509 = vld [vmem:[%s225 + $0x728] sm:$0xff]
        %v510 = vld [vmem:[%s225 + $0x730] sm:$0xff]
        %v511 = vld [vmem:[%s225 + $0x738] sm:$0xff]
        %v512 = vld [vmem:[%s225 + $0x740] sm:$0xff]
        %v513 = vld [vmem:[%s225 + $0x748] sm:$0xff]
        %v514 = vld [vmem:[%s225 + $0x750] sm:$0xff]
        %v515 = vld [vmem:[%s225 + $0x758] sm:$0xff]
        %v516 = vld [vmem:[%s225 + $0x760] sm:$0xff]
        %v517 = vld [vmem:[%s225 + $0x768] sm:$0xff]
        %v518 = vld [vmem:[%s225 + $0x770] sm:$0xff]
        %v519 = vld [vmem:[%s225 + $0x778] sm:$0xff]
        %v520 = vld [vmem:[%s225 + $0x780] sm:$0xff]
        %v521 = vld [vmem:[%s225 + $0x788] sm:$0xff]
        %v522 = vld [vmem:[%s225 + $0x790] sm:$0xff]
        %v523 = vld [vmem:[%s225 + $0x798] sm:$0xff]
        %v524 = vld [vmem:[%s225 + $0x7a0] sm:$0xff]
        %v525 = vld [vmem:[%s225 + $0x7a8] sm:$0xff]
        %v526 = vld [vmem:[%s225 + $0x7b0] sm:$0xff]
        %v527 = vld [vmem:[%s225 + $0x7b8] sm:$0xff]
        %v528 = vld [vmem:[%s225 + $0x7c0] sm:$0xff]
        %v529 = vld [vmem:[%s225 + $0x7c8] sm:$0xff]
        %v530 = vld [vmem:[%s225 + $0x7d0] sm:$0xff]
        %v531 = vld [vmem:[%s225 + $0x7d8] sm:$0xff]
        %v532 = vld [vmem:[%s225 + $0x7e0] sm:$0xff]
        %v533 = vld [vmem:[%s225 + $0x7e8] sm:$0xff]
        %v534 = vld [vmem:[%s225 + $0x7f0] sm:$0xff]
        %v535 = vld [vmem:[%s225 + $0x7f8] sm:$0xff]
        %v536 = vld [vmem:[%s225 + $0x800] sm:$0xff]
        %v537 = vld [vmem:[%s225 + $0x808] sm:$0xff]
        %v538 = vld [vmem:[%s225 + $0x810] sm:$0xff]
        %v539 = vld [vmem:[%s225 + $0x818] sm:$0xff]
        %v540 = vld [vmem:[%s225 + $0x820] sm:$0xff]
        %v541 = vld [vmem:[%s225 + $0x828] sm:$0xff]
        %v542 = vld [vmem:[%s225 + $0x830] sm:$0xff]
        %v543 = vld [vmem:[%s225 + $0x838] sm:$0xff]
        %v544 = vld [vmem:[%s225 + $0x840] sm:$0xff]
        %v545 = vld [vmem:[%s225 + $0x848] sm:$0xff]
        %v546 = vld [vmem:[%s225 + $0x850] sm:$0xff]
        %v547 = vld [vmem:[%s225 + $0x858] sm:$0xff]
        %v548 = vld [vmem:[%s225 + $0x860] sm:$0xff]
        %v549 = vld [vmem:[%s225 + $0x868] sm:$0xff]
        %v550 = vld [vmem:[%s225 + $0x870] sm:$0xff]
        %v551 = vld [vmem:[%s225 + $0x878] sm:$0xff]
        %v552 = vld [vmem:[%s225 + $0x880] sm:$0xff]
        %v553 = vld [vmem:[%s225 + $0x888] sm:$0xff]
        %v554 = vld [vmem:[%s225 + $0x890] sm:$0xff]
        %v555 = vld [vmem:[%s225 + $0x898] sm:$0xff]
        %v556 = vld [vmem:[%s225 + $0x8a0] sm:$0xff]
        %v557 = vld [vmem:[%s225 + $0x8a8] sm:$0xff]
        %v558 = vld [vmem:[%s225 + $0x8b0] sm:$0xff]
        %v559 = vld [vmem:[%s225 + $0x8b8] sm:$0xff]
        %v560 = vld [vmem:[%s225 + $0x8c0] sm:$0xff]
        %v561 = vld [vmem:[%s225 + $0x8c8] sm:$0xff]
        %v562 = vld [vmem:[%s225 + $0x8d0] sm:$0xff]
        %v563 = vld [vmem:[%s225 + $0x8d8] sm:$0xff]
        %v564 = vld [vmem:[%s225 + $0x8e0] sm:$0xff]
        %v565 = vld [vmem:[%s225 + $0x8e8] sm:$0xff]
        %v566 = vld [vmem:[%s225 + $0x8f0] sm:$0xff]
        %v567 = vld [vmem:[%s225 + $0x8f8] sm:$0xff]
        %v568 = vld [vmem:[%s225 + $0x900] sm:$0xff]
        %v569 = vld [vmem:[%s225 + $0x908] sm:$0xff]
        %v570 = vld [vmem:[%s225 + $0x910] sm:$0xff]
        %v571 = vld [vmem:[%s225 + $0x918] sm:$0xff]
        %v572 = vld [vmem:[%s225 + $0x920] sm:$0xff]
        %v573 = vld [vmem:[%s225 + $0x928] sm:$0xff]
        %v574 = vld [vmem:[%s225 + $0x930] sm:$0xff]
        %v575 = vld [vmem:[%s225 + $0x938] sm:$0xff]
        %v576 = vld [vmem:[%s225 + $0x940] sm:$0xff]
        %v577 = vld [vmem:[%s225 + $0x948] sm:$0xff]
        %v578 = vld [vmem:[%s225 + $0x950] sm:$0xff]
        %v579 = vld [vmem:[%s225 + $0x958] sm:$0xff]
        %v580 = vld [vmem:[%s225 + $0x960] sm:$0xff]
        %v581 = vld [vmem:[%s225 + $0x968] sm:$0xff]
        %v582 = vld [vmem:[%s225 + $0x970] sm:$0xff]
        %v583 = vld [vmem:[%s225 + $0x978] sm:$0xff]
        %v584 = vld [vmem:[%s225 + $0x980] sm:$0xff]
        %v585 = vld [vmem:[%s225 + $0x988] sm:$0xff]
        %v586 = vld [vmem:[%s225 + $0x990] sm:$0xff]
        %v587 = vld [vmem:[%s225 + $0x998] sm:$0xff]
        %v588 = vld [vmem:[%s225 + $0x9a0] sm:$0xff]
        %v589 = vld [vmem:[%s225 + $0x9a8] sm:$0xff]
        %v590 = vld [vmem:[%s225 + $0x9b0] sm:$0xff]
        %v591 = vld [vmem:[%s225 + $0x9b8] sm:$0xff]
        %v592 = vld [vmem:[%s225 + $0x9c0] sm:$0xff]
        %v593 = vld [vmem:[%s225 + $0x9c8] sm:$0xff]
        %v594 = vld [vmem:[%s225 + $0x9d0] sm:$0xff]
        %v595 = vld [vmem:[%s225 + $0x9d8] sm:$0xff]
        %v596 = vld [vmem:[%s225 + $0x9e0] sm:$0xff]
        %v597 = vld [vmem:[%s225 + $0x9e8] sm:$0xff]
        %v598 = vld [vmem:[%s225 + $0x9f0] sm:$0xff]
        %v599 = vld [vmem:[%s225 + $0x9f8] sm:$0xff]
        %v600 = vld [vmem:[%s225 + $0xa00] sm:$0xff]
        %v601 = vld [vmem:[%s225 + $0xa08] sm:$0xff]
        %v602 = vld [vmem:[%s225 + $0xa10] sm:$0xff]
        %v603 = vld [vmem:[%s225 + $0xa18] sm:$0xff]
        %v604 = vld [vmem:[%s225 + $0xa20] sm:$0xff]
        %v605 = vld [vmem:[%s225 + $0xa28] sm:$0xff]
        %v606 = vld [vmem:[%s225 + $0xa30] sm:$0xff]
        %v607 = vld [vmem:[%s225 + $0xa38] sm:$0xff]
        %v608 = vld [vmem:[%s225 + $0xa40] sm:$0xff]
        %v609 = vld [vmem:[%s225 + $0xa48] sm:$0xff]
        %v610 = vld [vmem:[%s225 + $0xa50] sm:$0xff]
        %v611 = vld [vmem:[%s225 + $0xa58] sm:$0xff]
        %v612 = vld [vmem:[%s225 + $0xa60] sm:$0xff]
        %v613 = vld [vmem:[%s225 + $0xa68] sm:$0xff]
        %v614 = vld [vmem:[%s225 + $0xa70] sm:$0xff]
        %v615 = vld [vmem:[%s225 + $0xa78] sm:$0xff]
        %v616 = vld [vmem:[%s225 + $0xa80] sm:$0xff]
        %v617 = vld [vmem:[%s225 + $0xa88] sm:$0xff]
        %v618 = vld [vmem:[%s225 + $0xa90] sm:$0xff]
        %v619 = vld [vmem:[%s225 + $0xa98] sm:$0xff]
        %v620 = vld [vmem:[%s225 + $0xaa0] sm:$0xff]
        %v621 = vld [vmem:[%s225 + $0xaa8] sm:$0xff]
        %v622 = vld [vmem:[%s225 + $0xab0] sm:$0xff]
        %v623 = vld [vmem:[%s225 + $0xab8] sm:$0xff]
        %v624 = vld [vmem:[%s225 + $0xac0] sm:$0xff]
        %v625 = vld [vmem:[%s225 + $0xac8] sm:$0xff]
        %v626 = vld [vmem:[%s225 + $0xad0] sm:$0xff]
        %v627 = vld [vmem:[%s225 + $0xad8] sm:$0xff]
        %v628 = vld [vmem:[%s225 + $0xae0] sm:$0xff]
        %v629 = vld [vmem:[%s225 + $0xae8] sm:$0xff]
        %v630 = vld [vmem:[%s225 + $0xaf0] sm:$0xff]
        %v631 = vld [vmem:[%s225 + $0xaf8] sm:$0xff]
        %v632 = vld [vmem:[%s225 + $0xb00] sm:$0xff]
        %v633 = vld [vmem:[%s225 + $0xb08] sm:$0xff]
        %v634 = vld [vmem:[%s225 + $0xb10] sm:$0xff]
        %v635 = vld [vmem:[%s225 + $0xb18] sm:$0xff]
        %v636 = vld [vmem:[%s225 + $0xb20] sm:$0xff]
        %v637 = vld [vmem:[%s225 + $0xb28] sm:$0xff]
        %v638 = vld [vmem:[%s225 + $0xb30] sm:$0xff]
        %v639 = vld [vmem:[%s225 + $0xb38] sm:$0xff]
        %v640 = vld [vmem:[%s225 + $0xb40] sm:$0xff]
        %v641 = vld [vmem:[%s225 + $0xb48] sm:$0xff]
        %v642 = vld [vmem:[%s225 + $0xb50] sm:$0xff]
        %v643 = vld [vmem:[%s225 + $0xb58] sm:$0xff]
        %v644 = vld [vmem:[%s225 + $0xb60] sm:$0xff]
        %v645 = vld [vmem:[%s225 + $0xb68] sm:$0xff]
        %v646 = vld [vmem:[%s225 + $0xb70] sm:$0xff]
        %v647 = vld [vmem:[%s225 + $0xb78] sm:$0xff]
        %v648 = vld [vmem:[%s225 + $0xb80] sm:$0xff]
        %v649 = vld [vmem:[%s225 + $0xb88] sm:$0xff]
        %v650 = vld [vmem:[%s225 + $0xb90] sm:$0xff]
        %v651 = vld [vmem:[%s225 + $0xb98] sm:$0xff]
        %v652 = vld [vmem:[%s225 + $0xba0] sm:$0xff]
        %v653 = vld [vmem:[%s225 + $0xba8] sm:$0xff]
        %v654 = vld [vmem:[%s225 + $0xbb0] sm:$0xff]
        %v655 = vld [vmem:[%s225 + $0xbb8] sm:$0xff]
        %v656 = vld [vmem:[%s225 + $0xbc0] sm:$0xff]
        %v657 = vld [vmem:[%s225 + $0xbc8] sm:$0xff]
        %v658 = vld [vmem:[%s225 + $0xbd0] sm:$0xff]
        %v659 = vld [vmem:[%s225 + $0xbd8] sm:$0xff]
        %v660 = vld [vmem:[%s225 + $0xbe0] sm:$0xff]
        %v661 = vld [vmem:[%s225 + $0xbe8] sm:$0xff]
        %v662 = vld [vmem:[%s225 + $0xbf0] sm:$0xff]
        %v663 = vld [vmem:[%s225 + $0xbf8] sm:$0xff]
        %v664 = vld [vmem:[%s225 + $0xc00] sm:$0xff]
        %v665 = vld [vmem:[%s225 + $0xc08] sm:$0xff]
        %v666 = vld [vmem:[%s225 + $0xc10] sm:$0xff]
        %v667 = vld [vmem:[%s225 + $0xc18] sm:$0xff]
        %v668 = vld [vmem:[%s225 + $0xc20] sm:$0xff]
        %v669 = vld [vmem:[%s225 + $0xc28] sm:$0xff]
        %v670 = vld [vmem:[%s225 + $0xc30] sm:$0xff]
        %v671 = vld [vmem:[%s225 + $0xc38] sm:$0xff]
        %v672 = vld [vmem:[%s225 + $0xc40] sm:$0xff]
        %v673 = vld [vmem:[%s225 + $0xc48] sm:$0xff]
        %v674 = vld [vmem:[%s225 + $0xc50] sm:$0xff]
        %v675 = vld [vmem:[%s225 + $0xc58] sm:$0xff]
        %v676 = vld [vmem:[%s225 + $0xc60] sm:$0xff]
        %v677 = vld [vmem:[%s225 + $0xc68] sm:$0xff]
        %v678 = vld [vmem:[%s225 + $0xc70] sm:$0xff]
        %v679 = vld [vmem:[%s225 + $0xc78] sm:$0xff]
        %v680 = vld [vmem:[%s225 + $0xc80] sm:$0xff]
        %v681 = vld [vmem:[%s225 + $0xc88] sm:$0xff]
        %v682 = vld [vmem:[%s225 + $0xc90] sm:$0xff]
        %v683 = vld [vmem:[%s225 + $0xc98] sm:$0xff]
        %v684 = vld [vmem:[%s225 + $0xca0] sm:$0xff]
        %v685 = vld [vmem:[%s225 + $0xca8] sm:$0xff]
        %v686 = vld [vmem:[%s225 + $0xcb0] sm:$0xff]
        %v687 = vld [vmem:[%s225 + $0xcb8] sm:$0xff]
        %v688 = vld [vmem:[%s225 + $0xcc0] sm:$0xff]
        %v689 = vld [vmem:[%s225 + $0xcc8] sm:$0xff]
        %v690 = vld [vmem:[%s225 + $0xcd0] sm:$0xff]
        %v691 = vld [vmem:[%s225 + $0xcd8] sm:$0xff]
        %v692 = vld [vmem:[%s225 + $0xce0] sm:$0xff]
        %v693 = vld [vmem:[%s225 + $0xce8] sm:$0xff]
        %v694 = vld [vmem:[%s225 + $0xcf0] sm:$0xff]
        %v695 = vld [vmem:[%s225 + $0xcf8] sm:$0xff]
        %v696 = vld [vmem:[%s225 + $0xd00] sm:$0xff]
        %v697 = vld [vmem:[%s225 + $0xd08] sm:$0xff]
        %v698 = vld [vmem:[%s225 + $0xd10] sm:$0xff]
        %v699 = vld [vmem:[%s225 + $0xd18] sm:$0xff]
        %v700 = vld [vmem:[%s225 + $0xd20] sm:$0xff]
        %v701 = vld [vmem:[%s225 + $0xd28] sm:$0xff]
        %v702 = vld [vmem:[%s225 + $0xd30] sm:$0xff]
        %v703 = vld [vmem:[%s225 + $0xd38] sm:$0xff]
        %v704 = vld [vmem:[%s225 + $0xd40] sm:$0xff]
        %v705 = vld [vmem:[%s225 + $0xd48] sm:$0xff]
        %v706 = vld [vmem:[%s225 + $0xd50] sm:$0xff]
        %v707 = vld [vmem:[%s225 + $0xd58] sm:$0xff]
        %v708 = vld [vmem:[%s225 + $0xd60] sm:$0xff]
        %v709 = vld [vmem:[%s225 + $0xd68] sm:$0xff]
        %v710 = vld [vmem:[%s225 + $0xd70] sm:$0xff]
        %v711 = vld [vmem:[%s225 + $0xd78] sm:$0xff]
        %v712 = vld [vmem:[%s225 + $0xd80] sm:$0xff]
        %v713 = vld [vmem:[%s225 + $0xd88] sm:$0xff]
        %v714 = vld [vmem:[%s225 + $0xd90] sm:$0xff]
        %v715 = vld [vmem:[%s225 + $0xd98] sm:$0xff]
        %v716 = vld [vmem:[%s225 + $0xda0] sm:$0xff]
        %v717 = vld [vmem:[%s225 + $0xda8] sm:$0xff]
        %v718 = vld [vmem:[%s225 + $0xdb0] sm:$0xff]
        %v719 = vld [vmem:[%s225 + $0xdb8] sm:$0xff]
        %v720 = vld [vmem:[%s225 + $0xdc0] sm:$0xff]
        %v721 = vld [vmem:[%s225 + $0xdc8] sm:$0xff]
        %v722 = vld [vmem:[%s225 + $0xdd0] sm:$0xff]
        %v723 = vld [vmem:[%s225 + $0xdd8] sm:$0xff]
        %v724 = vld [vmem:[%s225 + $0xde0] sm:$0xff]
        %v725 = vld [vmem:[%s225 + $0xde8] sm:$0xff]
        %v726 = vld [vmem:[%s225 + $0xdf0] sm:$0xff]
        %v727 = vld [vmem:[%s225 + $0xdf8] sm:$0xff]
        %v728 = vld [vmem:[%s225 + $0xe00] sm:$0xff]
        %v729 = vld [vmem:[%s225 + $0xe08] sm:$0xff]
        %v730 = vld [vmem:[%s225 + $0xe10] sm:$0xff]
        %v731 = vld [vmem:[%s225 + $0xe18] sm:$0xff]
        %v732 = vld [vmem:[%s225 + $0xe20] sm:$0xff]
        %v733 = vld [vmem:[%s225 + $0xe28] sm:$0xff]
        %v734 = vld [vmem:[%s225 + $0xe30] sm:$0xff]
        %v735 = vld [vmem:[%s225 + $0xe38] sm:$0xff]
        %v736 = vld [vmem:[%s225 + $0xe40] sm:$0xff]
        %v737 = vld [vmem:[%s225 + $0xe48] sm:$0xff]
        %v738 = vld [vmem:[%s225 + $0xe50] sm:$0xff]
        %v739 = vld [vmem:[%s225 + $0xe58] sm:$0xff]
        %v740 = vld [vmem:[%s225 + $0xe60] sm:$0xff]
        %v741 = vld [vmem:[%s225 + $0xe68] sm:$0xff]
        %v742 = vld [vmem:[%s225 + $0xe70] sm:$0xff]
        %v743 = vld [vmem:[%s225 + $0xe78] sm:$0xff]
        %v744 = vld [vmem:[%s225 + $0xe80] sm:$0xff]
        %v745 = vld [vmem:[%s225 + $0xe88] sm:$0xff]
        %v746 = vld [vmem:[%s225 + $0xe90] sm:$0xff]
        %v747 = vld [vmem:[%s225 + $0xe98] sm:$0xff]
        %v748 = vld [vmem:[%s225 + $0xea0] sm:$0xff]
        %v749 = vld [vmem:[%s225 + $0xea8] sm:$0xff]
        %v750 = vld [vmem:[%s225 + $0xeb0] sm:$0xff]
        %v751 = vld [vmem:[%s225 + $0xeb8] sm:$0xff]
        %v752 = vld [vmem:[%s225 + $0xec0] sm:$0xff]
        %v753 = vld [vmem:[%s225 + $0xec8] sm:$0xff]
        %v754 = vld [vmem:[%s225 + $0xed0] sm:$0xff]
        %v755 = vld [vmem:[%s225 + $0xed8] sm:$0xff]
        %v756 = vld [vmem:[%s225 + $0xee0] sm:$0xff]
        %v757 = vld [vmem:[%s225 + $0xee8] sm:$0xff]
        %v758 = vld [vmem:[%s225 + $0xef0] sm:$0xff]
        %v759 = vld [vmem:[%s225 + $0xef8] sm:$0xff]
        %v760 = vld [vmem:[%s225 + $0xf00] sm:$0xff]
        %v761 = vld [vmem:[%s225 + $0xf08] sm:$0xff]
        %v762 = vld [vmem:[%s225 + $0xf10] sm:$0xff]
        %v763 = vld [vmem:[%s225 + $0xf18] sm:$0xff]
        %v764 = vld [vmem:[%s225 + $0xf20] sm:$0xff]
        %v765 = vld [vmem:[%s225 + $0xf28] sm:$0xff]
        %v766 = vld [vmem:[%s225 + $0xf30] sm:$0xff]
        %v767 = vld [vmem:[%s225 + $0xf38] sm:$0xff]
        %v768 = vld [vmem:[%s225 + $0xf40] sm:$0xff]
        %v769 = vld [vmem:[%s225 + $0xf48] sm:$0xff]
        %v770 = vld [vmem:[%s225 + $0xf50] sm:$0xff]
        %v771 = vld [vmem:[%s225 + $0xf58] sm:$0xff]
        %v772 = vld [vmem:[%s225 + $0xf60] sm:$0xff]
        %v773 = vld [vmem:[%s225 + $0xf68] sm:$0xff]
        %v774 = vld [vmem:[%s225 + $0xf70] sm:$0xff]
        %v775 = vld [vmem:[%s225 + $0xf78] sm:$0xff]
        %v776 = vld [vmem:[%s225 + $0xf80] sm:$0xff]
        %v777 = vld [vmem:[%s225 + $0xf88] sm:$0xff]
        %v778 = vld [vmem:[%s225 + $0xf90] sm:$0xff]
        %v779 = vld [vmem:[%s225 + $0xf98] sm:$0xff]
        %v780 = vld [vmem:[%s225 + $0xfa0] sm:$0xff]
        %v781 = vld [vmem:[%s225 + $0xfa8] sm:$0xff]
        %v782 = vld [vmem:[%s225 + $0xfb0] sm:$0xff]
        %v783 = vld [vmem:[%s225 + $0xfb8] sm:$0xff]
        %v784 = vld [vmem:[%s225 + $0xfc0] sm:$0xff]
        %v785 = vld [vmem:[%s225 + $0xfc8] sm:$0xff]
        %v786 = vld [vmem:[%s225 + $0xfd0] sm:$0xff]
        %v787 = vld [vmem:[%s225 + $0xfd8] sm:$0xff]
        %v788 = vld [vmem:[%s225 + $0xfe0] sm:$0xff]
        %v789 = vld [vmem:[%s225 + $0xfe8] sm:$0xff]
        %v790 = vld [vmem:[%s225 + $0xff0] sm:$0xff]
        %v791 = vld [vmem:[%s225 + $0xff8] sm:$0xff]
        %v794 = vunpack.c.l.s4 1966171168
        %v795 = vunpack.c.0.s8 %v794
        %v796 = vlaneseq
        %v797 = vshrl.u32 %v796, 7
        %v798 = vsub.s32 %v795, %v797
        %v799 = vrot.slane %v279, %v798
        %v800 = vcombine.high %v799, %v799
        %v802 = vunpack.c.l.s4 1966171168
        %v803 = vunpack.c.0.s8 %v802
        %v804 = vlaneseq
        %v805 = vshrl.u32 %v804, 7
        %v806 = vsub.s32 %v803, %v805
        %v807 = vrot.slane %v799, %v806
        %v809 = vunpack.c.l.s4 1966171168
        %v810 = vunpack.c.0.s8 %v809
        %v811 = vlaneseq
        %v812 = vshrl.u32 %v811, 7
        %v813 = vsub.s32 %v810, %v812
        %v814 = vrot.slane %v800, %v813
        %v815 = vcombine.high %v807, %v807
        %v816 = vcombine.high %v814, %v814
        %v1333 = vunpack.c.l.b16 %v280
        %v1334 = vunpack.c.h.b16 %v280
        %v1335 = vunpack.c.l.b16 %v281
        %v1336 = vunpack.c.h.b16 %v281
        %v1337 = vunpack.c.l.b16 %v282
        %v1338 = vunpack.c.h.b16 %v282
        %v1339 = vunpack.c.l.b16 %v283
        %v1340 = vunpack.c.h.b16 %v283
        %v1341 = vunpack.c.l.b16 %v284
        %v1342 = vunpack.c.h.b16 %v284
        %v1343 = vunpack.c.l.b16 %v285
        %v1344 = vunpack.c.h.b16 %v285
        %v1345 = vunpack.c.l.b16 %v286
        %v1346 = vunpack.c.h.b16 %v286
        %v1347 = vunpack.c.l.b16 %v287
        %v1348 = vunpack.c.h.b16 %v287
        %v1349 = vunpack.c.l.b16 %v288
        %v1350 = vunpack.c.h.b16 %v288
        %v1351 = vunpack.c.l.b16 %v289
        %v1352 = vunpack.c.h.b16 %v289
        %v1353 = vunpack.c.l.b16 %v290
        %v1354 = vunpack.c.h.b16 %v290
        %v1355 = vunpack.c.l.b16 %v291
        %v1356 = vunpack.c.h.b16 %v291
        %v1357 = vunpack.c.l.b16 %v292
        %v1358 = vunpack.c.h.b16 %v292
        %v1359 = vunpack.c.l.b16 %v293
        %v1360 = vunpack.c.h.b16 %v293
        %v1361 = vunpack.c.l.b16 %v294
        %v1362 = vunpack.c.h.b16 %v294
        %v1363 = vunpack.c.l.b16 %v295
        %v1364 = vunpack.c.h.b16 %v295
        %v1365 = vunpack.c.l.b16 %v296
        %v1366 = vunpack.c.h.b16 %v296
        %v1367 = vunpack.c.l.b16 %v297
        %v1368 = vunpack.c.h.b16 %v297
        %v1369 = vunpack.c.l.b16 %v298
        %v1370 = vunpack.c.h.b16 %v298
        %v1371 = vunpack.c.l.b16 %v299
        %v1372 = vunpack.c.h.b16 %v299
        %v1373 = vunpack.c.l.b16 %v300
        %v1374 = vunpack.c.h.b16 %v300
        %v1375 = vunpack.c.l.b16 %v301
        %v1376 = vunpack.c.h.b16 %v301
        %v1377 = vunpack.c.l.b16 %v302
        %v1378 = vunpack.c.h.b16 %v302
        %v1379 = vunpack.c.l.b16 %v303
        %v1380 = vunpack.c.h.b16 %v303
        %v1381 = vunpack.c.l.b16 %v304
        %v1382 = vunpack.c.h.b16 %v304
        %v1383 = vunpack.c.l.b16 %v305
        %v1384 = vunpack.c.h.b16 %v305
        %v1385 = vunpack.c.l.b16 %v306
        %v1386 = vunpack.c.h.b16 %v306
        %v1387 = vunpack.c.l.b16 %v307
        %v1388 = vunpack.c.h.b16 %v307
        %v1389 = vunpack.c.l.b16 %v308
        %v1390 = vunpack.c.h.b16 %v308
        %v1391 = vunpack.c.l.b16 %v309
        %v1392 = vunpack.c.h.b16 %v309
        %v1393 = vunpack.c.l.b16 %v310
        %v1394 = vunpack.c.h.b16 %v310
        %v1395 = vunpack.c.l.b16 %v311
        %v1396 = vunpack.c.h.b16 %v311
        %v1397 = vunpack.c.l.b16 %v312
        %v1398 = vunpack.c.h.b16 %v312
        %v1399 = vunpack.c.l.b16 %v313
        %v1400 = vunpack.c.h.b16 %v313
        %v1401 = vunpack.c.l.b16 %v314
        %v1402 = vunpack.c.h.b16 %v314
        %v1403 = vunpack.c.l.b16 %v315
        %v1404 = vunpack.c.h.b16 %v315
        %v1405 = vunpack.c.l.b16 %v316
        %v1406 = vunpack.c.h.b16 %v316
        %v1407 = vunpack.c.l.b16 %v317
        %v1408 = vunpack.c.h.b16 %v317
        %v1409 = vunpack.c.l.b16 %v318
        %v1410 = vunpack.c.h.b16 %v318
        %v1411 = vunpack.c.l.b16 %v319
        %v1412 = vunpack.c.h.b16 %v319
        %v1413 = vunpack.c.l.b16 %v320
        %v1414 = vunpack.c.h.b16 %v320
        %v1415 = vunpack.c.l.b16 %v321
        %v1416 = vunpack.c.h.b16 %v321
        %v1417 = vunpack.c.l.b16 %v322
        %v1418 = vunpack.c.h.b16 %v322
        %v1419 = vunpack.c.l.b16 %v323
        %v1420 = vunpack.c.h.b16 %v323
        %v1421 = vunpack.c.l.b16 %v324
        %v1422 = vunpack.c.h.b16 %v324
        %v1423 = vunpack.c.l.b16 %v325
        %v1424 = vunpack.c.h.b16 %v325
        %v1425 = vunpack.c.l.b16 %v326
        %v1426 = vunpack.c.h.b16 %v326
        %v1427 = vunpack.c.l.b16 %v327
        %v1428 = vunpack.c.h.b16 %v327
        %v1429 = vunpack.c.l.b16 %v328
        %v1430 = vunpack.c.h.b16 %v328
        %v1431 = vunpack.c.l.b16 %v329
        %v1432 = vunpack.c.h.b16 %v329
        %v1433 = vunpack.c.l.b16 %v330
        %v1434 = vunpack.c.h.b16 %v330
        %v1435 = vunpack.c.l.b16 %v331
        %v1436 = vunpack.c.h.b16 %v331
        %v1437 = vunpack.c.l.b16 %v332
        %v1438 = vunpack.c.h.b16 %v332
        %v1439 = vunpack.c.l.b16 %v333
        %v1440 = vunpack.c.h.b16 %v333
        %v1441 = vunpack.c.l.b16 %v334
        %v1442 = vunpack.c.h.b16 %v334
        %v1443 = vunpack.c.l.b16 %v335
        %v1444 = vunpack.c.h.b16 %v335
        %v1445 = vunpack.c.l.b16 %v336
        %v1446 = vunpack.c.h.b16 %v336
        %v1447 = vunpack.c.l.b16 %v337
        %v1448 = vunpack.c.h.b16 %v337
        %v1449 = vunpack.c.l.b16 %v338
        %v1450 = vunpack.c.h.b16 %v338
        %v1451 = vunpack.c.l.b16 %v339
        %v1452 = vunpack.c.h.b16 %v339
        %v1453 = vunpack.c.l.b16 %v340
        %v1454 = vunpack.c.h.b16 %v340
        %v1455 = vunpack.c.l.b16 %v341
        %v1456 = vunpack.c.h.b16 %v341
        %v1457 = vunpack.c.l.b16 %v342
        %v1458 = vunpack.c.h.b16 %v342
        %v1459 = vunpack.c.l.b16 %v343
        %v1460 = vunpack.c.h.b16 %v343
        %v1461 = vunpack.c.l.b16 %v344
        %v1462 = vunpack.c.h.b16 %v344
        %v1463 = vunpack.c.l.b16 %v345
        %v1464 = vunpack.c.h.b16 %v345
        %v1465 = vunpack.c.l.b16 %v346
        %v1466 = vunpack.c.h.b16 %v346
        %v1467 = vunpack.c.l.b16 %v347
        %v1468 = vunpack.c.h.b16 %v347
        %v1469 = vunpack.c.l.b16 %v348
        %v1470 = vunpack.c.h.b16 %v348
        %v1471 = vunpack.c.l.b16 %v349
        %v1472 = vunpack.c.h.b16 %v349
        %v1473 = vunpack.c.l.b16 %v350
        %v1474 = vunpack.c.h.b16 %v350
        %v1475 = vunpack.c.l.b16 %v351
        %v1476 = vunpack.c.h.b16 %v351
        %v1477 = vunpack.c.l.b16 %v352
        %v1478 = vunpack.c.h.b16 %v352
        %v1479 = vunpack.c.l.b16 %v353
        %v1480 = vunpack.c.h.b16 %v353
        %v1481 = vunpack.c.l.b16 %v354
        %v1482 = vunpack.c.h.b16 %v354
        %v1483 = vunpack.c.l.b16 %v355
        %v1484 = vunpack.c.h.b16 %v355
        %v1485 = vunpack.c.l.b16 %v356
        %v1486 = vunpack.c.h.b16 %v356
        %v1487 = vunpack.c.l.b16 %v357
        %v1488 = vunpack.c.h.b16 %v357
        %v1489 = vunpack.c.l.b16 %v358
        %v1490 = vunpack.c.h.b16 %v358
        %v1491 = vunpack.c.l.b16 %v359
        %v1492 = vunpack.c.h.b16 %v359
        %v1493 = vunpack.c.l.b16 %v360
        %v1494 = vunpack.c.h.b16 %v360
        %v1495 = vunpack.c.l.b16 %v361
        %v1496 = vunpack.c.h.b16 %v361
        %v1497 = vunpack.c.l.b16 %v362
        %v1498 = vunpack.c.h.b16 %v362
        %v1499 = vunpack.c.l.b16 %v363
        %v1500 = vunpack.c.h.b16 %v363
        %v1501 = vunpack.c.l.b16 %v364
        %v1502 = vunpack.c.h.b16 %v364
        %v1503 = vunpack.c.l.b16 %v365
        %v1504 = vunpack.c.h.b16 %v365
        %v1505 = vunpack.c.l.b16 %v366
        %v1506 = vunpack.c.h.b16 %v366
        %v1507 = vunpack.c.l.b16 %v367
        %v1508 = vunpack.c.h.b16 %v367
        %v1509 = vunpack.c.l.b16 %v368
        %v1510 = vunpack.c.h.b16 %v368
        %v1511 = vunpack.c.l.b16 %v369
        %v1512 = vunpack.c.h.b16 %v369
        %v1513 = vunpack.c.l.b16 %v370
        %v1514 = vunpack.c.h.b16 %v370
        %v1515 = vunpack.c.l.b16 %v371
        %v1516 = vunpack.c.h.b16 %v371
        %v1517 = vunpack.c.l.b16 %v372
        %v1518 = vunpack.c.h.b16 %v372
        %v1519 = vunpack.c.l.b16 %v373
        %v1520 = vunpack.c.h.b16 %v373
        %v1521 = vunpack.c.l.b16 %v374
        %v1522 = vunpack.c.h.b16 %v374
        %v1523 = vunpack.c.l.b16 %v375
        %v1524 = vunpack.c.h.b16 %v375
        %v1525 = vunpack.c.l.b16 %v376
        %v1526 = vunpack.c.h.b16 %v376
        %v1527 = vunpack.c.l.b16 %v377
        %v1528 = vunpack.c.h.b16 %v377
        %v1529 = vunpack.c.l.b16 %v378
        %v1530 = vunpack.c.h.b16 %v378
        %v1531 = vunpack.c.l.b16 %v379
        %v1532 = vunpack.c.h.b16 %v379
        %v1533 = vunpack.c.l.b16 %v380
        %v1534 = vunpack.c.h.b16 %v380
        %v1535 = vunpack.c.l.b16 %v381
        %v1536 = vunpack.c.h.b16 %v381
        %v1537 = vunpack.c.l.b16 %v382
        %v1538 = vunpack.c.h.b16 %v382
        %v1539 = vunpack.c.l.b16 %v383
        %v1540 = vunpack.c.h.b16 %v383
        %v1541 = vunpack.c.l.b16 %v384
        %v1542 = vunpack.c.h.b16 %v384
        %v1543 = vunpack.c.l.b16 %v385
        %v1544 = vunpack.c.h.b16 %v385
        %v1545 = vunpack.c.l.b16 %v386
        %v1546 = vunpack.c.h.b16 %v386
        %v1547 = vunpack.c.l.b16 %v387
        %v1548 = vunpack.c.h.b16 %v387
        %v1549 = vunpack.c.l.b16 %v388
        %v1550 = vunpack.c.h.b16 %v388
        %v1551 = vunpack.c.l.b16 %v389
        %v1552 = vunpack.c.h.b16 %v389
        %v1553 = vunpack.c.l.b16 %v390
        %v1554 = vunpack.c.h.b16 %v390
        %v1555 = vunpack.c.l.b16 %v391
        %v1556 = vunpack.c.h.b16 %v391
        %v1557 = vunpack.c.l.b16 %v392
        %v1558 = vunpack.c.h.b16 %v392
        %v1559 = vunpack.c.l.b16 %v393
        %v1560 = vunpack.c.h.b16 %v393
        %v1561 = vunpack.c.l.b16 %v394
        %v1562 = vunpack.c.h.b16 %v394
        %v1563 = vunpack.c.l.b16 %v395
        %v1564 = vunpack.c.h.b16 %v395
        %v1565 = vunpack.c.l.b16 %v396
        %v1566 = vunpack.c.h.b16 %v396
        %v1567 = vunpack.c.l.b16 %v397
        %v1568 = vunpack.c.h.b16 %v397
        %v1569 = vunpack.c.l.b16 %v398
        %v1570 = vunpack.c.h.b16 %v398
        %v1571 = vunpack.c.l.b16 %v399
        %v1572 = vunpack.c.h.b16 %v399
        %v1573 = vunpack.c.l.b16 %v400
        %v1574 = vunpack.c.h.b16 %v400
        %v1575 = vunpack.c.l.b16 %v401
        %v1576 = vunpack.c.h.b16 %v401
        %v1577 = vunpack.c.l.b16 %v402
        %v1578 = vunpack.c.h.b16 %v402
        %v1579 = vunpack.c.l.b16 %v403
        %v1580 = vunpack.c.h.b16 %v403
        %v1581 = vunpack.c.l.b16 %v404
        %v1582 = vunpack.c.h.b16 %v404
        %v1583 = vunpack.c.l.b16 %v405
        %v1584 = vunpack.c.h.b16 %v405
        %v1585 = vunpack.c.l.b16 %v406
        %v1586 = vunpack.c.h.b16 %v406
        %v1587 = vunpack.c.l.b16 %v407
        %v1588 = vunpack.c.h.b16 %v407
        %v1589 = vunpack.c.l.b16 %v408
        %v1590 = vunpack.c.h.b16 %v408
        %v1591 = vunpack.c.l.b16 %v409
        %v1592 = vunpack.c.h.b16 %v409
        %v1593 = vunpack.c.l.b16 %v410
        %v1594 = vunpack.c.h.b16 %v410
        %v1595 = vunpack.c.l.b16 %v411
        %v1596 = vunpack.c.h.b16 %v411
        %v1597 = vunpack.c.l.b16 %v412
        %v1598 = vunpack.c.h.b16 %v412
        %v1599 = vunpack.c.l.b16 %v413
        %v1600 = vunpack.c.h.b16 %v413
        %v1601 = vunpack.c.l.b16 %v414
        %v1602 = vunpack.c.h.b16 %v414
        %v1603 = vunpack.c.l.b16 %v415
        %v1604 = vunpack.c.h.b16 %v415
        %v1605 = vunpack.c.l.b16 %v416
        %v1606 = vunpack.c.h.b16 %v416
        %v1607 = vunpack.c.l.b16 %v417
        %v1608 = vunpack.c.h.b16 %v417
        %v1609 = vunpack.c.l.b16 %v418
        %v1610 = vunpack.c.h.b16 %v418
        %v1611 = vunpack.c.l.b16 %v419
        %v1612 = vunpack.c.h.b16 %v419
        %v1613 = vunpack.c.l.b16 %v420
        %v1614 = vunpack.c.h.b16 %v420
        %v1615 = vunpack.c.l.b16 %v421
        %v1616 = vunpack.c.h.b16 %v421
        %v1617 = vunpack.c.l.b16 %v422
        %v1618 = vunpack.c.h.b16 %v422
        %v1619 = vunpack.c.l.b16 %v423
        %v1620 = vunpack.c.h.b16 %v423
        %v1621 = vunpack.c.l.b16 %v424
        %v1622 = vunpack.c.h.b16 %v424
        %v1623 = vunpack.c.l.b16 %v425
        %v1624 = vunpack.c.h.b16 %v425
        %v1625 = vunpack.c.l.b16 %v426
        %v1626 = vunpack.c.h.b16 %v426
        %v1627 = vunpack.c.l.b16 %v427
        %v1628 = vunpack.c.h.b16 %v427
        %v1629 = vunpack.c.l.b16 %v428
        %v1630 = vunpack.c.h.b16 %v428
        %v1631 = vunpack.c.l.b16 %v429
        %v1632 = vunpack.c.h.b16 %v429
        %v1633 = vunpack.c.l.b16 %v430
        %v1634 = vunpack.c.h.b16 %v430
        %v1635 = vunpack.c.l.b16 %v431
        %v1636 = vunpack.c.h.b16 %v431
        %v1637 = vunpack.c.l.b16 %v432
        %v1638 = vunpack.c.h.b16 %v432
        %v1639 = vunpack.c.l.b16 %v433
        %v1640 = vunpack.c.h.b16 %v433
        %v1641 = vunpack.c.l.b16 %v434
        %v1642 = vunpack.c.h.b16 %v434
        %v1643 = vunpack.c.l.b16 %v435
        %v1644 = vunpack.c.h.b16 %v435
        %v1645 = vunpack.c.l.b16 %v436
        %v1646 = vunpack.c.h.b16 %v436
        %v1647 = vunpack.c.l.b16 %v437
        %v1648 = vunpack.c.h.b16 %v437
        %v1649 = vunpack.c.l.b16 %v438
        %v1650 = vunpack.c.h.b16 %v438
        %v1651 = vunpack.c.l.b16 %v439
        %v1652 = vunpack.c.h.b16 %v439
        %v1653 = vunpack.c.l.b16 %v440
        %v1654 = vunpack.c.h.b16 %v440
        %v1655 = vunpack.c.l.b16 %v441
        %v1656 = vunpack.c.h.b16 %v441
        %v1657 = vunpack.c.l.b16 %v442
        %v1658 = vunpack.c.h.b16 %v442
        %v1659 = vunpack.c.l.b16 %v443
        %v1660 = vunpack.c.h.b16 %v443
        %v1661 = vunpack.c.l.b16 %v444
        %v1662 = vunpack.c.h.b16 %v444
        %v1663 = vunpack.c.l.b16 %v445
        %v1664 = vunpack.c.h.b16 %v445
        %v1665 = vunpack.c.l.b16 %v446
        %v1666 = vunpack.c.h.b16 %v446
        %v1667 = vunpack.c.l.b16 %v447
        %v1668 = vunpack.c.h.b16 %v447
        %v1669 = vunpack.c.l.b16 %v448
        %v1670 = vunpack.c.h.b16 %v448
        %v1671 = vunpack.c.l.b16 %v449
        %v1672 = vunpack.c.h.b16 %v449
        %v1673 = vunpack.c.l.b16 %v450
        %v1674 = vunpack.c.h.b16 %v450
        %v1675 = vunpack.c.l.b16 %v451
        %v1676 = vunpack.c.h.b16 %v451
        %v1677 = vunpack.c.l.b16 %v452
        %v1678 = vunpack.c.h.b16 %v452
        %v1679 = vunpack.c.l.b16 %v453
        %v1680 = vunpack.c.h.b16 %v453
        %v1681 = vunpack.c.l.b16 %v454
        %v1682 = vunpack.c.h.b16 %v454
        %v1683 = vunpack.c.l.b16 %v455
        %v1684 = vunpack.c.h.b16 %v455
        %v1685 = vunpack.c.l.b16 %v456
        %v1686 = vunpack.c.h.b16 %v456
        %v1687 = vunpack.c.l.b16 %v457
        %v1688 = vunpack.c.h.b16 %v457
        %v1689 = vunpack.c.l.b16 %v458
        %v1690 = vunpack.c.h.b16 %v458
        %v1691 = vunpack.c.l.b16 %v459
        %v1692 = vunpack.c.h.b16 %v459
        %v1693 = vunpack.c.l.b16 %v460
        %v1694 = vunpack.c.h.b16 %v460
        %v1695 = vunpack.c.l.b16 %v461
        %v1696 = vunpack.c.h.b16 %v461
        %v1697 = vunpack.c.l.b16 %v462
        %v1698 = vunpack.c.h.b16 %v462
        %v1699 = vunpack.c.l.b16 %v463
        %v1700 = vunpack.c.h.b16 %v463
        %v1701 = vunpack.c.l.b16 %v464
        %v1702 = vunpack.c.h.b16 %v464
        %v1703 = vunpack.c.l.b16 %v465
        %v1704 = vunpack.c.h.b16 %v465
        %v1705 = vunpack.c.l.b16 %v466
        %v1706 = vunpack.c.h.b16 %v466
        %v1707 = vunpack.c.l.b16 %v467
        %v1708 = vunpack.c.h.b16 %v467
        %v1709 = vunpack.c.l.b16 %v468
        %v1710 = vunpack.c.h.b16 %v468
        %v1711 = vunpack.c.l.b16 %v469
        %v1712 = vunpack.c.h.b16 %v469
        %v1713 = vunpack.c.l.b16 %v470
        %v1714 = vunpack.c.h.b16 %v470
        %v1715 = vunpack.c.l.b16 %v471
        %v1716 = vunpack.c.h.b16 %v471
        %v1717 = vunpack.c.l.b16 %v472
        %v1718 = vunpack.c.h.b16 %v472
        %v1719 = vunpack.c.l.b16 %v473
        %v1720 = vunpack.c.h.b16 %v473
        %v1721 = vunpack.c.l.b16 %v474
        %v1722 = vunpack.c.h.b16 %v474
        %v1723 = vunpack.c.l.b16 %v475
        %v1724 = vunpack.c.h.b16 %v475
        %v1725 = vunpack.c.l.b16 %v476
        %v1726 = vunpack.c.h.b16 %v476
        %v1727 = vunpack.c.l.b16 %v477
        %v1728 = vunpack.c.h.b16 %v477
        %v1729 = vunpack.c.l.b16 %v478
        %v1730 = vunpack.c.h.b16 %v478
        %v1731 = vunpack.c.l.b16 %v479
        %v1732 = vunpack.c.h.b16 %v479
        %v1733 = vunpack.c.l.b16 %v480
        %v1734 = vunpack.c.h.b16 %v480
        %v1735 = vunpack.c.l.b16 %v481
        %v1736 = vunpack.c.h.b16 %v481
        %v1737 = vunpack.c.l.b16 %v482
        %v1738 = vunpack.c.h.b16 %v482
        %v1739 = vunpack.c.l.b16 %v483
        %v1740 = vunpack.c.h.b16 %v483
        %v1741 = vunpack.c.l.b16 %v484
        %v1742 = vunpack.c.h.b16 %v484
        %v1743 = vunpack.c.l.b16 %v485
        %v1744 = vunpack.c.h.b16 %v485
        %v1745 = vunpack.c.l.b16 %v486
        %v1746 = vunpack.c.h.b16 %v486
        %v1747 = vunpack.c.l.b16 %v487
        %v1748 = vunpack.c.h.b16 %v487
        %v1749 = vunpack.c.l.b16 %v488
        %v1750 = vunpack.c.h.b16 %v488
        %v1751 = vunpack.c.l.b16 %v489
        %v1752 = vunpack.c.h.b16 %v489
        %v1753 = vunpack.c.l.b16 %v490
        %v1754 = vunpack.c.h.b16 %v490
        %v1755 = vunpack.c.l.b16 %v491
        %v1756 = vunpack.c.h.b16 %v491
        %v1757 = vunpack.c.l.b16 %v492
        %v1758 = vunpack.c.h.b16 %v492
        %v1759 = vunpack.c.l.b16 %v493
        %v1760 = vunpack.c.h.b16 %v493
        %v1761 = vunpack.c.l.b16 %v494
        %v1762 = vunpack.c.h.b16 %v494
        %v1763 = vunpack.c.l.b16 %v495
        %v1764 = vunpack.c.h.b16 %v495
        %v1765 = vunpack.c.l.b16 %v496
        %v1766 = vunpack.c.h.b16 %v496
        %v1767 = vunpack.c.l.b16 %v497
        %v1768 = vunpack.c.h.b16 %v497
        %v1769 = vunpack.c.l.b16 %v498
        %v1770 = vunpack.c.h.b16 %v498
        %v1771 = vunpack.c.l.b16 %v499
        %v1772 = vunpack.c.h.b16 %v499
        %v1773 = vunpack.c.l.b16 %v500
        %v1774 = vunpack.c.h.b16 %v500
        %v1775 = vunpack.c.l.b16 %v501
        %v1776 = vunpack.c.h.b16 %v501
        %v1777 = vunpack.c.l.b16 %v502
        %v1778 = vunpack.c.h.b16 %v502
        %v1779 = vunpack.c.l.b16 %v503
        %v1780 = vunpack.c.h.b16 %v503
        %v1781 = vunpack.c.l.b16 %v504
        %v1782 = vunpack.c.h.b16 %v504
        %v1783 = vunpack.c.l.b16 %v505
        %v1784 = vunpack.c.h.b16 %v505
        %v1785 = vunpack.c.l.b16 %v506
        %v1786 = vunpack.c.h.b16 %v506
        %v1787 = vunpack.c.l.b16 %v507
        %v1788 = vunpack.c.h.b16 %v507
        %v1789 = vunpack.c.l.b16 %v508
        %v1790 = vunpack.c.h.b16 %v508
        %v1791 = vunpack.c.l.b16 %v509
        %v1792 = vunpack.c.h.b16 %v509
        %v1793 = vunpack.c.l.b16 %v510
        %v1794 = vunpack.c.h.b16 %v510
        %v1795 = vunpack.c.l.b16 %v511
        %v1796 = vunpack.c.h.b16 %v511
        %v1797 = vunpack.c.l.b16 %v512
        %v1798 = vunpack.c.h.b16 %v512
        %v1799 = vunpack.c.l.b16 %v513
        %v1800 = vunpack.c.h.b16 %v513
        %v1801 = vunpack.c.l.b16 %v514
        %v1802 = vunpack.c.h.b16 %v514
        %v1803 = vunpack.c.l.b16 %v515
        %v1804 = vunpack.c.h.b16 %v515
        %v1805 = vunpack.c.l.b16 %v516
        %v1806 = vunpack.c.h.b16 %v516
        %v1807 = vunpack.c.l.b16 %v517
        %v1808 = vunpack.c.h.b16 %v517
        %v1809 = vunpack.c.l.b16 %v518
        %v1810 = vunpack.c.h.b16 %v518
        %v1811 = vunpack.c.l.b16 %v519
        %v1812 = vunpack.c.h.b16 %v519
        %v1813 = vunpack.c.l.b16 %v520
        %v1814 = vunpack.c.h.b16 %v520
        %v1815 = vunpack.c.l.b16 %v521
        %v1816 = vunpack.c.h.b16 %v521
        %v1817 = vunpack.c.l.b16 %v522
        %v1818 = vunpack.c.h.b16 %v522
        %v1819 = vunpack.c.l.b16 %v523
        %v1820 = vunpack.c.h.b16 %v523
        %v1821 = vunpack.c.l.b16 %v524
        %v1822 = vunpack.c.h.b16 %v524
        %v1823 = vunpack.c.l.b16 %v525
        %v1824 = vunpack.c.h.b16 %v525
        %v1825 = vunpack.c.l.b16 %v526
        %v1826 = vunpack.c.h.b16 %v526
        %v1827 = vunpack.c.l.b16 %v527
        %v1828 = vunpack.c.h.b16 %v527
        %v1829 = vunpack.c.l.b16 %v528
        %v1830 = vunpack.c.h.b16 %v528
        %v1831 = vunpack.c.l.b16 %v529
        %v1832 = vunpack.c.h.b16 %v529
        %v1833 = vunpack.c.l.b16 %v530
        %v1834 = vunpack.c.h.b16 %v530
        %v1835 = vunpack.c.l.b16 %v531
        %v1836 = vunpack.c.h.b16 %v531
        %v1837 = vunpack.c.l.b16 %v532
        %v1838 = vunpack.c.h.b16 %v532
        %v1839 = vunpack.c.l.b16 %v533
        %v1840 = vunpack.c.h.b16 %v533
        %v1841 = vunpack.c.l.b16 %v534
        %v1842 = vunpack.c.h.b16 %v534
        %v1843 = vunpack.c.l.b16 %v535
        %v1844 = vunpack.c.h.b16 %v535
        %v1845 = vunpack.c.l.b16 %v536
        %v1846 = vunpack.c.h.b16 %v536
        %v1847 = vunpack.c.l.b16 %v537
        %v1848 = vunpack.c.h.b16 %v537
        %v1849 = vunpack.c.l.b16 %v538
        %v1850 = vunpack.c.h.b16 %v538
        %v1851 = vunpack.c.l.b16 %v539
        %v1852 = vunpack.c.h.b16 %v539
        %v1853 = vunpack.c.l.b16 %v540
        %v1854 = vunpack.c.h.b16 %v540
        %v1855 = vunpack.c.l.b16 %v541
        %v1856 = vunpack.c.h.b16 %v541
        %v1857 = vunpack.c.l.b16 %v542
        %v1858 = vunpack.c.h.b16 %v542
        %v1859 = vunpack.c.l.b16 %v543
        %v1860 = vunpack.c.h.b16 %v543
        %v1861 = vunpack.c.l.b16 %v544
        %v1862 = vunpack.c.h.b16 %v544
        %v1863 = vunpack.c.l.b16 %v545
        %v1864 = vunpack.c.h.b16 %v545
        %v1865 = vunpack.c.l.b16 %v546
        %v1866 = vunpack.c.h.b16 %v546
        %v1867 = vunpack.c.l.b16 %v547
        %v1868 = vunpack.c.h.b16 %v547
        %v1869 = vunpack.c.l.b16 %v548
        %v1870 = vunpack.c.h.b16 %v548
        %v1871 = vunpack.c.l.b16 %v549
        %v1872 = vunpack.c.h.b16 %v549
        %v1873 = vunpack.c.l.b16 %v550
        %v1874 = vunpack.c.h.b16 %v550
        %v1875 = vunpack.c.l.b16 %v551
        %v1876 = vunpack.c.h.b16 %v551
        %v1877 = vunpack.c.l.b16 %v552
        %v1878 = vunpack.c.h.b16 %v552
        %v1879 = vunpack.c.l.b16 %v553
        %v1880 = vunpack.c.h.b16 %v553
        %v1881 = vunpack.c.l.b16 %v554
        %v1882 = vunpack.c.h.b16 %v554
        %v1883 = vunpack.c.l.b16 %v555
        %v1884 = vunpack.c.h.b16 %v555
        %v1885 = vunpack.c.l.b16 %v556
        %v1886 = vunpack.c.h.b16 %v556
        %v1887 = vunpack.c.l.b16 %v557
        %v1888 = vunpack.c.h.b16 %v557
        %v1889 = vunpack.c.l.b16 %v558
        %v1890 = vunpack.c.h.b16 %v558
        %v1891 = vunpack.c.l.b16 %v559
        %v1892 = vunpack.c.h.b16 %v559
        %v1893 = vunpack.c.l.b16 %v560
        %v1894 = vunpack.c.h.b16 %v560
        %v1895 = vunpack.c.l.b16 %v561
        %v1896 = vunpack.c.h.b16 %v561
        %v1897 = vunpack.c.l.b16 %v562
        %v1898 = vunpack.c.h.b16 %v562
        %v1899 = vunpack.c.l.b16 %v563
        %v1900 = vunpack.c.h.b16 %v563
        %v1901 = vunpack.c.l.b16 %v564
        %v1902 = vunpack.c.h.b16 %v564
        %v1903 = vunpack.c.l.b16 %v565
        %v1904 = vunpack.c.h.b16 %v565
        %v1905 = vunpack.c.l.b16 %v566
        %v1906 = vunpack.c.h.b16 %v566
        %v1907 = vunpack.c.l.b16 %v567
        %v1908 = vunpack.c.h.b16 %v567
        %v1909 = vunpack.c.l.b16 %v568
        %v1910 = vunpack.c.h.b16 %v568
        %v1911 = vunpack.c.l.b16 %v569
        %v1912 = vunpack.c.h.b16 %v569
        %v1913 = vunpack.c.l.b16 %v570
        %v1914 = vunpack.c.h.b16 %v570
        %v1915 = vunpack.c.l.b16 %v571
        %v1916 = vunpack.c.h.b16 %v571
        %v1917 = vunpack.c.l.b16 %v572
        %v1918 = vunpack.c.h.b16 %v572
        %v1919 = vunpack.c.l.b16 %v573
        %v1920 = vunpack.c.h.b16 %v573
        %v1921 = vunpack.c.l.b16 %v574
        %v1922 = vunpack.c.h.b16 %v574
        %v1923 = vunpack.c.l.b16 %v575
        %v1924 = vunpack.c.h.b16 %v575
        %v1925 = vunpack.c.l.b16 %v576
        %v1926 = vunpack.c.h.b16 %v576
        %v1927 = vunpack.c.l.b16 %v577
        %v1928 = vunpack.c.h.b16 %v577
        %v1929 = vunpack.c.l.b16 %v578
        %v1930 = vunpack.c.h.b16 %v578
        %v1931 = vunpack.c.l.b16 %v579
        %v1932 = vunpack.c.h.b16 %v579
        %v1933 = vunpack.c.l.b16 %v580
        %v1934 = vunpack.c.h.b16 %v580
        %v1935 = vunpack.c.l.b16 %v581
        %v1936 = vunpack.c.h.b16 %v581
        %v1937 = vunpack.c.l.b16 %v582
        %v1938 = vunpack.c.h.b16 %v582
        %v1939 = vunpack.c.l.b16 %v583
        %v1940 = vunpack.c.h.b16 %v583
        %v1941 = vunpack.c.l.b16 %v584
        %v1942 = vunpack.c.h.b16 %v584
        %v1943 = vunpack.c.l.b16 %v585
        %v1944 = vunpack.c.h.b16 %v585
        %v1945 = vunpack.c.l.b16 %v586
        %v1946 = vunpack.c.h.b16 %v586
        %v1947 = vunpack.c.l.b16 %v587
        %v1948 = vunpack.c.h.b16 %v587
        %v1949 = vunpack.c.l.b16 %v588
        %v1950 = vunpack.c.h.b16 %v588
        %v1951 = vunpack.c.l.b16 %v589
        %v1952 = vunpack.c.h.b16 %v589
        %v1953 = vunpack.c.l.b16 %v590
        %v1954 = vunpack.c.h.b16 %v590
        %v1955 = vunpack.c.l.b16 %v591
        %v1956 = vunpack.c.h.b16 %v591
        %v1957 = vunpack.c.l.b16 %v592
        %v1958 = vunpack.c.h.b16 %v592
        %v1959 = vunpack.c.l.b16 %v593
        %v1960 = vunpack.c.h.b16 %v593
        %v1961 = vunpack.c.l.b16 %v594
        %v1962 = vunpack.c.h.b16 %v594
        %v1963 = vunpack.c.l.b16 %v595
        %v1964 = vunpack.c.h.b16 %v595
        %v1965 = vunpack.c.l.b16 %v596
        %v1966 = vunpack.c.h.b16 %v596
        %v1967 = vunpack.c.l.b16 %v597
        %v1968 = vunpack.c.h.b16 %v597
        %v1969 = vunpack.c.l.b16 %v598
        %v1970 = vunpack.c.h.b16 %v598
        %v1971 = vunpack.c.l.b16 %v599
        %v1972 = vunpack.c.h.b16 %v599
        %v1973 = vunpack.c.l.b16 %v600
        %v1974 = vunpack.c.h.b16 %v600
        %v1975 = vunpack.c.l.b16 %v601
        %v1976 = vunpack.c.h.b16 %v601
        %v1977 = vunpack.c.l.b16 %v602
        %v1978 = vunpack.c.h.b16 %v602
        %v1979 = vunpack.c.l.b16 %v603
        %v1980 = vunpack.c.h.b16 %v603
        %v1981 = vunpack.c.l.b16 %v604
        %v1982 = vunpack.c.h.b16 %v604
        %v1983 = vunpack.c.l.b16 %v605
        %v1984 = vunpack.c.h.b16 %v605
        %v1985 = vunpack.c.l.b16 %v606
        %v1986 = vunpack.c.h.b16 %v606
        %v1987 = vunpack.c.l.b16 %v607
        %v1988 = vunpack.c.h.b16 %v607
        %v1989 = vunpack.c.l.b16 %v608
        %v1990 = vunpack.c.h.b16 %v608
        %v1991 = vunpack.c.l.b16 %v609
        %v1992 = vunpack.c.h.b16 %v609
        %v1993 = vunpack.c.l.b16 %v610
        %v1994 = vunpack.c.h.b16 %v610
        %v1995 = vunpack.c.l.b16 %v611
        %v1996 = vunpack.c.h.b16 %v611
        %v1997 = vunpack.c.l.b16 %v612
        %v1998 = vunpack.c.h.b16 %v612
        %v1999 = vunpack.c.l.b16 %v613
        %v2000 = vunpack.c.h.b16 %v613
        %v2001 = vunpack.c.l.b16 %v614
        %v2002 = vunpack.c.h.b16 %v614
        %v2003 = vunpack.c.l.b16 %v615
        %v2004 = vunpack.c.h.b16 %v615
        %v2005 = vunpack.c.l.b16 %v616
        %v2006 = vunpack.c.h.b16 %v616
        %v2007 = vunpack.c.l.b16 %v617
        %v2008 = vunpack.c.h.b16 %v617
        %v2009 = vunpack.c.l.b16 %v618
        %v2010 = vunpack.c.h.b16 %v618
        %v2011 = vunpack.c.l.b16 %v619
        %v2012 = vunpack.c.h.b16 %v619
        %v2013 = vunpack.c.l.b16 %v620
        %v2014 = vunpack.c.h.b16 %v620
        %v2015 = vunpack.c.l.b16 %v621
        %v2016 = vunpack.c.h.b16 %v621
        %v2017 = vunpack.c.l.b16 %v622
        %v2018 = vunpack.c.h.b16 %v622
        %v2019 = vunpack.c.l.b16 %v623
        %v2020 = vunpack.c.h.b16 %v623
        %v2021 = vunpack.c.l.b16 %v624
        %v2022 = vunpack.c.h.b16 %v624
        %v2023 = vunpack.c.l.b16 %v625
        %v2024 = vunpack.c.h.b16 %v625
        %v2025 = vunpack.c.l.b16 %v626
        %v2026 = vunpack.c.h.b16 %v626
        %v2027 = vunpack.c.l.b16 %v627
        %v2028 = vunpack.c.h.b16 %v627
        %v2029 = vunpack.c.l.b16 %v628
        %v2030 = vunpack.c.h.b16 %v628
        %v2031 = vunpack.c.l.b16 %v629
        %v2032 = vunpack.c.h.b16 %v629
        %v2033 = vunpack.c.l.b16 %v630
        %v2034 = vunpack.c.h.b16 %v630
        %v2035 = vunpack.c.l.b16 %v631
        %v2036 = vunpack.c.h.b16 %v631
        %v2037 = vunpack.c.l.b16 %v632
        %v2038 = vunpack.c.h.b16 %v632
        %v2039 = vunpack.c.l.b16 %v633
        %v2040 = vunpack.c.h.b16 %v633
        %v2041 = vunpack.c.l.b16 %v634
        %v2042 = vunpack.c.h.b16 %v634
        %v2043 = vunpack.c.l.b16 %v635
        %v2044 = vunpack.c.h.b16 %v635
        %v2045 = vunpack.c.l.b16 %v636
        %v2046 = vunpack.c.h.b16 %v636
        %v2047 = vunpack.c.l.b16 %v637
        %v2048 = vunpack.c.h.b16 %v637
        %v2049 = vunpack.c.l.b16 %v638
        %v2050 = vunpack.c.h.b16 %v638
        %v2051 = vunpack.c.l.b16 %v639
        %v2052 = vunpack.c.h.b16 %v639
        %v2053 = vunpack.c.l.b16 %v640
        %v2054 = vunpack.c.h.b16 %v640
        %v2055 = vunpack.c.l.b16 %v641
        %v2056 = vunpack.c.h.b16 %v641
        %v2057 = vunpack.c.l.b16 %v642
        %v2058 = vunpack.c.h.b16 %v642
        %v2059 = vunpack.c.l.b16 %v643
        %v2060 = vunpack.c.h.b16 %v643
        %v2061 = vunpack.c.l.b16 %v644
        %v2062 = vunpack.c.h.b16 %v644
        %v2063 = vunpack.c.l.b16 %v645
        %v2064 = vunpack.c.h.b16 %v645
        %v2065 = vunpack.c.l.b16 %v646
        %v2066 = vunpack.c.h.b16 %v646
        %v2067 = vunpack.c.l.b16 %v647
        %v2068 = vunpack.c.h.b16 %v647
        %v2069 = vunpack.c.l.b16 %v648
        %v2070 = vunpack.c.h.b16 %v648
        %v2071 = vunpack.c.l.b16 %v649
        %v2072 = vunpack.c.h.b16 %v649
        %v2073 = vunpack.c.l.b16 %v650
        %v2074 = vunpack.c.h.b16 %v650
        %v2075 = vunpack.c.l.b16 %v651
        %v2076 = vunpack.c.h.b16 %v651
        %v2077 = vunpack.c.l.b16 %v652
        %v2078 = vunpack.c.h.b16 %v652
        %v2079 = vunpack.c.l.b16 %v653
        %v2080 = vunpack.c.h.b16 %v653
        %v2081 = vunpack.c.l.b16 %v654
        %v2082 = vunpack.c.h.b16 %v654
        %v2083 = vunpack.c.l.b16 %v655
        %v2084 = vunpack.c.h.b16 %v655
        %v2085 = vunpack.c.l.b16 %v656
        %v2086 = vunpack.c.h.b16 %v656
        %v2087 = vunpack.c.l.b16 %v657
        %v2088 = vunpack.c.h.b16 %v657
        %v2089 = vunpack.c.l.b16 %v658
        %v2090 = vunpack.c.h.b16 %v658
        %v2091 = vunpack.c.l.b16 %v659
        %v2092 = vunpack.c.h.b16 %v659
        %v2093 = vunpack.c.l.b16 %v660
        %v2094 = vunpack.c.h.b16 %v660
        %v2095 = vunpack.c.l.b16 %v661
        %v2096 = vunpack.c.h.b16 %v661
        %v2097 = vunpack.c.l.b16 %v662
        %v2098 = vunpack.c.h.b16 %v662
        %v2099 = vunpack.c.l.b16 %v663
        %v2100 = vunpack.c.h.b16 %v663
        %v2101 = vunpack.c.l.b16 %v664
        %v2102 = vunpack.c.h.b16 %v664
        %v2103 = vunpack.c.l.b16 %v665
        %v2104 = vunpack.c.h.b16 %v665
        %v2105 = vunpack.c.l.b16 %v666
        %v2106 = vunpack.c.h.b16 %v666
        %v2107 = vunpack.c.l.b16 %v667
        %v2108 = vunpack.c.h.b16 %v667
        %v2109 = vunpack.c.l.b16 %v668
        %v2110 = vunpack.c.h.b16 %v668
        %v2111 = vunpack.c.l.b16 %v669
        %v2112 = vunpack.c.h.b16 %v669
        %v2113 = vunpack.c.l.b16 %v670
        %v2114 = vunpack.c.h.b16 %v670
        %v2115 = vunpack.c.l.b16 %v671
        %v2116 = vunpack.c.h.b16 %v671
        %v2117 = vunpack.c.l.b16 %v672
        %v2118 = vunpack.c.h.b16 %v672
        %v2119 = vunpack.c.l.b16 %v673
        %v2120 = vunpack.c.h.b16 %v673
        %v2121 = vunpack.c.l.b16 %v674
        %v2122 = vunpack.c.h.b16 %v674
        %v2123 = vunpack.c.l.b16 %v675
        %v2124 = vunpack.c.h.b16 %v675
        %v2125 = vunpack.c.l.b16 %v676
        %v2126 = vunpack.c.h.b16 %v676
        %v2127 = vunpack.c.l.b16 %v677
        %v2128 = vunpack.c.h.b16 %v677
        %v2129 = vunpack.c.l.b16 %v678
        %v2130 = vunpack.c.h.b16 %v678
        %v2131 = vunpack.c.l.b16 %v679
        %v2132 = vunpack.c.h.b16 %v679
        %v2133 = vunpack.c.l.b16 %v680
        %v2134 = vunpack.c.h.b16 %v680
        %v2135 = vunpack.c.l.b16 %v681
        %v2136 = vunpack.c.h.b16 %v681
        %v2137 = vunpack.c.l.b16 %v682
        %v2138 = vunpack.c.h.b16 %v682
        %v2139 = vunpack.c.l.b16 %v683
        %v2140 = vunpack.c.h.b16 %v683
        %v2141 = vunpack.c.l.b16 %v684
        %v2142 = vunpack.c.h.b16 %v684
        %v2143 = vunpack.c.l.b16 %v685
        %v2144 = vunpack.c.h.b16 %v685
        %v2145 = vunpack.c.l.b16 %v686
        %v2146 = vunpack.c.h.b16 %v686
        %v2147 = vunpack.c.l.b16 %v687
        %v2148 = vunpack.c.h.b16 %v687
        %v2149 = vunpack.c.l.b16 %v688
        %v2150 = vunpack.c.h.b16 %v688
        %v2151 = vunpack.c.l.b16 %v689
        %v2152 = vunpack.c.h.b16 %v689
        %v2153 = vunpack.c.l.b16 %v690
        %v2154 = vunpack.c.h.b16 %v690
        %v2155 = vunpack.c.l.b16 %v691
        %v2156 = vunpack.c.h.b16 %v691
        %v2157 = vunpack.c.l.b16 %v692
        %v2158 = vunpack.c.h.b16 %v692
        %v2159 = vunpack.c.l.b16 %v693
        %v2160 = vunpack.c.h.b16 %v693
        %v2161 = vunpack.c.l.b16 %v694
        %v2162 = vunpack.c.h.b16 %v694
        %v2163 = vunpack.c.l.b16 %v695
        %v2164 = vunpack.c.h.b16 %v695
        %v2165 = vunpack.c.l.b16 %v696
        %v2166 = vunpack.c.h.b16 %v696
        %v2167 = vunpack.c.l.b16 %v697
        %v2168 = vunpack.c.h.b16 %v697
        %v2169 = vunpack.c.l.b16 %v698
        %v2170 = vunpack.c.h.b16 %v698
        %v2171 = vunpack.c.l.b16 %v699
        %v2172 = vunpack.c.h.b16 %v699
        %v2173 = vunpack.c.l.b16 %v700
        %v2174 = vunpack.c.h.b16 %v700
        %v2175 = vunpack.c.l.b16 %v701
        %v2176 = vunpack.c.h.b16 %v701
        %v2177 = vunpack.c.l.b16 %v702
        %v2178 = vunpack.c.h.b16 %v702
        %v2179 = vunpack.c.l.b16 %v703
        %v2180 = vunpack.c.h.b16 %v703
        %v2181 = vunpack.c.l.b16 %v704
        %v2182 = vunpack.c.h.b16 %v704
        %v2183 = vunpack.c.l.b16 %v705
        %v2184 = vunpack.c.h.b16 %v705
        %v2185 = vunpack.c.l.b16 %v706
        %v2186 = vunpack.c.h.b16 %v706
        %v2187 = vunpack.c.l.b16 %v707
        %v2188 = vunpack.c.h.b16 %v707
        %v2189 = vunpack.c.l.b16 %v708
        %v2190 = vunpack.c.h.b16 %v708
        %v2191 = vunpack.c.l.b16 %v709
        %v2192 = vunpack.c.h.b16 %v709
        %v2193 = vunpack.c.l.b16 %v710
        %v2194 = vunpack.c.h.b16 %v710
        %v2195 = vunpack.c.l.b16 %v711
        %v2196 = vunpack.c.h.b16 %v711
        %v2197 = vunpack.c.l.b16 %v712
        %v2198 = vunpack.c.h.b16 %v712
        %v2199 = vunpack.c.l.b16 %v713
        %v2200 = vunpack.c.h.b16 %v713
        %v2201 = vunpack.c.l.b16 %v714
        %v2202 = vunpack.c.h.b16 %v714
        %v2203 = vunpack.c.l.b16 %v715
        %v2204 = vunpack.c.h.b16 %v715
        %v2205 = vunpack.c.l.b16 %v716
        %v2206 = vunpack.c.h.b16 %v716
        %v2207 = vunpack.c.l.b16 %v717
        %v2208 = vunpack.c.h.b16 %v717
        %v2209 = vunpack.c.l.b16 %v718
        %v2210 = vunpack.c.h.b16 %v718
        %v2211 = vunpack.c.l.b16 %v719
        %v2212 = vunpack.c.h.b16 %v719
        %v2213 = vunpack.c.l.b16 %v720
        %v2214 = vunpack.c.h.b16 %v720
        %v2215 = vunpack.c.l.b16 %v721
        %v2216 = vunpack.c.h.b16 %v721
        %v2217 = vunpack.c.l.b16 %v722
        %v2218 = vunpack.c.h.b16 %v722
        %v2219 = vunpack.c.l.b16 %v723
        %v2220 = vunpack.c.h.b16 %v723
        %v2221 = vunpack.c.l.b16 %v724
        %v2222 = vunpack.c.h.b16 %v724
        %v2223 = vunpack.c.l.b16 %v725
        %v2224 = vunpack.c.h.b16 %v725
        %v2225 = vunpack.c.l.b16 %v726
        %v2226 = vunpack.c.h.b16 %v726
        %v2227 = vunpack.c.l.b16 %v727
        %v2228 = vunpack.c.h.b16 %v727
        %v2229 = vunpack.c.l.b16 %v728
        %v2230 = vunpack.c.h.b16 %v728
        %v2231 = vunpack.c.l.b16 %v729
        %v2232 = vunpack.c.h.b16 %v729
        %v2233 = vunpack.c.l.b16 %v730
        %v2234 = vunpack.c.h.b16 %v730
        %v2235 = vunpack.c.l.b16 %v731
        %v2236 = vunpack.c.h.b16 %v731
        %v2237 = vunpack.c.l.b16 %v732
        %v2238 = vunpack.c.h.b16 %v732
        %v2239 = vunpack.c.l.b16 %v733
        %v2240 = vunpack.c.h.b16 %v733
        %v2241 = vunpack.c.l.b16 %v734
        %v2242 = vunpack.c.h.b16 %v734
        %v2243 = vunpack.c.l.b16 %v735
        %v2244 = vunpack.c.h.b16 %v735
        %v2245 = vunpack.c.l.b16 %v736
        %v2246 = vunpack.c.h.b16 %v736
        %v2247 = vunpack.c.l.b16 %v737
        %v2248 = vunpack.c.h.b16 %v737
        %v2249 = vunpack.c.l.b16 %v738
        %v2250 = vunpack.c.h.b16 %v738
        %v2251 = vunpack.c.l.b16 %v739
        %v2252 = vunpack.c.h.b16 %v739
        %v2253 = vunpack.c.l.b16 %v740
        %v2254 = vunpack.c.h.b16 %v740
        %v2255 = vunpack.c.l.b16 %v741
        %v2256 = vunpack.c.h.b16 %v741
        %v2257 = vunpack.c.l.b16 %v742
        %v2258 = vunpack.c.h.b16 %v742
        %v2259 = vunpack.c.l.b16 %v743
        %v2260 = vunpack.c.h.b16 %v743
        %v2261 = vunpack.c.l.b16 %v744
        %v2262 = vunpack.c.h.b16 %v744
        %v2263 = vunpack.c.l.b16 %v745
        %v2264 = vunpack.c.h.b16 %v745
        %v2265 = vunpack.c.l.b16 %v746
        %v2266 = vunpack.c.h.b16 %v746
        %v2267 = vunpack.c.l.b16 %v747
        %v2268 = vunpack.c.h.b16 %v747
        %v2269 = vunpack.c.l.b16 %v748
        %v2270 = vunpack.c.h.b16 %v748
        %v2271 = vunpack.c.l.b16 %v749
        %v2272 = vunpack.c.h.b16 %v749
        %v2273 = vunpack.c.l.b16 %v750
        %v2274 = vunpack.c.h.b16 %v750
        %v2275 = vunpack.c.l.b16 %v751
        %v2276 = vunpack.c.h.b16 %v751
        %v2277 = vunpack.c.l.b16 %v752
        %v2278 = vunpack.c.h.b16 %v752
        %v2279 = vunpack.c.l.b16 %v753
        %v2280 = vunpack.c.h.b16 %v753
        %v2281 = vunpack.c.l.b16 %v754
        %v2282 = vunpack.c.h.b16 %v754
        %v2283 = vunpack.c.l.b16 %v755
        %v2284 = vunpack.c.h.b16 %v755
        %v2285 = vunpack.c.l.b16 %v756
        %v2286 = vunpack.c.h.b16 %v756
        %v2287 = vunpack.c.l.b16 %v757
        %v2288 = vunpack.c.h.b16 %v757
        %v2289 = vunpack.c.l.b16 %v758
        %v2290 = vunpack.c.h.b16 %v758
        %v2291 = vunpack.c.l.b16 %v759
        %v2292 = vunpack.c.h.b16 %v759
        %v2293 = vunpack.c.l.b16 %v760
        %v2294 = vunpack.c.h.b16 %v760
        %v2295 = vunpack.c.l.b16 %v761
        %v2296 = vunpack.c.h.b16 %v761
        %v2297 = vunpack.c.l.b16 %v762
        %v2298 = vunpack.c.h.b16 %v762
        %v2299 = vunpack.c.l.b16 %v763
        %v2300 = vunpack.c.h.b16 %v763
        %v2301 = vunpack.c.l.b16 %v764
        %v2302 = vunpack.c.h.b16 %v764
        %v2303 = vunpack.c.l.b16 %v765
        %v2304 = vunpack.c.h.b16 %v765
        %v2305 = vunpack.c.l.b16 %v766
        %v2306 = vunpack.c.h.b16 %v766
        %v2307 = vunpack.c.l.b16 %v767
        %v2308 = vunpack.c.h.b16 %v767
        %v2309 = vunpack.c.l.b16 %v768
        %v2310 = vunpack.c.h.b16 %v768
        %v2311 = vunpack.c.l.b16 %v769
        %v2312 = vunpack.c.h.b16 %v769
        %v2313 = vunpack.c.l.b16 %v770
        %v2314 = vunpack.c.h.b16 %v770
        %v2315 = vunpack.c.l.b16 %v771
        %v2316 = vunpack.c.h.b16 %v771
        %v2317 = vunpack.c.l.b16 %v772
        %v2318 = vunpack.c.h.b16 %v772
        %v2319 = vunpack.c.l.b16 %v773
        %v2320 = vunpack.c.h.b16 %v773
        %v2321 = vunpack.c.l.b16 %v774
        %v2322 = vunpack.c.h.b16 %v774
        %v2323 = vunpack.c.l.b16 %v775
        %v2324 = vunpack.c.h.b16 %v775
        %v2325 = vunpack.c.l.b16 %v776
        %v2326 = vunpack.c.h.b16 %v776
        %v2327 = vunpack.c.l.b16 %v777
        %v2328 = vunpack.c.h.b16 %v777
        %v2329 = vunpack.c.l.b16 %v778
        %v2330 = vunpack.c.h.b16 %v778
        %v2331 = vunpack.c.l.b16 %v779
        %v2332 = vunpack.c.h.b16 %v779
        %v2333 = vunpack.c.l.b16 %v780
        %v2334 = vunpack.c.h.b16 %v780
        %v2335 = vunpack.c.l.b16 %v781
        %v2336 = vunpack.c.h.b16 %v781
        %v2337 = vunpack.c.l.b16 %v782
        %v2338 = vunpack.c.h.b16 %v782
        %v2339 = vunpack.c.l.b16 %v783
        %v2340 = vunpack.c.h.b16 %v783
        %v2341 = vunpack.c.l.b16 %v784
        %v2342 = vunpack.c.h.b16 %v784
        %v2343 = vunpack.c.l.b16 %v785
        %v2344 = vunpack.c.h.b16 %v785
        %v2345 = vunpack.c.l.b16 %v786
        %v2346 = vunpack.c.h.b16 %v786
        %v2347 = vunpack.c.l.b16 %v787
        %v2348 = vunpack.c.h.b16 %v787
        %v2349 = vunpack.c.l.b16 %v788
        %v2350 = vunpack.c.h.b16 %v788
        %v2351 = vunpack.c.l.b16 %v789
        %v2352 = vunpack.c.h.b16 %v789
        %v2353 = vunpack.c.l.b16 %v790
        %v2354 = vunpack.c.h.b16 %v790
        %v2355 = vunpack.c.l.b16 %v791
        %v2356 = vunpack.c.h.b16 %v791
        %v2357 = vpack.c.b16 %v1349, %v1333
        %v2358 = vpack.c.b16 %v1350, %v1334
        %v2359 = vpack.c.b16 %v1351, %v1335
        %v2360 = vpack.c.b16 %v1352, %v1336
        %v2361 = vpack.c.b16 %v1353, %v1337
        %v2362 = vpack.c.b16 %v1354, %v1338
        %v2363 = vpack.c.b16 %v1355, %v1339
        %v2364 = vpack.c.b16 %v1356, %v1340
        %v2365 = vpack.c.b16 %v1357, %v1341
        %v2366 = vpack.c.b16 %v1358, %v1342
        %v2367 = vpack.c.b16 %v1359, %v1343
        %v2368 = vpack.c.b16 %v1360, %v1344
        %v2369 = vpack.c.b16 %v1361, %v1345
        %v2370 = vpack.c.b16 %v1362, %v1346
        %v2371 = vpack.c.b16 %v1363, %v1347
        %v2372 = vpack.c.b16 %v1364, %v1348
        %v2373 = vpack.c.b16 %v1381, %v1365
        %v2374 = vpack.c.b16 %v1382, %v1366
        %v2375 = vpack.c.b16 %v1383, %v1367
        %v2376 = vpack.c.b16 %v1384, %v1368
        %v2377 = vpack.c.b16 %v1385, %v1369
        %v2378 = vpack.c.b16 %v1386, %v1370
        %v2379 = vpack.c.b16 %v1387, %v1371
        %v2380 = vpack.c.b16 %v1388, %v1372
        %v2381 = vpack.c.b16 %v1389, %v1373
        %v2382 = vpack.c.b16 %v1390, %v1374
        %v2383 = vpack.c.b16 %v1391, %v1375
        %v2384 = vpack.c.b16 %v1392, %v1376
        %v2385 = vpack.c.b16 %v1393, %v1377
        %v2386 = vpack.c.b16 %v1394, %v1378
        %v2387 = vpack.c.b16 %v1395, %v1379
        %v2388 = vpack.c.b16 %v1396, %v1380
        %v2389 = vpack.c.b16 %v1413, %v1397
        %v2390 = vpack.c.b16 %v1414, %v1398
        %v2391 = vpack.c.b16 %v1415, %v1399
        %v2392 = vpack.c.b16 %v1416, %v1400
        %v2393 = vpack.c.b16 %v1417, %v1401
        %v2394 = vpack.c.b16 %v1418, %v1402
        %v2395 = vpack.c.b16 %v1419, %v1403
        %v2396 = vpack.c.b16 %v1420, %v1404
        %v2397 = vpack.c.b16 %v1421, %v1405
        %v2398 = vpack.c.b16 %v1422, %v1406
        %v2399 = vpack.c.b16 %v1423, %v1407
        %v2400 = vpack.c.b16 %v1424, %v1408
        %v2401 = vpack.c.b16 %v1425, %v1409
        %v2402 = vpack.c.b16 %v1426, %v1410
        %v2403 = vpack.c.b16 %v1427, %v1411
        %v2404 = vpack.c.b16 %v1428, %v1412
        %v2405 = vpack.c.b16 %v1445, %v1429
        %v2406 = vpack.c.b16 %v1446, %v1430
        %v2407 = vpack.c.b16 %v1447, %v1431
        %v2408 = vpack.c.b16 %v1448, %v1432
        %v2409 = vpack.c.b16 %v1449, %v1433
        %v2410 = vpack.c.b16 %v1450, %v1434
        %v2411 = vpack.c.b16 %v1451, %v1435
        %v2412 = vpack.c.b16 %v1452, %v1436
        %v2413 = vpack.c.b16 %v1453, %v1437
        %v2414 = vpack.c.b16 %v1454, %v1438
        %v2415 = vpack.c.b16 %v1455, %v1439
        %v2416 = vpack.c.b16 %v1456, %v1440
        %v2417 = vpack.c.b16 %v1457, %v1441
        %v2418 = vpack.c.b16 %v1458, %v1442
        %v2419 = vpack.c.b16 %v1459, %v1443
        %v2420 = vpack.c.b16 %v1460, %v1444
        %v2421 = vpack.c.b16 %v1477, %v1461
        %v2422 = vpack.c.b16 %v1478, %v1462
        %v2423 = vpack.c.b16 %v1479, %v1463
        %v2424 = vpack.c.b16 %v1480, %v1464
        %v2425 = vpack.c.b16 %v1481, %v1465
        %v2426 = vpack.c.b16 %v1482, %v1466
        %v2427 = vpack.c.b16 %v1483, %v1467
        %v2428 = vpack.c.b16 %v1484, %v1468
        %v2429 = vpack.c.b16 %v1485, %v1469
        %v2430 = vpack.c.b16 %v1486, %v1470
        %v2431 = vpack.c.b16 %v1487, %v1471
        %v2432 = vpack.c.b16 %v1488, %v1472
        %v2433 = vpack.c.b16 %v1489, %v1473
        %v2434 = vpack.c.b16 %v1490, %v1474
        %v2435 = vpack.c.b16 %v1491, %v1475
        %v2436 = vpack.c.b16 %v1492, %v1476
        %v2437 = vpack.c.b16 %v1509, %v1493
        %v2438 = vpack.c.b16 %v1510, %v1494
        %v2439 = vpack.c.b16 %v1511, %v1495
        %v2440 = vpack.c.b16 %v1512, %v1496
        %v2441 = vpack.c.b16 %v1513, %v1497
        %v2442 = vpack.c.b16 %v1514, %v1498
        %v2443 = vpack.c.b16 %v1515, %v1499
        %v2444 = vpack.c.b16 %v1516, %v1500
        %v2445 = vpack.c.b16 %v1517, %v1501
        %v2446 = vpack.c.b16 %v1518, %v1502
        %v2447 = vpack.c.b16 %v1519, %v1503
        %v2448 = vpack.c.b16 %v1520, %v1504
        %v2449 = vpack.c.b16 %v1521, %v1505
        %v2450 = vpack.c.b16 %v1522, %v1506
        %v2451 = vpack.c.b16 %v1523, %v1507
        %v2452 = vpack.c.b16 %v1524, %v1508
        %v2453 = vpack.c.b16 %v1541, %v1525
        %v2454 = vpack.c.b16 %v1542, %v1526
        %v2455 = vpack.c.b16 %v1543, %v1527
        %v2456 = vpack.c.b16 %v1544, %v1528
        %v2457 = vpack.c.b16 %v1545, %v1529
        %v2458 = vpack.c.b16 %v1546, %v1530
        %v2459 = vpack.c.b16 %v1547, %v1531
        %v2460 = vpack.c.b16 %v1548, %v1532
        %v2461 = vpack.c.b16 %v1549, %v1533
        %v2462 = vpack.c.b16 %v1550, %v1534
        %v2463 = vpack.c.b16 %v1551, %v1535
        %v2464 = vpack.c.b16 %v1552, %v1536
        %v2465 = vpack.c.b16 %v1553, %v1537
        %v2466 = vpack.c.b16 %v1554, %v1538
        %v2467 = vpack.c.b16 %v1555, %v1539
        %v2468 = vpack.c.b16 %v1556, %v1540
        %v2469 = vpack.c.b16 %v1573, %v1557
        %v2470 = vpack.c.b16 %v1574, %v1558
        %v2471 = vpack.c.b16 %v1575, %v1559
        %v2472 = vpack.c.b16 %v1576, %v1560
        %v2473 = vpack.c.b16 %v1577, %v1561
        %v2474 = vpack.c.b16 %v1578, %v1562
        %v2475 = vpack.c.b16 %v1579, %v1563
        %v2476 = vpack.c.b16 %v1580, %v1564
        %v2477 = vpack.c.b16 %v1581, %v1565
        %v2478 = vpack.c.b16 %v1582, %v1566
        %v2479 = vpack.c.b16 %v1583, %v1567
        %v2480 = vpack.c.b16 %v1584, %v1568
        %v2481 = vpack.c.b16 %v1585, %v1569
        %v2482 = vpack.c.b16 %v1586, %v1570
        %v2483 = vpack.c.b16 %v1587, %v1571
        %v2484 = vpack.c.b16 %v1588, %v1572
        %v2485 = vpack.c.b16 %v1605, %v1589
        %v2486 = vpack.c.b16 %v1606, %v1590
        %v2487 = vpack.c.b16 %v1607, %v1591
        %v2488 = vpack.c.b16 %v1608, %v1592
        %v2489 = vpack.c.b16 %v1609, %v1593
        %v2490 = vpack.c.b16 %v1610, %v1594
        %v2491 = vpack.c.b16 %v1611, %v1595
        %v2492 = vpack.c.b16 %v1612, %v1596
        %v2493 = vpack.c.b16 %v1613, %v1597
        %v2494 = vpack.c.b16 %v1614, %v1598
        %v2495 = vpack.c.b16 %v1615, %v1599
        %v2496 = vpack.c.b16 %v1616, %v1600
        %v2497 = vpack.c.b16 %v1617, %v1601
        %v2498 = vpack.c.b16 %v1618, %v1602
        %v2499 = vpack.c.b16 %v1619, %v1603
        %v2500 = vpack.c.b16 %v1620, %v1604
        %v2501 = vpack.c.b16 %v1637, %v1621
        %v2502 = vpack.c.b16 %v1638, %v1622
        %v2503 = vpack.c.b16 %v1639, %v1623
        %v2504 = vpack.c.b16 %v1640, %v1624
        %v2505 = vpack.c.b16 %v1641, %v1625
        %v2506 = vpack.c.b16 %v1642, %v1626
        %v2507 = vpack.c.b16 %v1643, %v1627
        %v2508 = vpack.c.b16 %v1644, %v1628
        %v2509 = vpack.c.b16 %v1645, %v1629
        %v2510 = vpack.c.b16 %v1646, %v1630
        %v2511 = vpack.c.b16 %v1647, %v1631
        %v2512 = vpack.c.b16 %v1648, %v1632
        %v2513 = vpack.c.b16 %v1649, %v1633
        %v2514 = vpack.c.b16 %v1650, %v1634
        %v2515 = vpack.c.b16 %v1651, %v1635
        %v2516 = vpack.c.b16 %v1652, %v1636
        %v2517 = vpack.c.b16 %v1669, %v1653
        %v2518 = vpack.c.b16 %v1670, %v1654
        %v2519 = vpack.c.b16 %v1671, %v1655
        %v2520 = vpack.c.b16 %v1672, %v1656
        %v2521 = vpack.c.b16 %v1673, %v1657
        %v2522 = vpack.c.b16 %v1674, %v1658
        %v2523 = vpack.c.b16 %v1675, %v1659
        %v2524 = vpack.c.b16 %v1676, %v1660
        %v2525 = vpack.c.b16 %v1677, %v1661
        %v2526 = vpack.c.b16 %v1678, %v1662
        %v2527 = vpack.c.b16 %v1679, %v1663
        %v2528 = vpack.c.b16 %v1680, %v1664
        %v2529 = vpack.c.b16 %v1681, %v1665
        %v2530 = vpack.c.b16 %v1682, %v1666
        %v2531 = vpack.c.b16 %v1683, %v1667
        %v2532 = vpack.c.b16 %v1684, %v1668
        %v2533 = vpack.c.b16 %v1701, %v1685
        %v2534 = vpack.c.b16 %v1702, %v1686
        %v2535 = vpack.c.b16 %v1703, %v1687
        %v2536 = vpack.c.b16 %v1704, %v1688
        %v2537 = vpack.c.b16 %v1705, %v1689
        %v2538 = vpack.c.b16 %v1706, %v1690
        %v2539 = vpack.c.b16 %v1707, %v1691
        %v2540 = vpack.c.b16 %v1708, %v1692
        %v2541 = vpack.c.b16 %v1709, %v1693
        %v2542 = vpack.c.b16 %v1710, %v1694
        %v2543 = vpack.c.b16 %v1711, %v1695
        %v2544 = vpack.c.b16 %v1712, %v1696
        %v2545 = vpack.c.b16 %v1713, %v1697
        %v2546 = vpack.c.b16 %v1714, %v1698
        %v2547 = vpack.c.b16 %v1715, %v1699
        %v2548 = vpack.c.b16 %v1716, %v1700
        %v2549 = vpack.c.b16 %v1733, %v1717
        %v2550 = vpack.c.b16 %v1734, %v1718
        %v2551 = vpack.c.b16 %v1735, %v1719
        %v2552 = vpack.c.b16 %v1736, %v1720
        %v2553 = vpack.c.b16 %v1737, %v1721
        %v2554 = vpack.c.b16 %v1738, %v1722
        %v2555 = vpack.c.b16 %v1739, %v1723
        %v2556 = vpack.c.b16 %v1740, %v1724
        %v2557 = vpack.c.b16 %v1741, %v1725
        %v2558 = vpack.c.b16 %v1742, %v1726
        %v2559 = vpack.c.b16 %v1743, %v1727
        %v2560 = vpack.c.b16 %v1744, %v1728
        %v2561 = vpack.c.b16 %v1745, %v1729
        %v2562 = vpack.c.b16 %v1746, %v1730
        %v2563 = vpack.c.b16 %v1747, %v1731
        %v2564 = vpack.c.b16 %v1748, %v1732
        %v2565 = vpack.c.b16 %v1765, %v1749
        %v2566 = vpack.c.b16 %v1766, %v1750
        %v2567 = vpack.c.b16 %v1767, %v1751
        %v2568 = vpack.c.b16 %v1768, %v1752
        %v2569 = vpack.c.b16 %v1769, %v1753
        %v2570 = vpack.c.b16 %v1770, %v1754
        %v2571 = vpack.c.b16 %v1771, %v1755
        %v2572 = vpack.c.b16 %v1772, %v1756
        %v2573 = vpack.c.b16 %v1773, %v1757
        %v2574 = vpack.c.b16 %v1774, %v1758
        %v2575 = vpack.c.b16 %v1775, %v1759
        %v2576 = vpack.c.b16 %v1776, %v1760
        %v2577 = vpack.c.b16 %v1777, %v1761
        %v2578 = vpack.c.b16 %v1778, %v1762
        %v2579 = vpack.c.b16 %v1779, %v1763
        %v2580 = vpack.c.b16 %v1780, %v1764
        %v2581 = vpack.c.b16 %v1797, %v1781
        %v2582 = vpack.c.b16 %v1798, %v1782
        %v2583 = vpack.c.b16 %v1799, %v1783
        %v2584 = vpack.c.b16 %v1800, %v1784
        %v2585 = vpack.c.b16 %v1801, %v1785
        %v2586 = vpack.c.b16 %v1802, %v1786
        %v2587 = vpack.c.b16 %v1803, %v1787
        %v2588 = vpack.c.b16 %v1804, %v1788
        %v2589 = vpack.c.b16 %v1805, %v1789
        %v2590 = vpack.c.b16 %v1806, %v1790
        %v2591 = vpack.c.b16 %v1807, %v1791
        %v2592 = vpack.c.b16 %v1808, %v1792
        %v2593 = vpack.c.b16 %v1809, %v1793
        %v2594 = vpack.c.b16 %v1810, %v1794
        %v2595 = vpack.c.b16 %v1811, %v1795
        %v2596 = vpack.c.b16 %v1812, %v1796
        %v2597 = vpack.c.b16 %v1829, %v1813
        %v2598 = vpack.c.b16 %v1830, %v1814
        %v2599 = vpack.c.b16 %v1831, %v1815
        %v2600 = vpack.c.b16 %v1832, %v1816
        %v2601 = vpack.c.b16 %v1833, %v1817
        %v2602 = vpack.c.b16 %v1834, %v1818
        %v2603 = vpack.c.b16 %v1835, %v1819
        %v2604 = vpack.c.b16 %v1836, %v1820
        %v2605 = vpack.c.b16 %v1837, %v1821
        %v2606 = vpack.c.b16 %v1838, %v1822
        %v2607 = vpack.c.b16 %v1839, %v1823
        %v2608 = vpack.c.b16 %v1840, %v1824
        %v2609 = vpack.c.b16 %v1841, %v1825
        %v2610 = vpack.c.b16 %v1842, %v1826
        %v2611 = vpack.c.b16 %v1843, %v1827
        %v2612 = vpack.c.b16 %v1844, %v1828
        %v2613 = vpack.c.b16 %v1861, %v1845
        %v2614 = vpack.c.b16 %v1862, %v1846
        %v2615 = vpack.c.b16 %v1863, %v1847
        %v2616 = vpack.c.b16 %v1864, %v1848
        %v2617 = vpack.c.b16 %v1865, %v1849
        %v2618 = vpack.c.b16 %v1866, %v1850
        %v2619 = vpack.c.b16 %v1867, %v1851
        %v2620 = vpack.c.b16 %v1868, %v1852
        %v2621 = vpack.c.b16 %v1869, %v1853
        %v2622 = vpack.c.b16 %v1870, %v1854
        %v2623 = vpack.c.b16 %v1871, %v1855
        %v2624 = vpack.c.b16 %v1872, %v1856
        %v2625 = vpack.c.b16 %v1873, %v1857
        %v2626 = vpack.c.b16 %v1874, %v1858
        %v2627 = vpack.c.b16 %v1875, %v1859
        %v2628 = vpack.c.b16 %v1876, %v1860
        %v2629 = vpack.c.b16 %v1893, %v1877
        %v2630 = vpack.c.b16 %v1894, %v1878
        %v2631 = vpack.c.b16 %v1895, %v1879
        %v2632 = vpack.c.b16 %v1896, %v1880
        %v2633 = vpack.c.b16 %v1897, %v1881
        %v2634 = vpack.c.b16 %v1898, %v1882
        %v2635 = vpack.c.b16 %v1899, %v1883
        %v2636 = vpack.c.b16 %v1900, %v1884
        %v2637 = vpack.c.b16 %v1901, %v1885
        %v2638 = vpack.c.b16 %v1902, %v1886
        %v2639 = vpack.c.b16 %v1903, %v1887
        %v2640 = vpack.c.b16 %v1904, %v1888
        %v2641 = vpack.c.b16 %v1905, %v1889
        %v2642 = vpack.c.b16 %v1906, %v1890
        %v2643 = vpack.c.b16 %v1907, %v1891
        %v2644 = vpack.c.b16 %v1908, %v1892
        %v2645 = vpack.c.b16 %v1925, %v1909
        %v2646 = vpack.c.b16 %v1926, %v1910
        %v2647 = vpack.c.b16 %v1927, %v1911
        %v2648 = vpack.c.b16 %v1928, %v1912
        %v2649 = vpack.c.b16 %v1929, %v1913
        %v2650 = vpack.c.b16 %v1930, %v1914
        %v2651 = vpack.c.b16 %v1931, %v1915
        %v2652 = vpack.c.b16 %v1932, %v1916
        %v2653 = vpack.c.b16 %v1933, %v1917
        %v2654 = vpack.c.b16 %v1934, %v1918
        %v2655 = vpack.c.b16 %v1935, %v1919
        %v2656 = vpack.c.b16 %v1936, %v1920
        %v2657 = vpack.c.b16 %v1937, %v1921
        %v2658 = vpack.c.b16 %v1938, %v1922
        %v2659 = vpack.c.b16 %v1939, %v1923
        %v2660 = vpack.c.b16 %v1940, %v1924
        %v2661 = vpack.c.b16 %v1957, %v1941
        %v2662 = vpack.c.b16 %v1958, %v1942
        %v2663 = vpack.c.b16 %v1959, %v1943
        %v2664 = vpack.c.b16 %v1960, %v1944
        %v2665 = vpack.c.b16 %v1961, %v1945
        %v2666 = vpack.c.b16 %v1962, %v1946
        %v2667 = vpack.c.b16 %v1963, %v1947
        %v2668 = vpack.c.b16 %v1964, %v1948
        %v2669 = vpack.c.b16 %v1965, %v1949
        %v2670 = vpack.c.b16 %v1966, %v1950
        %v2671 = vpack.c.b16 %v1967, %v1951
        %v2672 = vpack.c.b16 %v1968, %v1952
        %v2673 = vpack.c.b16 %v1969, %v1953
        %v2674 = vpack.c.b16 %v1970, %v1954
        %v2675 = vpack.c.b16 %v1971, %v1955
        %v2676 = vpack.c.b16 %v1972, %v1956
        %v2677 = vpack.c.b16 %v1989, %v1973
        %v2678 = vpack.c.b16 %v1990, %v1974
        %v2679 = vpack.c.b16 %v1991, %v1975
        %v2680 = vpack.c.b16 %v1992, %v1976
        %v2681 = vpack.c.b16 %v1993, %v1977
        %v2682 = vpack.c.b16 %v1994, %v1978
        %v2683 = vpack.c.b16 %v1995, %v1979
        %v2684 = vpack.c.b16 %v1996, %v1980
        %v2685 = vpack.c.b16 %v1997, %v1981
        %v2686 = vpack.c.b16 %v1998, %v1982
        %v2687 = vpack.c.b16 %v1999, %v1983
        %v2688 = vpack.c.b16 %v2000, %v1984
        %v2689 = vpack.c.b16 %v2001, %v1985
        %v2690 = vpack.c.b16 %v2002, %v1986
        %v2691 = vpack.c.b16 %v2003, %v1987
        %v2692 = vpack.c.b16 %v2004, %v1988
        %v2693 = vpack.c.b16 %v2021, %v2005
        %v2694 = vpack.c.b16 %v2022, %v2006
        %v2695 = vpack.c.b16 %v2023, %v2007
        %v2696 = vpack.c.b16 %v2024, %v2008
        %v2697 = vpack.c.b16 %v2025, %v2009
        %v2698 = vpack.c.b16 %v2026, %v2010
        %v2699 = vpack.c.b16 %v2027, %v2011
        %v2700 = vpack.c.b16 %v2028, %v2012
        %v2701 = vpack.c.b16 %v2029, %v2013
        %v2702 = vpack.c.b16 %v2030, %v2014
        %v2703 = vpack.c.b16 %v2031, %v2015
        %v2704 = vpack.c.b16 %v2032, %v2016
        %v2705 = vpack.c.b16 %v2033, %v2017
        %v2706 = vpack.c.b16 %v2034, %v2018
        %v2707 = vpack.c.b16 %v2035, %v2019
        %v2708 = vpack.c.b16 %v2036, %v2020
        %v2709 = vpack.c.b16 %v2053, %v2037
        %v2710 = vpack.c.b16 %v2054, %v2038
        %v2711 = vpack.c.b16 %v2055, %v2039
        %v2712 = vpack.c.b16 %v2056, %v2040
        %v2713 = vpack.c.b16 %v2057, %v2041
        %v2714 = vpack.c.b16 %v2058, %v2042
        %v2715 = vpack.c.b16 %v2059, %v2043
        %v2716 = vpack.c.b16 %v2060, %v2044
        %v2717 = vpack.c.b16 %v2061, %v2045
        %v2718 = vpack.c.b16 %v2062, %v2046
        %v2719 = vpack.c.b16 %v2063, %v2047
        %v2720 = vpack.c.b16 %v2064, %v2048
        %v2721 = vpack.c.b16 %v2065, %v2049
        %v2722 = vpack.c.b16 %v2066, %v2050
        %v2723 = vpack.c.b16 %v2067, %v2051
        %v2724 = vpack.c.b16 %v2068, %v2052
        %v2725 = vpack.c.b16 %v2085, %v2069
        %v2726 = vpack.c.b16 %v2086, %v2070
        %v2727 = vpack.c.b16 %v2087, %v2071
        %v2728 = vpack.c.b16 %v2088, %v2072
        %v2729 = vpack.c.b16 %v2089, %v2073
        %v2730 = vpack.c.b16 %v2090, %v2074
        %v2731 = vpack.c.b16 %v2091, %v2075
        %v2732 = vpack.c.b16 %v2092, %v2076
        %v2733 = vpack.c.b16 %v2093, %v2077
        %v2734 = vpack.c.b16 %v2094, %v2078
        %v2735 = vpack.c.b16 %v2095, %v2079
        %v2736 = vpack.c.b16 %v2096, %v2080
        %v2737 = vpack.c.b16 %v2097, %v2081
        %v2738 = vpack.c.b16 %v2098, %v2082
        %v2739 = vpack.c.b16 %v2099, %v2083
        %v2740 = vpack.c.b16 %v2100, %v2084
        %v2741 = vpack.c.b16 %v2117, %v2101
        %v2742 = vpack.c.b16 %v2118, %v2102
        %v2743 = vpack.c.b16 %v2119, %v2103
        %v2744 = vpack.c.b16 %v2120, %v2104
        %v2745 = vpack.c.b16 %v2121, %v2105
        %v2746 = vpack.c.b16 %v2122, %v2106
        %v2747 = vpack.c.b16 %v2123, %v2107
        %v2748 = vpack.c.b16 %v2124, %v2108
        %v2749 = vpack.c.b16 %v2125, %v2109
        %v2750 = vpack.c.b16 %v2126, %v2110
        %v2751 = vpack.c.b16 %v2127, %v2111
        %v2752 = vpack.c.b16 %v2128, %v2112
        %v2753 = vpack.c.b16 %v2129, %v2113
        %v2754 = vpack.c.b16 %v2130, %v2114
        %v2755 = vpack.c.b16 %v2131, %v2115
        %v2756 = vpack.c.b16 %v2132, %v2116
        %v2757 = vpack.c.b16 %v2149, %v2133
        %v2758 = vpack.c.b16 %v2150, %v2134
        %v2759 = vpack.c.b16 %v2151, %v2135
        %v2760 = vpack.c.b16 %v2152, %v2136
        %v2761 = vpack.c.b16 %v2153, %v2137
        %v2762 = vpack.c.b16 %v2154, %v2138
        %v2763 = vpack.c.b16 %v2155, %v2139
        %v2764 = vpack.c.b16 %v2156, %v2140
        %v2765 = vpack.c.b16 %v2157, %v2141
        %v2766 = vpack.c.b16 %v2158, %v2142
        %v2767 = vpack.c.b16 %v2159, %v2143
        %v2768 = vpack.c.b16 %v2160, %v2144
        %v2769 = vpack.c.b16 %v2161, %v2145
        %v2770 = vpack.c.b16 %v2162, %v2146
        %v2771 = vpack.c.b16 %v2163, %v2147
        %v2772 = vpack.c.b16 %v2164, %v2148
        %v2773 = vpack.c.b16 %v2181, %v2165
        %v2774 = vpack.c.b16 %v2182, %v2166
        %v2775 = vpack.c.b16 %v2183, %v2167
        %v2776 = vpack.c.b16 %v2184, %v2168
        %v2777 = vpack.c.b16 %v2185, %v2169
        %v2778 = vpack.c.b16 %v2186, %v2170
        %v2779 = vpack.c.b16 %v2187, %v2171
        %v2780 = vpack.c.b16 %v2188, %v2172
        %v2781 = vpack.c.b16 %v2189, %v2173
        %v2782 = vpack.c.b16 %v2190, %v2174
        %v2783 = vpack.c.b16 %v2191, %v2175
        %v2784 = vpack.c.b16 %v2192, %v2176
        %v2785 = vpack.c.b16 %v2193, %v2177
        %v2786 = vpack.c.b16 %v2194, %v2178
        %v2787 = vpack.c.b16 %v2195, %v2179
        %v2788 = vpack.c.b16 %v2196, %v2180
        %v2789 = vpack.c.b16 %v2213, %v2197
        %v2790 = vpack.c.b16 %v2214, %v2198
        %v2791 = vpack.c.b16 %v2215, %v2199
        %v2792 = vpack.c.b16 %v2216, %v2200
        %v2793 = vpack.c.b16 %v2217, %v2201
        %v2794 = vpack.c.b16 %v2218, %v2202
        %v2795 = vpack.c.b16 %v2219, %v2203
        %v2796 = vpack.c.b16 %v2220, %v2204
        %v2797 = vpack.c.b16 %v2221, %v2205
        %v2798 = vpack.c.b16 %v2222, %v2206
        %v2799 = vpack.c.b16 %v2223, %v2207
        %v2800 = vpack.c.b16 %v2224, %v2208
        %v2801 = vpack.c.b16 %v2225, %v2209
        %v2802 = vpack.c.b16 %v2226, %v2210
        %v2803 = vpack.c.b16 %v2227, %v2211
        %v2804 = vpack.c.b16 %v2228, %v2212
        %v2805 = vpack.c.b16 %v2245, %v2229
        %v2806 = vpack.c.b16 %v2246, %v2230
        %v2807 = vpack.c.b16 %v2247, %v2231
        %v2808 = vpack.c.b16 %v2248, %v2232
        %v2809 = vpack.c.b16 %v2249, %v2233
        %v2810 = vpack.c.b16 %v2250, %v2234
        %v2811 = vpack.c.b16 %v2251, %v2235
        %v2812 = vpack.c.b16 %v2252, %v2236
        %v2813 = vpack.c.b16 %v2253, %v2237
        %v2814 = vpack.c.b16 %v2254, %v2238
        %v2815 = vpack.c.b16 %v2255, %v2239
        %v2816 = vpack.c.b16 %v2256, %v2240
        %v2817 = vpack.c.b16 %v2257, %v2241
        %v2818 = vpack.c.b16 %v2258, %v2242
        %v2819 = vpack.c.b16 %v2259, %v2243
        %v2820 = vpack.c.b16 %v2260, %v2244
        %v2821 = vpack.c.b16 %v2277, %v2261
        %v2822 = vpack.c.b16 %v2278, %v2262
        %v2823 = vpack.c.b16 %v2279, %v2263
        %v2824 = vpack.c.b16 %v2280, %v2264
        %v2825 = vpack.c.b16 %v2281, %v2265
        %v2826 = vpack.c.b16 %v2282, %v2266
        %v2827 = vpack.c.b16 %v2283, %v2267
        %v2828 = vpack.c.b16 %v2284, %v2268
        %v2829 = vpack.c.b16 %v2285, %v2269
        %v2830 = vpack.c.b16 %v2286, %v2270
        %v2831 = vpack.c.b16 %v2287, %v2271
        %v2832 = vpack.c.b16 %v2288, %v2272
        %v2833 = vpack.c.b16 %v2289, %v2273
        %v2834 = vpack.c.b16 %v2290, %v2274
        %v2835 = vpack.c.b16 %v2291, %v2275
        %v2836 = vpack.c.b16 %v2292, %v2276
        %v2837 = vpack.c.b16 %v2309, %v2293
        %v2838 = vpack.c.b16 %v2310, %v2294
        %v2839 = vpack.c.b16 %v2311, %v2295
        %v2840 = vpack.c.b16 %v2312, %v2296
        %v2841 = vpack.c.b16 %v2313, %v2297
        %v2842 = vpack.c.b16 %v2314, %v2298
        %v2843 = vpack.c.b16 %v2315, %v2299
        %v2844 = vpack.c.b16 %v2316, %v2300
        %v2845 = vpack.c.b16 %v2317, %v2301
        %v2846 = vpack.c.b16 %v2318, %v2302
        %v2847 = vpack.c.b16 %v2319, %v2303
        %v2848 = vpack.c.b16 %v2320, %v2304
        %v2849 = vpack.c.b16 %v2321, %v2305
        %v2850 = vpack.c.b16 %v2322, %v2306
        %v2851 = vpack.c.b16 %v2323, %v2307
        %v2852 = vpack.c.b16 %v2324, %v2308
        %v2853 = vpack.c.b16 %v2341, %v2325
        %v2854 = vpack.c.b16 %v2342, %v2326
        %v2855 = vpack.c.b16 %v2343, %v2327
        %v2856 = vpack.c.b16 %v2344, %v2328
        %v2857 = vpack.c.b16 %v2345, %v2329
        %v2858 = vpack.c.b16 %v2346, %v2330
        %v2859 = vpack.c.b16 %v2347, %v2331
        %v2860 = vpack.c.b16 %v2348, %v2332
        %v2861 = vpack.c.b16 %v2349, %v2333
        %v2862 = vpack.c.b16 %v2350, %v2334
        %v2863 = vpack.c.b16 %v2351, %v2335
        %v2864 = vpack.c.b16 %v2352, %v2336
        %v2865 = vpack.c.b16 %v2353, %v2337
        %v2866 = vpack.c.b16 %v2354, %v2338
        %v2867 = vpack.c.b16 %v2355, %v2339
        %v2868 = vpack.c.b16 %v2356, %v2340
        %3381 = vmatprep.subr.bf16.mxu0 %v2358
        %3382 = vmatpush1.bf16.msra.mxu0 %v2357
        %3383 = vmatprep.subr.bf16.mxu0 %v2374
        %3384 = vmatpush1.bf16.msra.mxu0 %v2373
        %3385 = vmatprep.subr.bf16.mxu0 %v2390
        %3386 = vmatpush1.bf16.msra.mxu0 %v2389
        %3387 = vmatprep.subr.bf16.mxu0 %v2406
        %3388 = vmatpush1.bf16.msra.mxu0 %v2405
        %3389 = vmatprep.subr.bf16.mxu0 %v2422
        %3390 = vmatpush1.bf16.msra.mxu0 %v2421
        %3391 = vmatprep.subr.bf16.mxu0 %v2438
        %3392 = vmatpush1.bf16.msra.mxu0 %v2437
        %3393 = vmatprep.subr.bf16.mxu0 %v2454
        %3394 = vmatpush1.bf16.msra.mxu0 %v2453
        %3395 = vmatprep.subr.bf16.mxu0 %v2470
        %3396 = vmatpush1.bf16.msra.mxu0 %v2469
        %3397 = vmatprep.subr.bf16.mxu0 %v2486
        %3398 = vmatpush1.bf16.msra.mxu0 %v2485
        %3399 = vmatprep.subr.bf16.mxu0 %v2502
        %3400 = vmatpush1.bf16.msra.mxu0 %v2501
        %3401 = vmatprep.subr.bf16.mxu0 %v2518
        %3402 = vmatpush1.bf16.msra.mxu0 %v2517
        %3403 = vmatprep.subr.bf16.mxu0 %v2534
        %3404 = vmatpush1.bf16.msra.mxu0 %v2533
        %3405 = vmatprep.subr.bf16.mxu0 %v2550
        %3406 = vmatpush1.bf16.msra.mxu0 %v2549
        %3407 = vmatprep.subr.bf16.mxu0 %v2566
        %3408 = vmatpush1.bf16.msra.mxu0 %v2565
        %3409 = vmatprep.subr.bf16.mxu0 %v2582
        %3410 = vmatpush1.bf16.msra.mxu0 %v2581
        %3411 = vmatprep.subr.bf16.mxu0 %v2598
        %3412 = vmatpush1.bf16.msra.mxu0 %v2597
        %3413 = vmatprep.mubr.bf16.mxu0 %v814
        %3414 = vmatmul.mubr.bf16.gmra.mrb[0].mxu0 %v807
        %v3415 = vpop.f32.mrb[0].mxu0
        %v3416 = vadd.f32 0.0, %v3415
        %v3417 = vpop.f32.mrb[0].mxu0
        %v3418 = vadd.f32 0.0, %v3417
        %v3419 = vpop.f32.mrb[0].mxu0
        %v3420 = vpop.f32.mrb[0].mxu0
        %3421 = vdwg.mxu0
        %3422 = vmatprep.subr.bf16.mxu0 %v2614
        %3423 = vmatpush1.bf16.msra.mxu0 %v2613
        %3424 = vmatprep.subr.bf16.mxu0 %v2630
        %3425 = vmatpush1.bf16.msra.mxu0 %v2629
        %3426 = vmatprep.subr.bf16.mxu0 %v2646
        %3427 = vmatpush1.bf16.msra.mxu0 %v2645
        %3428 = vmatprep.subr.bf16.mxu0 %v2662
        %3429 = vmatpush1.bf16.msra.mxu0 %v2661
        %3430 = vmatprep.subr.bf16.mxu0 %v2678
        %3431 = vmatpush1.bf16.msra.mxu0 %v2677
        %3432 = vmatprep.subr.bf16.mxu0 %v2694
        %3433 = vmatpush1.bf16.msra.mxu0 %v2693
        %3434 = vmatprep.subr.bf16.mxu0 %v2710
        %3435 = vmatpush1.bf16.msra.mxu0 %v2709
        %3436 = vmatprep.subr.bf16.mxu0 %v2726
        %3437 = vmatpush1.bf16.msra.mxu0 %v2725
        %3438 = vmatprep.subr.bf16.mxu0 %v2742
        %3439 = vmatpush1.bf16.msra.mxu0 %v2741
        %3440 = vmatprep.subr.bf16.mxu0 %v2758
        %3441 = vmatpush1.bf16.msra.mxu0 %v2757
        %3442 = vmatprep.subr.bf16.mxu0 %v2774
        %3443 = vmatpush1.bf16.msra.mxu0 %v2773
        %3444 = vmatprep.subr.bf16.mxu0 %v2790
        %3445 = vmatpush1.bf16.msra.mxu0 %v2789
        %3446 = vmatprep.subr.bf16.mxu0 %v2806
        %3447 = vmatpush1.bf16.msra.mxu0 %v2805
        %3448 = vmatprep.subr.bf16.mxu0 %v2822
        %3449 = vmatpush1.bf16.msra.mxu0 %v2821
        %3450 = vmatprep.subr.bf16.mxu0 %v2838
        %3451 = vmatpush1.bf16.msra.mxu0 %v2837
        %3452 = vmatprep.subr.bf16.mxu0 %v2854
        %3453 = vmatpush1.bf16.msra.mxu0 %v2853
        %3454 = vmatprep.mubr.bf16.mxu0 %v816
        %3455 = vmatmul.mubr.bf16.gmra.mrb[0].mxu0 %v815
        %v3456 = vpop.f32.mrb[0].mxu0
        %v3457 = vadd.f32 %v3416, %v3456
        %v3458 = vpop.f32.mrb[0].mxu0
        %v3459 = vadd.f32 %v3418, %v3458
        %v3460 = vpop.f32.mrb[0].mxu0
        %v3461 = vpop.f32.mrb[0].mxu0
        %3462 = vdwg.mxu0
        %3463 = vmatprep.subr.bf16.mxu0 %v2360
        %3464 = vmatpush1.bf16.msra.mxu0 %v2359
        %3465 = vmatprep.subr.bf16.mxu0 %v2376
        %3466 = vmatpush1.bf16.msra.mxu0 %v2375
        %3467 = vmatprep.subr.bf16.mxu0 %v2392
        %3468 = vmatpush1.bf16.msra.mxu0 %v2391
        %3469 = vmatprep.subr.bf16.mxu0 %v2408
        %3470 = vmatpush1.bf16.msra.mxu0 %v2407
        %3471 = vmatprep.subr.bf16.mxu0 %v2424
        %3472 = vmatpush1.bf16.msra.mxu0 %v2423
        %3473 = vmatprep.subr.bf16.mxu0 %v2440
        %3474 = vmatpush1.bf16.msra.mxu0 %v2439
        %3475 = vmatprep.subr.bf16.mxu0 %v2456
        %3476 = vmatpush1.bf16.msra.mxu0 %v2455
        %3477 = vmatprep.subr.bf16.mxu0 %v2472
        %3478 = vmatpush1.bf16.msra.mxu0 %v2471
        %3479 = vmatprep.subr.bf16.mxu0 %v2488
        %3480 = vmatpush1.bf16.msra.mxu0 %v2487
        %3481 = vmatprep.subr.bf16.mxu0 %v2504
        %3482 = vmatpush1.bf16.msra.mxu0 %v2503
        %3483 = vmatprep.subr.bf16.mxu0 %v2520
        %3484 = vmatpush1.bf16.msra.mxu0 %v2519
        %3485 = vmatprep.subr.bf16.mxu0 %v2536
        %3486 = vmatpush1.bf16.msra.mxu0 %v2535
        %3487 = vmatprep.subr.bf16.mxu0 %v2552
        %3488 = vmatpush1.bf16.msra.mxu0 %v2551
        %3489 = vmatprep.subr.bf16.mxu0 %v2568
        %3490 = vmatpush1.bf16.msra.mxu0 %v2567
        %3491 = vmatprep.subr.bf16.mxu0 %v2584
        %3492 = vmatpush1.bf16.msra.mxu0 %v2583
        %3493 = vmatprep.subr.bf16.mxu0 %v2600
        %3494 = vmatpush1.bf16.msra.mxu0 %v2599
        %3495 = vmatprep.mubr.bf16.mxu0 %v814
        %3496 = vmatmul.mubr.bf16.gmra.mrb[0].mxu0 %v807
        %v3497 = vpop.f32.mrb[0].mxu0
        %v3498 = vadd.f32 0.0, %v3497
        %v3499 = vpop.f32.mrb[0].mxu0
        %v3500 = vadd.f32 0.0, %v3499
        %v3501 = vpop.f32.mrb[0].mxu0
        %v3502 = vpop.f32.mrb[0].mxu0
        %3503 = vdwg.mxu0
        %3504 = vmatprep.subr.bf16.mxu0 %v2616
        %3505 = vmatpush1.bf16.msra.mxu0 %v2615
        %3506 = vmatprep.subr.bf16.mxu0 %v2632
        %3507 = vmatpush1.bf16.msra.mxu0 %v2631
        %3508 = vmatprep.subr.bf16.mxu0 %v2648
        %3509 = vmatpush1.bf16.msra.mxu0 %v2647
        %3510 = vmatprep.subr.bf16.mxu0 %v2664
        %3511 = vmatpush1.bf16.msra.mxu0 %v2663
        %3512 = vmatprep.subr.bf16.mxu0 %v2680
        %3513 = vmatpush1.bf16.msra.mxu0 %v2679
        %3514 = vmatprep.subr.bf16.mxu0 %v2696
        %3515 = vmatpush1.bf16.msra.mxu0 %v2695
        %3516 = vmatprep.subr.bf16.mxu0 %v2712
        %3517 = vmatpush1.bf16.msra.mxu0 %v2711
        %3518 = vmatprep.subr.bf16.mxu0 %v2728
        %3519 = vmatpush1.bf16.msra.mxu0 %v2727
        %3520 = vmatprep.subr.bf16.mxu0 %v2744
        %3521 = vmatpush1.bf16.msra.mxu0 %v2743
        %3522 = vmatprep.subr.bf16.mxu0 %v2760
        %3523 = vmatpush1.bf16.msra.mxu0 %v2759
        %3524 = vmatprep.subr.bf16.mxu0 %v2776
        %3525 = vmatpush1.bf16.msra.mxu0 %v2775
        %3526 = vmatprep.subr.bf16.mxu0 %v2792
        %3527 = vmatpush1.bf16.msra.mxu0 %v2791
        %3528 = vmatprep.subr.bf16.mxu0 %v2808
        %3529 = vmatpush1.bf16.msra.mxu0 %v2807
        %3530 = vmatprep.subr.bf16.mxu0 %v2824
        %3531 = vmatpush1.bf16.msra.mxu0 %v2823
        %3532 = vmatprep.subr.bf16.mxu0 %v2840
        %3533 = vmatpush1.bf16.msra.mxu0 %v2839
        %3534 = vmatprep.subr.bf16.mxu0 %v2856
        %3535 = vmatpush1.bf16.msra.mxu0 %v2855
        %3536 = vmatprep.mubr.bf16.mxu0 %v816
        %3537 = vmatmul.mubr.bf16.gmra.mrb[0].mxu0 %v815
        %v3538 = vpop.f32.mrb[0].mxu0
        %v3539 = vadd.f32 %v3498, %v3538
        %v3540 = vpop.f32.mrb[0].mxu0
        %v3541 = vadd.f32 %v3500, %v3540
        %v3542 = vpop.f32.mrb[0].mxu0
        %v3543 = vpop.f32.mrb[0].mxu0
        %3544 = vdwg.mxu0
        %3545 = vmatprep.subr.bf16.mxu0 %v2362
        %3546 = vmatpush1.bf16.msra.mxu0 %v2361
        %3547 = vmatprep.subr.bf16.mxu0 %v2378
        %3548 = vmatpush1.bf16.msra.mxu0 %v2377
        %3549 = vmatprep.subr.bf16.mxu0 %v2394
        %3550 = vmatpush1.bf16.msra.mxu0 %v2393
        %3551 = vmatprep.subr.bf16.mxu0 %v2410
        %3552 = vmatpush1.bf16.msra.mxu0 %v2409
        %3553 = vmatprep.subr.bf16.mxu0 %v2426
        %3554 = vmatpush1.bf16.msra.mxu0 %v2425
        %3555 = vmatprep.subr.bf16.mxu0 %v2442
        %3556 = vmatpush1.bf16.msra.mxu0 %v2441
        %3557 = vmatprep.subr.bf16.mxu0 %v2458
        %3558 = vmatpush1.bf16.msra.mxu0 %v2457
        %3559 = vmatprep.subr.bf16.mxu0 %v2474
        %3560 = vmatpush1.bf16.msra.mxu0 %v2473
        %3561 = vmatprep.subr.bf16.mxu0 %v2490
        %3562 = vmatpush1.bf16.msra.mxu0 %v2489
        %3563 = vmatprep.subr.bf16.mxu0 %v2506
        %3564 = vmatpush1.bf16.msra.mxu0 %v2505
        %3565 = vmatprep.subr.bf16.mxu0 %v2522
        %3566 = vmatpush1.bf16.msra.mxu0 %v2521
        %3567 = vmatprep.subr.bf16.mxu0 %v2538
        %3568 = vmatpush1.bf16.msra.mxu0 %v2537
        %3569 = vmatprep.subr.bf16.mxu0 %v2554
        %3570 = vmatpush1.bf16.msra.mxu0 %v2553
        %3571 = vmatprep.subr.bf16.mxu0 %v2570
        %3572 = vmatpush1.bf16.msra.mxu0 %v2569
        %3573 = vmatprep.subr.bf16.mxu0 %v2586
        %3574 = vmatpush1.bf16.msra.mxu0 %v2585
        %3575 = vmatprep.subr.bf16.mxu0 %v2602
        %3576 = vmatpush1.bf16.msra.mxu0 %v2601
        %3577 = vmatprep.mubr.bf16.mxu0 %v814
        %3578 = vmatmul.mubr.bf16.gmra.mrb[0].mxu0 %v807
        %v3579 = vpop.f32.mrb[0].mxu0
        %v3580 = vadd.f32 0.0, %v3579
        %v3581 = vpop.f32.mrb[0].mxu0
        %v3582 = vadd.f32 0.0, %v3581
        %v3583 = vpop.f32.mrb[0].mxu0
        %v3584 = vpop.f32.mrb[0].mxu0
        %3585 = vdwg.mxu0
        %3586 = vmatprep.subr.bf16.mxu0 %v2618
        %3587 = vmatpush1.bf16.msra.mxu0 %v2617
        %3588 = vmatprep.subr.bf16.mxu0 %v2634
        %3589 = vmatpush1.bf16.msra.mxu0 %v2633
        %3590 = vmatprep.subr.bf16.mxu0 %v2650
        %3591 = vmatpush1.bf16.msra.mxu0 %v2649
        %3592 = vmatprep.subr.bf16.mxu0 %v2666
        %3593 = vmatpush1.bf16.msra.mxu0 %v2665
        %3594 = vmatprep.subr.bf16.mxu0 %v2682
        %3595 = vmatpush1.bf16.msra.mxu0 %v2681
        %3596 = vmatprep.subr.bf16.mxu0 %v2698
        %3597 = vmatpush1.bf16.msra.mxu0 %v2697
        %3598 = vmatprep.subr.bf16.mxu0 %v2714
        %3599 = vmatpush1.bf16.msra.mxu0 %v2713
        %3600 = vmatprep.subr.bf16.mxu0 %v2730
        %3601 = vmatpush1.bf16.msra.mxu0 %v2729
        %3602 = vmatprep.subr.bf16.mxu0 %v2746
        %3603 = vmatpush1.bf16.msra.mxu0 %v2745
        %3604 = vmatprep.subr.bf16.mxu0 %v2762
        %3605 = vmatpush1.bf16.msra.mxu0 %v2761
        %3606 = vmatprep.subr.bf16.mxu0 %v2778
        %3607 = vmatpush1.bf16.msra.mxu0 %v2777
        %3608 = vmatprep.subr.bf16.mxu0 %v2794
        %3609 = vmatpush1.bf16.msra.mxu0 %v2793
        %3610 = vmatprep.subr.bf16.mxu0 %v2810
        %3611 = vmatpush1.bf16.msra.mxu0 %v2809
        %3612 = vmatprep.subr.bf16.mxu0 %v2826
        %3613 = vmatpush1.bf16.msra.mxu0 %v2825
        %3614 = vmatprep.subr.bf16.mxu0 %v2842
        %3615 = vmatpush1.bf16.msra.mxu0 %v2841
        %3616 = vmatprep.subr.bf16.mxu0 %v2858
        %3617 = vmatpush1.bf16.msra.mxu0 %v2857
        %3618 = vmatprep.mubr.bf16.mxu0 %v816
        %3619 = vmatmul.mubr.bf16.gmra.mrb[0].mxu0 %v815
        %v3620 = vpop.f32.mrb[0].mxu0
        %v3621 = vadd.f32 %v3580, %v3620
        %v3622 = vpop.f32.mrb[0].mxu0
        %v3623 = vadd.f32 %v3582, %v3622
        %v3624 = vpop.f32.mrb[0].mxu0
        %v3625 = vpop.f32.mrb[0].mxu0
        %3626 = vdwg.mxu0
        %3627 = vmatprep.subr.bf16.mxu0 %v2364
        %3628 = vmatpush1.bf16.msra.mxu0 %v2363
        %3629 = vmatprep.subr.bf16.mxu0 %v2380
        %3630 = vmatpush1.bf16.msra.mxu0 %v2379
        %3631 = vmatprep.subr.bf16.mxu0 %v2396
        %3632 = vmatpush1.bf16.msra.mxu0 %v2395
        %3633 = vmatprep.subr.bf16.mxu0 %v2412
        %3634 = vmatpush1.bf16.msra.mxu0 %v2411
        %3635 = vmatprep.subr.bf16.mxu0 %v2428
        %3636 = vmatpush1.bf16.msra.mxu0 %v2427
        %3637 = vmatprep.subr.bf16.mxu0 %v2444
        %3638 = vmatpush1.bf16.msra.mxu0 %v2443
        %3639 = vmatprep.subr.bf16.mxu0 %v2460
        %3640 = vmatpush1.bf16.msra.mxu0 %v2459
        %3641 = vmatprep.subr.bf16.mxu0 %v2476
        %3642 = vmatpush1.bf16.msra.mxu0 %v2475
        %3643 = vmatprep.subr.bf16.mxu0 %v2492
        %3644 = vmatpush1.bf16.msra.mxu0 %v2491
        %3645 = vmatprep.subr.bf16.mxu0 %v2508
        %3646 = vmatpush1.bf16.msra.mxu0 %v2507
        %3647 = vmatprep.subr.bf16.mxu0 %v2524
        %3648 = vmatpush1.bf16.msra.mxu0 %v2523
        %3649 = vmatprep.subr.bf16.mxu0 %v2540
        %3650 = vmatpush1.bf16.msra.mxu0 %v2539
        %3651 = vmatprep.subr.bf16.mxu0 %v2556
        %3652 = vmatpush1.bf16.msra.mxu0 %v2555
        %3653 = vmatprep.subr.bf16.mxu0 %v2572
        %3654 = vmatpush1.bf16.msra.mxu0 %v2571
        %3655 = vmatprep.subr.bf16.mxu0 %v2588
        %3656 = vmatpush1.bf16.msra.mxu0 %v2587
        %3657 = vmatprep.subr.bf16.mxu0 %v2604
        %3658 = vmatpush1.bf16.msra.mxu0 %v2603
        %3659 = vmatprep.mubr.bf16.mxu0 %v814
        %3660 = vmatmul.mubr.bf16.gmra.mrb[0].mxu0 %v807
        %v3661 = vpop.f32.mrb[0].mxu0
        %v3662 = vadd.f32 0.0, %v3661
        %v3663 = vpop.f32.mrb[0].mxu0
        %v3664 = vadd.f32 0.0, %v3663
        %v3665 = vpop.f32.mrb[0].mxu0
        %v3666 = vpop.f32.mrb[0].mxu0
        %3667 = vdwg.mxu0
        %3668 = vmatprep.subr.bf16.mxu0 %v2620
        %3669 = vmatpush1.bf16.msra.mxu0 %v2619
        %3670 = vmatprep.subr.bf16.mxu0 %v2636
        %3671 = vmatpush1.bf16.msra.mxu0 %v2635
        %3672 = vmatprep.subr.bf16.mxu0 %v2652
        %3673 = vmatpush1.bf16.msra.mxu0 %v2651
        %3674 = vmatprep.subr.bf16.mxu0 %v2668
        %3675 = vmatpush1.bf16.msra.mxu0 %v2667
        %3676 = vmatprep.subr.bf16.mxu0 %v2684
        %3677 = vmatpush1.bf16.msra.mxu0 %v2683
        %3678 = vmatprep.subr.bf16.mxu0 %v2700
        %3679 = vmatpush1.bf16.msra.mxu0 %v2699
        %3680 = vmatprep.subr.bf16.mxu0 %v2716
        %3681 = vmatpush1.bf16.msra.mxu0 %v2715
        %3682 = vmatprep.subr.bf16.mxu0 %v2732
        %3683 = vmatpush1.bf16.msra.mxu0 %v2731
        %3684 = vmatprep.subr.bf16.mxu0 %v2748
        %3685 = vmatpush1.bf16.msra.mxu0 %v2747
        %3686 = vmatprep.subr.bf16.mxu0 %v2764
        %3687 = vmatpush1.bf16.msra.mxu0 %v2763
        %3688 = vmatprep.subr.bf16.mxu0 %v2780
        %3689 = vmatpush1.bf16.msra.mxu0 %v2779
        %3690 = vmatprep.subr.bf16.mxu0 %v2796
        %3691 = vmatpush1.bf16.msra.mxu0 %v2795
        %3692 = vmatprep.subr.bf16.mxu0 %v2812
        %3693 = vmatpush1.bf16.msra.mxu0 %v2811
        %3694 = vmatprep.subr.bf16.mxu0 %v2828
        %3695 = vmatpush1.bf16.msra.mxu0 %v2827
        %3696 = vmatprep.subr.bf16.mxu0 %v2844
        %3697 = vmatpush1.bf16.msra.mxu0 %v2843
        %3698 = vmatprep.subr.bf16.mxu0 %v2860
        %3699 = vmatpush1.bf16.msra.mxu0 %v2859
        %3700 = vmatprep.mubr.bf16.mxu0 %v816
        %3701 = vmatmul.mubr.bf16.gmra.mrb[0].mxu0 %v815
        %v3702 = vpop.f32.mrb[0].mxu0
        %v3703 = vadd.f32 %v3662, %v3702
        %v3704 = vpop.f32.mrb[0].mxu0
        %v3705 = vadd.f32 %v3664, %v3704
        %v3706 = vpop.f32.mrb[0].mxu0
        %v3707 = vpop.f32.mrb[0].mxu0
        %3708 = vdwg.mxu0
        %3709 = vmatprep.subr.bf16.mxu0 %v2366
        %3710 = vmatpush1.bf16.msra.mxu0 %v2365
        %3711 = vmatprep.subr.bf16.mxu0 %v2382
        %3712 = vmatpush1.bf16.msra.mxu0 %v2381
        %3713 = vmatprep.subr.bf16.mxu0 %v2398
        %3714 = vmatpush1.bf16.msra.mxu0 %v2397
        %3715 = vmatprep.subr.bf16.mxu0 %v2414
        %3716 = vmatpush1.bf16.msra.mxu0 %v2413
        %3717 = vmatprep.subr.bf16.mxu0 %v2430
        %3718 = vmatpush1.bf16.msra.mxu0 %v2429
        %3719 = vmatprep.subr.bf16.mxu0 %v2446
        %3720 = vmatpush1.bf16.msra.mxu0 %v2445
        %3721 = vmatprep.subr.bf16.mxu0 %v2462
        %3722 = vmatpush1.bf16.msra.mxu0 %v2461
        %3723 = vmatprep.subr.bf16.mxu0 %v2478
        %3724 = vmatpush1.bf16.msra.mxu0 %v2477
        %3725 = vmatprep.subr.bf16.mxu0 %v2494
        %3726 = vmatpush1.bf16.msra.mxu0 %v2493
        %3727 = vmatprep.subr.bf16.mxu0 %v2510
        %3728 = vmatpush1.bf16.msra.mxu0 %v2509
        %3729 = vmatprep.subr.bf16.mxu0 %v2526
        %3730 = vmatpush1.bf16.msra.mxu0 %v2525
        %3731 = vmatprep.subr.bf16.mxu0 %v2542
        %3732 = vmatpush1.bf16.msra.mxu0 %v2541
        %3733 = vmatprep.subr.bf16.mxu0 %v2558
        %3734 = vmatpush1.bf16.msra.mxu0 %v2557
        %3735 = vmatprep.subr.bf16.mxu0 %v2574
        %3736 = vmatpush1.bf16.msra.mxu0 %v2573
        %3737 = vmatprep.subr.bf16.mxu0 %v2590
        %3738 = vmatpush1.bf16.msra.mxu0 %v2589
        %3739 = vmatprep.subr.bf16.mxu0 %v2606
        %3740 = vmatpush1.bf16.msra.mxu0 %v2605
        %3741 = vmatprep.mubr.bf16.mxu0 %v814
        %3742 = vmatmul.mubr.bf16.gmra.mrb[0].mxu0 %v807
        %v3743 = vpop.f32.mrb[0].mxu0
        %v3744 = vadd.f32 0.0, %v3743
        %v3745 = vpop.f32.mrb[0].mxu0
        %v3746 = vadd.f32 0.0, %v3745
        %v3747 = vpop.f32.mrb[0].mxu0
        %v3748 = vpop.f32.mrb[0].mxu0
        %3749 = vdwg.mxu0
        %3750 = vmatprep.subr.bf16.mxu0 %v2622
        %3751 = vmatpush1.bf16.msra.mxu0 %v2621
        %3752 = vmatprep.subr.bf16.mxu0 %v2638
        %3753 = vmatpush1.bf16.msra.mxu0 %v2637
        %3754 = vmatprep.subr.bf16.mxu0 %v2654
        %3755 = vmatpush1.bf16.msra.mxu0 %v2653
        %3756 = vmatprep.subr.bf16.mxu0 %v2670
        %3757 = vmatpush1.bf16.msra.mxu0 %v2669
        %3758 = vmatprep.subr.bf16.mxu0 %v2686
        %3759 = vmatpush1.bf16.msra.mxu0 %v2685
        %3760 = vmatprep.subr.bf16.mxu0 %v2702
        %3761 = vmatpush1.bf16.msra.mxu0 %v2701
        %3762 = vmatprep.subr.bf16.mxu0 %v2718
        %3763 = vmatpush1.bf16.msra.mxu0 %v2717
        %3764 = vmatprep.subr.bf16.mxu0 %v2734
        %3765 = vmatpush1.bf16.msra.mxu0 %v2733
        %3766 = vmatprep.subr.bf16.mxu0 %v2750
        %3767 = vmatpush1.bf16.msra.mxu0 %v2749
        %3768 = vmatprep.subr.bf16.mxu0 %v2766
        %3769 = vmatpush1.bf16.msra.mxu0 %v2765
        %3770 = vmatprep.subr.bf16.mxu0 %v2782
        %3771 = vmatpush1.bf16.msra.mxu0 %v2781
        %3772 = vmatprep.subr.bf16.mxu0 %v2798
        %3773 = vmatpush1.bf16.msra.mxu0 %v2797
        %3774 = vmatprep.subr.bf16.mxu0 %v2814
        %3775 = vmatpush1.bf16.msra.mxu0 %v2813
        %3776 = vmatprep.subr.bf16.mxu0 %v2830
        %3777 = vmatpush1.bf16.msra.mxu0 %v2829
        %3778 = vmatprep.subr.bf16.mxu0 %v2846
        %3779 = vmatpush1.bf16.msra.mxu0 %v2845
        %3780 = vmatprep.subr.bf16.mxu0 %v2862
        %3781 = vmatpush1.bf16.msra.mxu0 %v2861
        %3782 = vmatprep.mubr.bf16.mxu0 %v816
        %3783 = vmatmul.mubr.bf16.gmra.mrb[0].mxu0 %v815
        %v3784 = vpop.f32.mrb[0].mxu0
        %v3785 = vadd.f32 %v3744, %v3784
        %v3786 = vpop.f32.mrb[0].mxu0
        %v3787 = vadd.f32 %v3746, %v3786
        %v3788 = vpop.f32.mrb[0].mxu0
        %v3789 = vpop.f32.mrb[0].mxu0
        %3790 = vdwg.mxu0
        %3791 = vmatprep.subr.bf16.mxu0 %v2368
        %3792 = vmatpush1.bf16.msra.mxu0 %v2367
        %3793 = vmatprep.subr.bf16.mxu0 %v2384
        %3794 = vmatpush1.bf16.msra.mxu0 %v2383
        %3795 = vmatprep.subr.bf16.mxu0 %v2400
        %3796 = vmatpush1.bf16.msra.mxu0 %v2399
        %3797 = vmatprep.subr.bf16.mxu0 %v2416
        %3798 = vmatpush1.bf16.msra.mxu0 %v2415
        %3799 = vmatprep.subr.bf16.mxu0 %v2432
        %3800 = vmatpush1.bf16.msra.mxu0 %v2431
        %3801 = vmatprep.subr.bf16.mxu0 %v2448
        %3802 = vmatpush1.bf16.msra.mxu0 %v2447
        %3803 = vmatprep.subr.bf16.mxu0 %v2464
        %3804 = vmatpush1.bf16.msra.mxu0 %v2463
        %3805 = vmatprep.subr.bf16.mxu0 %v2480
        %3806 = vmatpush1.bf16.msra.mxu0 %v2479
        %3807 = vmatprep.subr.bf16.mxu0 %v2496
        %3808 = vmatpush1.bf16.msra.mxu0 %v2495
        %3809 = vmatprep.subr.bf16.mxu0 %v2512
        %3810 = vmatpush1.bf16.msra.mxu0 %v2511
        %3811 = vmatprep.subr.bf16.mxu0 %v2528
        %3812 = vmatpush1.bf16.msra.mxu0 %v2527
        %3813 = vmatprep.subr.bf16.mxu0 %v2544
        %3814 = vmatpush1.bf16.msra.mxu0 %v2543
        %3815 = vmatprep.subr.bf16.mxu0 %v2560
        %3816 = vmatpush1.bf16.msra.mxu0 %v2559
        %3817 = vmatprep.subr.bf16.mxu0 %v2576
        %3818 = vmatpush1.bf16.msra.mxu0 %v2575
        %3819 = vmatprep.subr.bf16.mxu0 %v2592
        %3820 = vmatpush1.bf16.msra.mxu0 %v2591
        %3821 = vmatprep.subr.bf16.mxu0 %v2608
        %3822 = vmatpush1.bf16.msra.mxu0 %v2607
        %3823 = vmatprep.mubr.bf16.mxu0 %v814
        %3824 = vmatmul.mubr.bf16.gmra.mrb[0].mxu0 %v807
        %v3825 = vpop.f32.mrb[0].mxu0
        %v3826 = vadd.f32 0.0, %v3825
        %v3827 = vpop.f32.mrb[0].mxu0
        %v3828 = vadd.f32 0.0, %v3827
        %v3829 = vpop.f32.mrb[0].mxu0
        %v3830 = vpop.f32.mrb[0].mxu0
        %3831 = vdwg.mxu0
        %3832 = vmatprep.subr.bf16.mxu0 %v2624
        %3833 = vmatpush1.bf16.msra.mxu0 %v2623
        %3834 = vmatprep.subr.bf16.mxu0 %v2640
        %3835 = vmatpush1.bf16.msra.mxu0 %v2639
        %3836 = vmatprep.subr.bf16.mxu0 %v2656
        %3837 = vmatpush1.bf16.msra.mxu0 %v2655
        %3838 = vmatprep.subr.bf16.mxu0 %v2672
        %3839 = vmatpush1.bf16.msra.mxu0 %v2671
        %3840 = vmatprep.subr.bf16.mxu0 %v2688
        %3841 = vmatpush1.bf16.msra.mxu0 %v2687
        %3842 = vmatprep.subr.bf16.mxu0 %v2704
        %3843 = vmatpush1.bf16.msra.mxu0 %v2703
        %3844 = vmatprep.subr.bf16.mxu0 %v2720
        %3845 = vmatpush1.bf16.msra.mxu0 %v2719
        %3846 = vmatprep.subr.bf16.mxu0 %v2736
        %3847 = vmatpush1.bf16.msra.mxu0 %v2735
        %3848 = vmatprep.subr.bf16.mxu0 %v2752
        %3849 = vmatpush1.bf16.msra.mxu0 %v2751
        %3850 = vmatprep.subr.bf16.mxu0 %v2768
        %3851 = vmatpush1.bf16.msra.mxu0 %v2767
        %3852 = vmatprep.subr.bf16.mxu0 %v2784
        %3853 = vmatpush1.bf16.msra.mxu0 %v2783
        %3854 = vmatprep.subr.bf16.mxu0 %v2800
        %3855 = vmatpush1.bf16.msra.mxu0 %v2799
        %3856 = vmatprep.subr.bf16.mxu0 %v2816
        %3857 = vmatpush1.bf16.msra.mxu0 %v2815
        %3858 = vmatprep.subr.bf16.mxu0 %v2832
        %3859 = vmatpush1.bf16.msra.mxu0 %v2831
        %3860 = vmatprep.subr.bf16.mxu0 %v2848
        %3861 = vmatpush1.bf16.msra.mxu0 %v2847
        %3862 = vmatprep.subr.bf16.mxu0 %v2864
        %3863 = vmatpush1.bf16.msra.mxu0 %v2863
        %3864 = vmatprep.mubr.bf16.mxu0 %v816
        %3865 = vmatmul.mubr.bf16.gmra.mrb[0].mxu0 %v815
        %v3866 = vpop.f32.mrb[0].mxu0
        %v3867 = vadd.f32 %v3826, %v3866
        %v3868 = vpop.f32.mrb[0].mxu0
        %v3869 = vadd.f32 %v3828, %v3868
        %v3870 = vpop.f32.mrb[0].mxu0
        %v3871 = vpop.f32.mrb[0].mxu0
        %3872 = vdwg.mxu0
        %3873 = vmatprep.subr.bf16.mxu0 %v2370
        %3874 = vmatpush1.bf16.msra.mxu0 %v2369
        %3875 = vmatprep.subr.bf16.mxu0 %v2386
        %3876 = vmatpush1.bf16.msra.mxu0 %v2385
        %3877 = vmatprep.subr.bf16.mxu0 %v2402
        %3878 = vmatpush1.bf16.msra.mxu0 %v2401
        %3879 = vmatprep.subr.bf16.mxu0 %v2418
        %3880 = vmatpush1.bf16.msra.mxu0 %v2417
        %3881 = vmatprep.subr.bf16.mxu0 %v2434
        %3882 = vmatpush1.bf16.msra.mxu0 %v2433
        %3883 = vmatprep.subr.bf16.mxu0 %v2450
        %3884 = vmatpush1.bf16.msra.mxu0 %v2449
        %3885 = vmatprep.subr.bf16.mxu0 %v2466
        %3886 = vmatpush1.bf16.msra.mxu0 %v2465
        %3887 = vmatprep.subr.bf16.mxu0 %v2482
        %3888 = vmatpush1.bf16.msra.mxu0 %v2481
        %3889 = vmatprep.subr.bf16.mxu0 %v2498
        %3890 = vmatpush1.bf16.msra.mxu0 %v2497
        %3891 = vmatprep.subr.bf16.mxu0 %v2514
        %3892 = vmatpush1.bf16.msra.mxu0 %v2513
        %3893 = vmatprep.subr.bf16.mxu0 %v2530
        %3894 = vmatpush1.bf16.msra.mxu0 %v2529
        %3895 = vmatprep.subr.bf16.mxu0 %v2546
        %3896 = vmatpush1.bf16.msra.mxu0 %v2545
        %3897 = vmatprep.subr.bf16.mxu0 %v2562
        %3898 = vmatpush1.bf16.msra.mxu0 %v2561
        %3899 = vmatprep.subr.bf16.mxu0 %v2578
        %3900 = vmatpush1.bf16.msra.mxu0 %v2577
        %3901 = vmatprep.subr.bf16.mxu0 %v2594
        %3902 = vmatpush1.bf16.msra.mxu0 %v2593
        %3903 = vmatprep.subr.bf16.mxu0 %v2610
        %3904 = vmatpush1.bf16.msra.mxu0 %v2609
        %3905 = vmatprep.mubr.bf16.mxu0 %v814
        %3906 = vmatmul.mubr.bf16.gmra.mrb[0].mxu0 %v807
        %v3907 = vpop.f32.mrb[0].mxu0
        %v3908 = vadd.f32 0.0, %v3907
        %v3909 = vpop.f32.mrb[0].mxu0
        %v3910 = vadd.f32 0.0, %v3909
        %v3911 = vpop.f32.mrb[0].mxu0
        %v3912 = vpop.f32.mrb[0].mxu0
        %3913 = vdwg.mxu0
        %3914 = vmatprep.subr.bf16.mxu0 %v2626
        %3915 = vmatpush1.bf16.msra.mxu0 %v2625
        %3916 = vmatprep.subr.bf16.mxu0 %v2642
        %3917 = vmatpush1.bf16.msra.mxu0 %v2641
        %3918 = vmatprep.subr.bf16.mxu0 %v2658
        %3919 = vmatpush1.bf16.msra.mxu0 %v2657
        %3920 = vmatprep.subr.bf16.mxu0 %v2674
        %3921 = vmatpush1.bf16.msra.mxu0 %v2673
        %3922 = vmatprep.subr.bf16.mxu0 %v2690
        %3923 = vmatpush1.bf16.msra.mxu0 %v2689
        %3924 = vmatprep.subr.bf16.mxu0 %v2706
        %3925 = vmatpush1.bf16.msra.mxu0 %v2705
        %3926 = vmatprep.subr.bf16.mxu0 %v2722
        %3927 = vmatpush1.bf16.msra.mxu0 %v2721
        %3928 = vmatprep.subr.bf16.mxu0 %v2738
        %3929 = vmatpush1.bf16.msra.mxu0 %v2737
        %3930 = vmatprep.subr.bf16.mxu0 %v2754
        %3931 = vmatpush1.bf16.msra.mxu0 %v2753
        %3932 = vmatprep.subr.bf16.mxu0 %v2770
        %3933 = vmatpush1.bf16.msra.mxu0 %v2769
        %3934 = vmatprep.subr.bf16.mxu0 %v2786
        %3935 = vmatpush1.bf16.msra.mxu0 %v2785
        %3936 = vmatprep.subr.bf16.mxu0 %v2802
        %3937 = vmatpush1.bf16.msra.mxu0 %v2801
        %3938 = vmatprep.subr.bf16.mxu0 %v2818
        %3939 = vmatpush1.bf16.msra.mxu0 %v2817
        %3940 = vmatprep.subr.bf16.mxu0 %v2834
        %3941 = vmatpush1.bf16.msra.mxu0 %v2833
        %3942 = vmatprep.subr.bf16.mxu0 %v2850
        %3943 = vmatpush1.bf16.msra.mxu0 %v2849
        %3944 = vmatprep.subr.bf16.mxu0 %v2866
        %3945 = vmatpush1.bf16.msra.mxu0 %v2865
        %3946 = vmatprep.mubr.bf16.mxu0 %v816
        %3947 = vmatmul.mubr.bf16.gmra.mrb[0].mxu0 %v815
        %v3948 = vpop.f32.mrb[0].mxu0
        %v3949 = vadd.f32 %v3908, %v3948
        %v3950 = vpop.f32.mrb[0].mxu0
        %v3951 = vadd.f32 %v3910, %v3950
        %v3952 = vpop.f32.mrb[0].mxu0
        %v3953 = vpop.f32.mrb[0].mxu0
        %3954 = vdwg.mxu0
        %3955 = vmatprep.subr.bf16.mxu0 %v2372
        %3956 = vmatpush1.bf16.msra.mxu0 %v2371
        %3957 = vmatprep.subr.bf16.mxu0 %v2388
        %3958 = vmatpush1.bf16.msra.mxu0 %v2387
        %3959 = vmatprep.subr.bf16.mxu0 %v2404
        %3960 = vmatpush1.bf16.msra.mxu0 %v2403
        %3961 = vmatprep.subr.bf16.mxu0 %v2420
        %3962 = vmatpush1.bf16.msra.mxu0 %v2419
        %3963 = vmatprep.subr.bf16.mxu0 %v2436
        %3964 = vmatpush1.bf16.msra.mxu0 %v2435
        %3965 = vmatprep.subr.bf16.mxu0 %v2452
        %3966 = vmatpush1.bf16.msra.mxu0 %v2451
        %3967 = vmatprep.subr.bf16.mxu0 %v2468
        %3968 = vmatpush1.bf16.msra.mxu0 %v2467
        %3969 = vmatprep.subr.bf16.mxu0 %v2484
        %3970 = vmatpush1.bf16.msra.mxu0 %v2483
        %3971 = vmatprep.subr.bf16.mxu0 %v2500
        %3972 = vmatpush1.bf16.msra.mxu0 %v2499
        %3973 = vmatprep.subr.bf16.mxu0 %v2516
        %3974 = vmatpush1.bf16.msra.mxu0 %v2515
        %3975 = vmatprep.subr.bf16.mxu0 %v2532
        %3976 = vmatpush1.bf16.msra.mxu0 %v2531
        %3977 = vmatprep.subr.bf16.mxu0 %v2548
        %3978 = vmatpush1.bf16.msra.mxu0 %v2547
        %3979 = vmatprep.subr.bf16.mxu0 %v2564
        %3980 = vmatpush1.bf16.msra.mxu0 %v2563
        %3981 = vmatprep.subr.bf16.mxu0 %v2580
        %3982 = vmatpush1.bf16.msra.mxu0 %v2579
        %3983 = vmatprep.subr.bf16.mxu0 %v2596
        %3984 = vmatpush1.bf16.msra.mxu0 %v2595
        %3985 = vmatprep.subr.bf16.mxu0 %v2612
        %3986 = vmatpush1.bf16.msra.mxu0 %v2611
        %3987 = vmatprep.mubr.bf16.mxu0 %v814
        %3988 = vmatmul.mubr.bf16.gmra.mrb[0].mxu0 %v807
        %v3989 = vpop.f32.mrb[0].mxu0
        %v3990 = vadd.f32 0.0, %v3989
        %v3991 = vpop.f32.mrb[0].mxu0
        %v3992 = vadd.f32 0.0, %v3991
        %v3993 = vpop.f32.mrb[0].mxu0
        %v3994 = vpop.f32.mrb[0].mxu0
        %3995 = vdwg.mxu0
        %3996 = vmatprep.subr.bf16.mxu0 %v2628
        %3997 = vmatpush1.bf16.msra.mxu0 %v2627
        %3998 = vmatprep.subr.bf16.mxu0 %v2644
        %3999 = vmatpush1.bf16.msra.mxu0 %v2643
        %4000 = vmatprep.subr.bf16.mxu0 %v2660
        %4001 = vmatpush1.bf16.msra.mxu0 %v2659
        %4002 = vmatprep.subr.bf16.mxu0 %v2676
        %4003 = vmatpush1.bf16.msra.mxu0 %v2675
        %4004 = vmatprep.subr.bf16.mxu0 %v2692
        %4005 = vmatpush1.bf16.msra.mxu0 %v2691
        %4006 = vmatprep.subr.bf16.mxu0 %v2708
        %4007 = vmatpush1.bf16.msra.mxu0 %v2707
        %4008 = vmatprep.subr.bf16.mxu0 %v2724
        %4009 = vmatpush1.bf16.msra.mxu0 %v2723
        %4010 = vmatprep.subr.bf16.mxu0 %v2740
        %4011 = vmatpush1.bf16.msra.mxu0 %v2739
        %4012 = vmatprep.subr.bf16.mxu0 %v2756
        %4013 = vmatpush1.bf16.msra.mxu0 %v2755
        %4014 = vmatprep.subr.bf16.mxu0 %v2772
        %4015 = vmatpush1.bf16.msra.mxu0 %v2771
        %4016 = vmatprep.subr.bf16.mxu0 %v2788
        %4017 = vmatpush1.bf16.msra.mxu0 %v2787
        %4018 = vmatprep.subr.bf16.mxu0 %v2804
        %4019 = vmatpush1.bf16.msra.mxu0 %v2803
        %4020 = vmatprep.subr.bf16.mxu0 %v2820
        %4021 = vmatpush1.bf16.msra.mxu0 %v2819
        %4022 = vmatprep.subr.bf16.mxu0 %v2836
        %4023 = vmatpush1.bf16.msra.mxu0 %v2835
        %4024 = vmatprep.subr.bf16.mxu0 %v2852
        %4025 = vmatpush1.bf16.msra.mxu0 %v2851
        %4026 = vmatprep.subr.bf16.mxu0 %v2868
        %4027 = vmatpush1.bf16.msra.mxu0 %v2867
        %4028 = vmatprep.mubr.bf16.mxu0 %v816
        %4029 = vmatmul.mubr.bf16.gmra.mrb[0].mxu0 %v815
        %v4030 = vpop.f32.mrb[0].mxu0
        %v4031 = vadd.f32 %v3990, %v4030
        %v4032 = vpop.f32.mrb[0].mxu0
        %v4033 = vadd.f32 %v3992, %v4032
        %v4034 = vpop.f32.mrb[0].mxu0
        %v4035 = vpop.f32.mrb[0].mxu0
        %4036 = vdwg.mxu0
        %v4053 = vcombine.low %v3457, %v3459
        %v4054 = vcombine.low %v3539, %v3541
        %v4056 = vunpack.c.l.s4 1983009808
        %v4057 = vunpack.c.0.s8 %v4056
        %v4058 = vlaneseq
        %v4059 = vshrl.u32 %v4058, 7
        %v4060 = vsub.s32 %v4057, %v4059
        %v4061 = vrot.slane %v4053, %v4060
        %v4063 = vunpack.c.l.s4 1983009808
        %v4064 = vunpack.c.0.s8 %v4063
        %v4065 = vlaneseq
        %v4066 = vshrl.u32 %v4065, 7
        %v4067 = vsub.s32 %v4064, %v4066
        %v4068 = vrot.slane %v4054, %v4067
        %v4069 = vcombine.low %v4061, %v4068
        %v4070 = vcombine.low %v3621, %v3623
        %v4071 = vcombine.low %v3703, %v3705
        %v4073 = vunpack.c.l.s4 1983009808
        %v4074 = vunpack.c.0.s8 %v4073
        %v4075 = vlaneseq
        %v4076 = vshrl.u32 %v4075, 7
        %v4077 = vsub.s32 %v4074, %v4076
        %v4078 = vrot.slane %v4070, %v4077
        %v4080 = vunpack.c.l.s4 1983009808
        %v4081 = vunpack.c.0.s8 %v4080
        %v4082 = vlaneseq
        %v4083 = vshrl.u32 %v4082, 7
        %v4084 = vsub.s32 %v4081, %v4083
        %v4085 = vrot.slane %v4071, %v4084
        %v4086 = vcombine.low %v4078, %v4085
        %v4087 = vcombine.low %v3785, %v3787
        %v4088 = vcombine.low %v3867, %v3869
        %v4090 = vunpack.c.l.s4 1983009808
        %v4091 = vunpack.c.0.s8 %v4090
        %v4092 = vlaneseq
        %v4093 = vshrl.u32 %v4092, 7
        %v4094 = vsub.s32 %v4091, %v4093
        %v4095 = vrot.slane %v4087, %v4094
        %v4097 = vunpack.c.l.s4 1983009808
        %v4098 = vunpack.c.0.s8 %v4097
        %v4099 = vlaneseq
        %v4100 = vshrl.u32 %v4099, 7
        %v4101 = vsub.s32 %v4098, %v4100
        %v4102 = vrot.slane %v4088, %v4101
        %v4103 = vcombine.low %v4095, %v4102
        %v4104 = vcombine.low %v3949, %v3951
        %v4105 = vcombine.low %v4031, %v4033
        %v4107 = vunpack.c.l.s4 1983009808
        %v4108 = vunpack.c.0.s8 %v4107
        %v4109 = vlaneseq
        %v4110 = vshrl.u32 %v4109, 7
        %v4111 = vsub.s32 %v4108, %v4110
        %v4112 = vrot.slane %v4104, %v4111
        %v4114 = vunpack.c.l.s4 1983009808
        %v4115 = vunpack.c.0.s8 %v4114
        %v4116 = vlaneseq
        %v4117 = vshrl.u32 %v4116, 7
        %v4118 = vsub.s32 %v4115, %v4117
        %v4119 = vrot.slane %v4105, %v4118
        %v4120 = vcombine.low %v4112, %v4119
        %v4125 = vadd.f32 %v275, %v4069
        %v4126 = vadd.f32 %v276, %v4086
        %v4127 = vadd.f32 %v277, %v4103
        %v4128 = vadd.f32 %v278, %v4120
        %4129 = vst [vmem:[#allocation2] sm:$0xff] %v4125
        %4130 = vst [vmem:[#allocation2 + $0x8] sm:$0xff] %v4126
        %4131 = vst [vmem:[#allocation2 + $0x10] sm:$0xff] %v4127
        %4132 = vst [vmem:[#allocation2 + $0x18] sm:$0xff] %v4128
        // Predicated region
        $region49: #{tpu_custom_call.1} parent=31 // pred_check
          %p4133 = pneg %p267
        $region50: #{tpu_custom_call.1} parent=31 // pred_check_branch
          %4135 = sbr.rel (%p4133) target = $region52
        $region51: #{tpu_custom_call.1} parent=31 // pred_region
          %v4136 = vld [vmem:[#allocation2] sm:$0xff]
          %v4137 = vld [vmem:[#allocation2 + $0x8] sm:$0xff]
          %v4138 = vld [vmem:[#allocation2 + $0x10] sm:$0xff]
          %v4139 = vld [vmem:[#allocation2 + $0x18] sm:$0xff]
          %v4140 = vld [vmem:[%s234] sm:$0xff]
          %v4141 = vld [vmem:[%s234 + $0x8] sm:$0xff]
          %v4144 = vlaneseq
          %v4145 = vshrl.u32 %v4144, 7
          %v4146 = vsub.s32 0, %v4145
          %v4147 = vrot.slane %v4140, %v4146
          %v4148 = vlaneseq
          %v4149 = vshrl.u32 %v4148, 7
          %v4150 = vsub.s32 1, %v4149
          %v4151 = vrot.slane %v4140, %v4150
          %v4152 = vlaneseq
          %v4153 = vshrl.u32 %v4152, 7
          %v4154 = vsub.s32 2, %v4153
          %v4155 = vrot.slane %v4140, %v4154
          %v4156 = vlaneseq
          %v4157 = vshrl.u32 %v4156, 7
          %v4158 = vsub.s32 3, %v4157
          %v4159 = vrot.slane %v4140, %v4158
          %v4160 = vlaneseq
          %v4161 = vshrl.u32 %v4160, 7
          %v4162 = vsub.s32 4, %v4161
          %v4163 = vrot.slane %v4140, %v4162
          %v4164 = vlaneseq
          %v4165 = vshrl.u32 %v4164, 7
          %v4166 = vsub.s32 5, %v4165
          %v4167 = vrot.slane %v4140, %v4166
          %v4168 = vlaneseq
          %v4169 = vshrl.u32 %v4168, 7
          %v4170 = vsub.s32 6, %v4169
          %v4171 = vrot.slane %v4140, %v4170
          %v4172 = vlaneseq
          %v4173 = vshrl.u32 %v4172, 7
          %v4174 = vsub.s32 7, %v4173
          %v4175 = vrot.slane %v4140, %v4174
          %v4176 = vlaneseq
          %v4177 = vshrl.u32 %v4176, 7
          %v4178 = vsub.s32 0, %v4177
          %v4179 = vrot.slane %v4141, %v4178
          %v4180 = vlaneseq
          %v4181 = vshrl.u32 %v4180, 7
          %v4182 = vsub.s32 1, %v4181
          %v4183 = vrot.slane %v4141, %v4182
          %v4184 = vlaneseq
          %v4185 = vshrl.u32 %v4184, 7
          %v4186 = vsub.s32 2, %v4185
          %v4187 = vrot.slane %v4141, %v4186
          %v4188 = vlaneseq
          %v4189 = vshrl.u32 %v4188, 7
          %v4190 = vsub.s32 3, %v4189
          %v4191 = vrot.slane %v4141, %v4190
          %v4192 = vlaneseq
          %v4193 = vshrl.u32 %v4192, 7
          %v4194 = vsub.s32 4, %v4193
          %v4195 = vrot.slane %v4141, %v4194
          %v4196 = vlaneseq
          %v4197 = vshrl.u32 %v4196, 7
          %v4198 = vsub.s32 5, %v4197
          %v4199 = vrot.slane %v4141, %v4198
          %v4200 = vlaneseq
          %v4201 = vshrl.u32 %v4200, 7
          %v4202 = vsub.s32 6, %v4201
          %v4203 = vrot.slane %v4141, %v4202
          %v4204 = vlaneseq
          %v4205 = vshrl.u32 %v4204, 7
          %v4206 = vsub.s32 7, %v4205
          %v4207 = vrot.slane %v4141, %v4206
          %v4208 = vcombine.low %v4147, %v4151
          %v4209 = vcombine.low %v4155, %v4159
          %v4211 = vunpack.c.l.s4 1983009808
          %v4212 = vunpack.c.0.s8 %v4211
          %v4213 = vlaneseq
          %v4214 = vshrl.u32 %v4213, 7
          %v4215 = vsub.s32 %v4212, %v4214
          %v4216 = vrot.slane %v4208, %v4215
          %v4218 = vunpack.c.l.s4 1983009808
          %v4219 = vunpack.c.0.s8 %v4218
          %v4220 = vlaneseq
          %v4221 = vshrl.u32 %v4220, 7
          %v4222 = vsub.s32 %v4219, %v4221
          %v4223 = vrot.slane %v4209, %v4222
          %v4224 = vcombine.low %v4216, %v4223
          %v4225 = vcombine.low %v4163, %v4167
          %v4226 = vcombine.low %v4171, %v4175
          %v4228 = vunpack.c.l.s4 1983009808
          %v4229 = vunpack.c.0.s8 %v4228
          %v4230 = vlaneseq
          %v4231 = vshrl.u32 %v4230, 7
          %v4232 = vsub.s32 %v4229, %v4231
          %v4233 = vrot.slane %v4225, %v4232
          %v4235 = vunpack.c.l.s4 1983009808
          %v4236 = vunpack.c.0.s8 %v4235
          %v4237 = vlaneseq
          %v4238 = vshrl.u32 %v4237, 7
          %v4239 = vsub.s32 %v4236, %v4238
          %v4240 = vrot.slane %v4226, %v4239
          %v4241 = vcombine.low %v4233, %v4240
          %v4242 = vcombine.low %v4179, %v4183
          %v4243 = vcombine.low %v4187, %v4191
          %v4245 = vunpack.c.l.s4 1983009808
          %v4246 = vunpack.c.0.s8 %v4245
          %v4247 = vlaneseq
          %v4248 = vshrl.u32 %v4247, 7
          %v4249 = vsub.s32 %v4246, %v4248
          %v4250 = vrot.slane %v4242, %v4249
          %v4252 = vunpack.c.l.s4 1983009808
          %v4253 = vunpack.c.0.s8 %v4252
          %v4254 = vlaneseq
          %v4255 = vshrl.u32 %v4254, 7
          %v4256 = vsub.s32 %v4253, %v4255
          %v4257 = vrot.slane %v4243, %v4256
          %v4258 = vcombine.low %v4250, %v4257
          %v4259 = vcombine.low %v4195, %v4199
          %v4260 = vcombine.low %v4203, %v4207
          %v4262 = vunpack.c.l.s4 1983009808
          %v4263 = vunpack.c.0.s8 %v4262
          %v4264 = vlaneseq
          %v4265 = vshrl.u32 %v4264, 7
          %v4266 = vsub.s32 %v4263, %v4265
          %v4267 = vrot.slane %v4259, %v4266
          %v4269 = vunpack.c.l.s4 1983009808
          %v4270 = vunpack.c.0.s8 %v4269
          %v4271 = vlaneseq
          %v4272 = vshrl.u32 %v4271, 7
          %v4273 = vsub.s32 %v4270, %v4272
          %v4274 = vrot.slane %v4260, %v4273
          %v4275 = vcombine.low %v4267, %v4274
          %v4280 = vadd.f32 %v4136, %v4224
          %v4281 = vadd.f32 %v4137, %v4241
          %v4282 = vadd.f32 %v4138, %v4258
          %v4283 = vadd.f32 %v4139, %v4275
          %v4284 = vmax.f32 %v4280, 0.0
          %v4285 = vmax.f32 %v4281, 0.0
          %v4286 = vmax.f32 %v4282, 0.0
          %v4287 = vmax.f32 %v4283, 0.0
          %v4292 = vcombine.high %v4284, %v4284
          %v4294 = vunpack.c.l.s4 1983009808
          %v4295 = vunpack.c.0.s8 %v4294
          %v4296 = vlaneseq
          %v4297 = vshrl.u32 %v4296, 7
          %v4298 = vsub.s32 %v4295, %v4297
          %v4299 = vrot.slane %v4284, %v4298
          %v4301 = vunpack.c.l.s4 1983009808
          %v4302 = vunpack.c.0.s8 %v4301
          %v4303 = vlaneseq
          %v4304 = vshrl.u32 %v4303, 7
          %v4305 = vsub.s32 %v4302, %v4304
          %v4306 = vrot.slane %v4292, %v4305
          %v4307 = vcombine.high %v4299, %v4299
          %v4308 = vcombine.high %v4306, %v4306
          %v4309 = vcombine.high %v4285, %v4285
          %v4311 = vunpack.c.l.s4 1983009808
          %v4312 = vunpack.c.0.s8 %v4311
          %v4313 = vlaneseq
          %v4314 = vshrl.u32 %v4313, 7
          %v4315 = vsub.s32 %v4312, %v4314
          %v4316 = vrot.slane %v4285, %v4315
          %v4318 = vunpack.c.l.s4 1983009808
          %v4319 = vunpack.c.0.s8 %v4318
          %v4320 = vlaneseq
          %v4321 = vshrl.u32 %v4320, 7
          %v4322 = vsub.s32 %v4319, %v4321
          %v4323 = vrot.slane %v4309, %v4322
          %v4324 = vcombine.high %v4316, %v4316
          %v4325 = vcombine.high %v4323, %v4323
          %v4326 = vcombine.high %v4286, %v4286
          %v4328 = vunpack.c.l.s4 1983009808
          %v4329 = vunpack.c.0.s8 %v4328
          %v4330 = vlaneseq
          %v4331 = vshrl.u32 %v4330, 7
          %v4332 = vsub.s32 %v4329, %v4331
          %v4333 = vrot.slane %v4286, %v4332
          %v4335 = vunpack.c.l.s4 1983009808
          %v4336 = vunpack.c.0.s8 %v4335
          %v4337 = vlaneseq
          %v4338 = vshrl.u32 %v4337, 7
          %v4339 = vsub.s32 %v4336, %v4338
          %v4340 = vrot.slane %v4326, %v4339
          %v4341 = vcombine.high %v4333, %v4333
          %v4342 = vcombine.high %v4340, %v4340
          %v4343 = vcombine.high %v4287, %v4287
          %v4345 = vunpack.c.l.s4 1983009808
          %v4346 = vunpack.c.0.s8 %v4345
          %v4347 = vlaneseq
          %v4348 = vshrl.u32 %v4347, 7
          %v4349 = vsub.s32 %v4346, %v4348
          %v4350 = vrot.slane %v4287, %v4349
          %v4352 = vunpack.c.l.s4 1983009808
          %v4353 = vunpack.c.0.s8 %v4352
          %v4354 = vlaneseq
          %v4355 = vshrl.u32 %v4354, 7
          %v4356 = vsub.s32 %v4353, %v4355
          %v4357 = vrot.slane %v4343, %v4356
          %v4358 = vcombine.high %v4350, %v4350
          %v4359 = vcombine.high %v4357, %v4357
          %v4376 = vpack.c.bf16 %v4299, %v4299
          %v4377 = vpack.c.bf16 %v4307, %v4307
          %v4378 = vpack.c.bf16 %v4306, %v4306
          %v4379 = vpack.c.bf16 %v4308, %v4308
          %v4380 = vpack.c.bf16 %v4316, %v4316
          %v4381 = vpack.c.bf16 %v4324, %v4324
          %v4382 = vpack.c.bf16 %v4323, %v4323
          %v4383 = vpack.c.bf16 %v4325, %v4325
          %v4384 = vpack.c.bf16 %v4333, %v4333
          %v4385 = vpack.c.bf16 %v4341, %v4341
          %v4386 = vpack.c.bf16 %v4340, %v4340
          %v4387 = vpack.c.bf16 %v4342, %v4342
          %v4388 = vpack.c.bf16 %v4350, %v4350
          %v4389 = vpack.c.bf16 %v4358, %v4358
          %v4390 = vpack.c.bf16 %v4357, %v4357
          %v4391 = vpack.c.bf16 %v4359, %v4359
          %v4408 = vcombine.low %v4376, %v4377
          %v4409 = vcombine.low %v4378, %v4379
          %v4410 = vcombine.low %v4380, %v4381
          %v4411 = vcombine.low %v4382, %v4383
          %v4413 = vunpack.c.l.s4 1966171168
          %v4414 = vunpack.c.0.s8 %v4413
          %v4415 = vlaneseq
          %v4416 = vshrl.u32 %v4415, 7
          %v4417 = vsub.s32 %v4414, %v4416
          %v4418 = vrot.slane %v4408, %v4417
          %v4420 = vunpack.c.l.s4 1966171168
          %v4421 = vunpack.c.0.s8 %v4420
          %v4422 = vlaneseq
          %v4423 = vshrl.u32 %v4422, 7
          %v4424 = vsub.s32 %v4421, %v4423
          %v4425 = vrot.slane %v4409, %v4424
          %v4427 = vunpack.c.l.s4 1966171168
          %v4428 = vunpack.c.0.s8 %v4427
          %v4429 = vlaneseq
          %v4430 = vshrl.u32 %v4429, 7
          %v4431 = vsub.s32 %v4428, %v4430
          %v4432 = vrot.slane %v4410, %v4431
          %v4434 = vunpack.c.l.s4 1966171168
          %v4435 = vunpack.c.0.s8 %v4434
          %v4436 = vlaneseq
          %v4437 = vshrl.u32 %v4436, 7
          %v4438 = vsub.s32 %v4435, %v4437
          %v4439 = vrot.slane %v4411, %v4438
          %v4440 = vcombine.low %v4418, %v4425
          %v4441 = vcombine.low %v4432, %v4439
          %v4443 = vunpack.c.l.s4 1966171168
          %v4444 = vunpack.c.0.s8 %v4443
          %v4445 = vlaneseq
          %v4446 = vshrl.u32 %v4445, 7
          %v4447 = vsub.s32 %v4444, %v4446
          %v4448 = vrot.slane %v4440, %v4447
          %v4450 = vunpack.c.l.s4 1966171168
          %v4451 = vunpack.c.0.s8 %v4450
          %v4452 = vlaneseq
          %v4453 = vshrl.u32 %v4452, 7
          %v4454 = vsub.s32 %v4451, %v4453
          %v4455 = vrot.slane %v4441, %v4454
          %v4456 = vcombine.low %v4448, %v4455
          %v4457 = vcombine.low %v4384, %v4385
          %v4458 = vcombine.low %v4386, %v4387
          %v4459 = vcombine.low %v4388, %v4389
          %v4460 = vcombine.low %v4390, %v4391
          %v4462 = vunpack.c.l.s4 1966171168
          %v4463 = vunpack.c.0.s8 %v4462
          %v4464 = vlaneseq
          %v4465 = vshrl.u32 %v4464, 7
          %v4466 = vsub.s32 %v4463, %v4465
          %v4467 = vrot.slane %v4457, %v4466
          %v4469 = vunpack.c.l.s4 1966171168
          %v4470 = vunpack.c.0.s8 %v4469
          %v4471 = vlaneseq
          %v4472 = vshrl.u32 %v4471, 7
          %v4473 = vsub.s32 %v4470, %v4472
          %v4474 = vrot.slane %v4458, %v4473
          %v4476 = vunpack.c.l.s4 1966171168
          %v4477 = vunpack.c.0.s8 %v4476
          %v4478 = vlaneseq
          %v4479 = vshrl.u32 %v4478, 7
          %v4480 = vsub.s32 %v4477, %v4479
          %v4481 = vrot.slane %v4459, %v4480
          %v4483 = vunpack.c.l.s4 1966171168
          %v4484 = vunpack.c.0.s8 %v4483
          %v4485 = vlaneseq
          %v4486 = vshrl.u32 %v4485, 7
          %v4487 = vsub.s32 %v4484, %v4486
          %v4488 = vrot.slane %v4460, %v4487
          %v4489 = vcombine.low %v4467, %v4474
          %v4490 = vcombine.low %v4481, %v4488
          %v4492 = vunpack.c.l.s4 1966171168
          %v4493 = vunpack.c.0.s8 %v4492
          %v4494 = vlaneseq
          %v4495 = vshrl.u32 %v4494, 7
          %v4496 = vsub.s32 %v4493, %v4495
          %v4497 = vrot.slane %v4489, %v4496
          %v4499 = vunpack.c.l.s4 1966171168
          %v4500 = vunpack.c.0.s8 %v4499
          %v4501 = vlaneseq
          %v4502 = vshrl.u32 %v4501, 7
          %v4503 = vsub.s32 %v4500, %v4502
          %v4504 = vrot.slane %v4490, %v4503
          %v4505 = vcombine.low %v4497, %v4504
          %4508 = vst [vmem:[%s261] sm:$0xff] %v4456
          %4509 = vst [vmem:[%s261 + $0x8] sm:$0xff] %v4505
        $region52: #{tpu_custom_call.1} parent=31 // pred_fallthru
          _
        %s4510 = sand.u32 %s121, 1
        %s4511 = scalar_lea.sflag [#allocation5], %s4510
        %s4512 = sand.u32 %s121, 1
        %s4513 = smul.addr %s4512, 16
        %s4514 = scalar_lea.vmem [#allocation9], %s4513
        // Predicated region
        $region53: #{tpu_custom_call.1} parent=31 // pred_check
          %p4515 = pneg %p131
        $region54: #{tpu_custom_call.1} parent=31 // pred_check_branch
          %4517 = sbr.rel (%p4515) target = $region56
        $region55: #{tpu_custom_call.1} parent=31 // pred_region
          %s4518 = smul.u32 16, %s25
          %s4520 = ssub.s32 256, 256
          %4521 = vsyncadd %s4511, %s4520
          %s4522 = smul.addr %s4518, 16
          %s4523 = scalar_lea.hbm %s3, %s4522
          %s4525 = sshll.u32 %s4514, 4
          %s4526 = int_to_ptr.vmem [resolvable:$true] %s4525
          %4528 = dma.vmem_to_hbm [thread:$0]  %s4526, 256, %s4523, %s4511
        $region56: #{tpu_custom_call.1} parent=31 // pred_fallthru
          _
      $region32: #{tpu_custom_call.1} parent=5 // pred_fallthru
        _
      %p4529 = scmp.le.s32.totalorder 2, %s16
      // Predicated region
      $region57: #{tpu_custom_call.1} parent=5 // pred_check
        %p4530 = pneg %p4529
      $region58: #{tpu_custom_call.1} parent=5 // pred_check_branch
        %4532 = sbr.rel (%p4530) target = $region60
      $region59: #{tpu_custom_call.1} parent=5 // pred_region
        %s4533 = ssub.s32 %s16, 2
        // Predicated region
        $region61: #{tpu_custom_call.1} parent=59 // pred_check
          %p4534 = pneg %p137
        $region62: #{tpu_custom_call.1} parent=59 // pred_check_branch
          %4536 = sbr.rel (%p4534) target = $region64
        $region63: #{tpu_custom_call.1} parent=59 // pred_region
          %s4537 = sand.u32 %s122, 1
          %s4538 = scalar_lea.sflag [#allocation5], %s4537
          %s4539 = sand.u32 %s122, 1
          %s4540 = smul.addr %s4539, 16
          %s4541 = scalar_lea.vmem [#allocation9], %s4540
          %4542 = dma.done %s4538, 256
        $region64: #{tpu_custom_call.1} parent=59 // pred_fallthru
          _
      $region60: #{tpu_custom_call.1} parent=5 // pred_fallthru
        _
    $region6: #{tpu_custom_call.1} parent=1 // loop_footer
      %s20 = sadd.s32 1, %s16
    $region7: #{tpu_custom_call.1} parent=1 // loop_footer_branch
      %15 = sbr.rel target = $region3
    $region8: #{tpu_custom_call.1} parent=1 // loop_exit
      _
    %4543 = vsyncpa [#allocation4], 1
    %s4544 = scalar_lea.sflag [#allocation4], 1
    %4545 = vsyncpa %s4544, 1
    %4546 = vsyncpa [#allocation7], 1
    %s4547 = scalar_lea.sflag [#allocation7], 1
    %4548 = vsyncpa %s4547, 1
    %4549 = vsyncpa [#allocation5], 1
    %s4550 = scalar_lea.sflag [#allocation5], 1
    %4551 = vsyncpa %s4550, 1

</llo_original>
